<compile_context>
chip_gen: v5e
topology: v5e:2x2
jax: 0.10.0
libtpu: 0.0.40
codegen_flags: <defaults>
</compile_context>

<pallas_src>
import functools

import jax
import jax.numpy as jnp
from jax import lax
from jax.experimental import pallas as pl
from jax.experimental.pallas import tpu as pltpu

EPS = 1e-5
NEG_SLOPE = 0.1


def _leaky(x):
    return jnp.where(x > 0, x, NEG_SLOPE * x)


def _res_block_kernel(x_ref, w1_ref, b1_ref, w3_ref, b2_ref, o_ref,
                      band_ref, acc_ref, *, n_iters, use_residuals):
    # x_ref : (1, H, W, C)  f32      input activations
    # w1_ref: (I, C, Cm)    bf16     1x1 conv weights (BN scale folded in)
    # b1_ref: (I, 1, Cm)    f32      folded BN bias after conv1
    # w3_ref: (I, 3, 3*Cm, C) bf16   3x3 conv weights (BN scale folded in),
    #                                 layout [dh][dw*Cm + cm, c_out]
    # b2_ref: (I, 1, C)     f32      folded BN bias after conv3
    # band_ref: ((H+2)*W, 3*Cm) f32  dw-shifted im2col bands with H halo
    # acc_ref : (H*W, C)    f32      3x3-conv accumulator
    _, H, W, C = x_ref.shape
    Cm = w1_ref.shape[2]
    HW = H * W

    # Column-position masks: zero out the elements that would otherwise wrap
    # across a row boundary when hid is shifted by +-1 along w.
    w_pos = lax.broadcasted_iota(jnp.int32, (HW, 1), 0) % W
    not_last_col = w_pos != (W - 1)   # for the "left neighbor" band (dw=0)
    not_first_col = w_pos != 0        # for the "right neighbor" band (dw=2)

    # Zero only the thin halo fringes (top/bottom W+1 rows) of the band
    # scratch -- the band interiors are fully overwritten every iteration.
    band_ref[0:W + 1, :] = jnp.zeros((W + 1, 3 * Cm), jnp.float32)
    band_ref[HW + W - 1:HW + 2 * W, :] = jnp.zeros((W + 1, 3 * Cm),
                                                   jnp.float32)

    x_cur = x_ref[0].reshape(HW, C).astype(jnp.float32)   # residual stays f32

    for it in range(n_iters):
        # ---- 1x1 conv (bf16 MXU, f32 accum) + folded BN bias + LeakyReLU --
        hid = jnp.dot(x_cur.astype(jnp.bfloat16), w1_ref[it],
                      preferred_element_type=jnp.float32)
        hid = _leaky(hid + b1_ref[it])                     # (HW, Cm) f32

        # ---- build the K-folded operand for the 3x3 conv -------------------
        # band dw stored at row offset (W + 1 - dw) so that
        #   band_ref[dh*W + q, dw*Cm + cm] == hid_padded[h+dh, w+dw, cm]
        # for q = h*W + w (zeros where the 3x3 window falls on padding).
        band_ref[W + 1:W + 1 + HW, 0:Cm] = jnp.where(not_last_col, hid, 0.0)
        band_ref[W:W + HW, Cm:2 * Cm] = hid
        band_ref[W - 1:W - 1 + HW, 2 * Cm:3 * Cm] = jnp.where(
            not_first_col, hid, 0.0)

        # ---- 3x3 conv: 3 matmuls with K = 3*Cm (bf16 MXU, f32 accum) -------
        for dh in range(3):
            blk = band_ref[dh * W:dh * W + HW, :].astype(jnp.bfloat16)
            contrib = jnp.dot(blk, w3_ref[it, dh],
                              preferred_element_type=jnp.float32)
            if dh == 0:
                acc_ref[...] = contrib
            else:
                acc_ref[...] += contrib

        # ---- folded BN bias + LeakyReLU + residual (all f32) ---------------
        y = _leaky(acc_ref[...] + b2_ref[it])
        x_cur = y + x_cur if use_residuals else y

    o_ref[0] = x_cur.reshape(H, W, C).astype(o_ref.dtype)


def _prepare_params(params):
    """Fold eval-mode BN into the conv weights/biases; pack 3x3 weights into
    the (dh, dw*Cm + cm, c_out) layout used by the kernel; cast to bf16."""
    w1_l, b1_l, w3_l, b2_l = [], [], [], []
    for p in params:
        Cm, C = p["w1"].shape[0], p["w1"].shape[1]
        s1 = p["g1"] / jnp.sqrt(p["v1"] + EPS)              # (Cm,)
        b1 = (p["b1"] - p["m1"]) * s1 + p["be1"]            # (Cm,)
        s2 = p["g2"] / jnp.sqrt(p["v2"] + EPS)              # (C,)
        b2 = (p["b3"] - p["m2"]) * s2 + p["be2"]            # (C,)

        # conv1: (Cm, C, 1, 1) -> (C, Cm), BN scale folded per out channel.
        w1 = p["w1"][:, :, 0, 0].T * s1[None, :]
        # conv3: (C, Cm, 3, 3) -> (dh, dw, Cm, C) -> (3, 3*Cm, C), scaled.
        w3 = jnp.transpose(p["w3"], (2, 3, 1, 0)).reshape(3, 3 * Cm, C)
        w3 = w3 * s2[None, None, :]

        w1_l.append(w1.astype(jnp.bfloat16))
        b1_l.append(b1.reshape(1, Cm).astype(jnp.float32))
        w3_l.append(w3.astype(jnp.bfloat16))
        b2_l.append(b2.reshape(1, C).astype(jnp.float32))
    return (jnp.stack(w1_l), jnp.stack(b1_l),
            jnp.stack(w3_l), jnp.stack(b2_l))


def residual_block_pallas(x_nchw, params, use_residuals=True):
    """Forward pass of ResidualBlock.  x_nchw: (B, C, H, W) float32."""
    B, C, H, W = x_nchw.shape
    Cm = C // 2
    n_iters = len(params)

    x = jnp.transpose(x_nchw, (0, 2, 3, 1))        # NCHW -> NHWC
    w1, b1, w3, b2 = _prepare_params(params)

    kernel = functools.partial(_res_block_kernel, n_iters=n_iters,
                               use_residuals=use_residuals)

    out = pl.pallas_call(
        kernel,
        out_shape=jax.ShapeDtypeStruct((B, H, W, C), x.dtype),
        grid_spec=pltpu.PrefetchScalarGridSpec(
            num_scalar_prefetch=0,
            grid=(B,),
            in_specs=[
                pl.BlockSpec((1, H, W, C), lambda b: (b, 0, 0, 0)),
                pl.BlockSpec((n_iters, C, Cm), lambda b: (0, 0, 0)),
                pl.BlockSpec((n_iters, 1, Cm), lambda b: (0, 0, 0)),
                pl.BlockSpec((n_iters, 3, 3 * Cm, C),
                             lambda b: (0, 0, 0, 0)),
                pl.BlockSpec((n_iters, 1, C), lambda b: (0, 0, 0)),
            ],
            out_specs=pl.BlockSpec((1, H, W, C), lambda b: (b, 0, 0, 0)),
            scratch_shapes=[
                pltpu.VMEM(((H + 2) * W, 3 * Cm), jnp.float32),  # im2col bands
                pltpu.VMEM((H * W, C), jnp.float32),             # accumulator
            ],
        ),
        compiler_params=pltpu.CompilerParams(
            dimension_semantics=("parallel",),      # batch is independent
            vmem_limit_bytes=48 * 1024 * 1024,      # fits v5e/v6e/v7x budgets
        ),
    )(x, w1, b1, w3, b2)

    return jnp.transpose(out, (0, 3, 1, 2))        # NHWC -> NCHW


# ---------------------------------------------------------------------------
# Pure-JAX reference (mirrors the PyTorch eval-mode forward) for verification.
# ---------------------------------------------------------------------------
def _bn_ref(x, gamma, beta, mean, var):
    inv = gamma / jnp.sqrt(var + EPS)
    return (x - mean[None, :, None, None]) * inv[None, :, None, None] \
        + beta[None, :, None, None]


def residual_block_ref(x, params, use_residuals=True):
    dn = ("NCHW", "OIHW", "NCHW")
    for p in params:
        residual = x
        h = lax.conv_general_dilated(x, p["w1"], (1, 1), "VALID",
                                     dimension_numbers=dn)
        h = h + p["b1"][None, :, None, None]
        h = _leaky(_bn_ref(h, p["g1"], p["be1"], p["m1"], p["v1"]))
        h = lax.conv_general_dilated(h, p["w3"], (1, 1), ((1, 1), (1, 1)),
                                     dimension_numbers=dn)
        h = h + p["b3"][None, :, None, None]
        h = _leaky(_bn_ref(h, p["g2"], p["be2"], p["m2"], p["v2"]))
        x = h + residual if use_residuals else h
    return x


def init_params(key, channels, n_iters):
    Cm = channels // 2
    params = []
    for _ in range(n_iters):
        keys = jax.random.split(key, 11)
        key = keys[0]
        p = {
            "w1": jax.random.normal(keys[1], (Cm, channels, 1, 1),
                                    jnp.float32) * 0.2,
            "b1": jax.random.normal(keys[2], (Cm,), jnp.float32) * 0.1,
            "g1": jax.random.uniform(keys[3], (Cm,), jnp.float32, 0.8, 1.2),
            "be1": jax.random.normal(keys[4], (Cm,), jnp.float32) * 0.1,
            "m1": jax.random.normal(keys[5], (Cm,), jnp.float32) * 0.1,
            "v1": jax.random.uniform(keys[6], (Cm,), jnp.float32, 0.5, 1.5),
            "w3": jax.random.normal(keys[7], (channels, Cm, 3, 3),
                                    jnp.float32) * 0.1,
            "b3": jax.random.normal(keys[8], (channels,), jnp.float32) * 0.1,
            "g2": jax.random.uniform(keys[9], (channels,), jnp.float32,
                                     0.8, 1.2),
            "be2": jax.random.normal(keys[10], (channels,),
                                     jnp.float32) * 0.1,
        }
        key2 = jax.random.split(key, 3)
        key = key2[0]
        p["m2"] = jax.random.normal(key2[1], (channels,), jnp.float32) * 0.1
        p["v2"] = jax.random.uniform(key2[2], (channels,), jnp.float32,
                                     0.5, 1.5)
        params.append(p)
    return params


if __name__ == "__main__":
    B, C, H, W = 2, 4, 16, 16
    n_iters = 2
    use_residuals = True

    root = jax.random.PRNGKey(0)
    kx, kp = jax.random.split(root)
    x = jax.random.normal(kx, (B, C, H, W), jnp.float32)
    params = init_params(kp, C, n_iters)

    out = residual_block_pallas(x, params, use_residuals)
    out = jax.block_until_ready(out)

    ref = residual_block_ref(x, params, use_residuals)
    assert out.shape == (B, C, H, W)
    # bf16 MXU operands -> loosened tolerance vs the f32 reference.
    assert jnp.allclose(out, ref, rtol=2e-2, atol=2e-2), \
        f"max abs err = {jnp.max(jnp.abs(out - ref))}"

    print("KERNEL_OK")
</pallas_src>

<mosaic_0001>
module attributes {stable_mosaic.version = 11 : i64} {
  func.func @_res_block_kernel(%arg0: i32, %arg1: memref<1x16x16x4xf32, #tpu.memory_space<vmem>>, %arg2: memref<2x4x2xbf16, #tpu.memory_space<vmem>>, %arg3: memref<2x1x2xf32, #tpu.memory_space<vmem>>, %arg4: memref<2x3x6x4xbf16, #tpu.memory_space<vmem>>, %arg5: memref<2x1x4xf32, #tpu.memory_space<vmem>>, %arg6: memref<1x16x16x4xf32, #tpu.memory_space<vmem>>, %arg7: memref<288x6xf32, #tpu.memory_space<vmem>>, %arg8: memref<256x4xf32, #tpu.memory_space<vmem>>) attributes {dimension_semantics = [#tpu.dimension_semantics<parallel>], iteration_bounds = array<i64: 2>, scalar_prefetch = 0 : i64, scratch_operands = 2 : i64, tpu.core_type = #tpu.core_type<tc>, window_params = [{transform_indices = @transform_0, window_bounds = array<i64: 1, 16, 16, 4>}, {pipeline_mode = #tpu.pipeline_mode<synchronous>, transform_indices = @transform_1, window_bounds = array<i64: 2, 4, 2>}, {pipeline_mode = #tpu.pipeline_mode<synchronous>, transform_indices = @transform_2, window_bounds = array<i64: 2, 1, 2>}, {pipeline_mode = #tpu.pipeline_mode<synchronous>, transform_indices = @transform_3, window_bounds = array<i64: 2, 3, 6, 4>}, {pipeline_mode = #tpu.pipeline_mode<synchronous>, transform_indices = @transform_4, window_bounds = array<i64: 2, 1, 4>}, {transform_indices = @transform_5, window_bounds = array<i64: 1, 16, 16, 4>}]} {
    %0 = tpu.iota {dimensions = array<i32: 0>} : vector<256x1xi32>
    %c16_i32 = arith.constant 16 : i32
    %c0_i32 = arith.constant 0 : i32
    %1 = arith.cmpi eq, %c16_i32, %c0_i32 : i32
    %c1_i32 = arith.constant 1 : i32
    %2 = arith.select %1, %c1_i32, %c16_i32 : i32
    %3 = vector.broadcast %2 : i32 to vector<256x1xi32>
    %4 = arith.remsi %0, %3 : vector<256x1xi32>
    %c0_i32_0 = arith.constant 0 : i32
    %5 = vector.broadcast %c0_i32_0 : i32 to vector<256x1xi32>
    %6 = arith.cmpi ne, %4, %5 : vector<256x1xi32>
    %c0_i32_1 = arith.constant 0 : i32
    %7 = vector.broadcast %c0_i32_1 : i32 to vector<256x1xi32>
    %8 = arith.cmpi slt, %4, %7 : vector<256x1xi32>
    %c0_i32_2 = arith.constant 0 : i32
    %9 = arith.cmpi slt, %2, %c0_i32_2 : i32
    %10 = vector.broadcast %9 : i1 to vector<256x1xi1>
    %11 = vector.broadcast %10 : vector<256x1xi1> to vector<256x1xi1>
    %12 = arith.xori %8, %11 : vector<256x1xi1>
    %13 = arith.andi %12, %6 : vector<256x1xi1>
    %14 = vector.broadcast %2 : i32 to vector<256x1xi32>
    %15 = arith.addi %4, %14 : vector<256x1xi32>
    %16 = arith.select %13, %15, %4 : vector<256x1xi1>, vector<256x1xi32>
    %c15_i32 = arith.constant 15 : i32
    %17 = vector.broadcast %c15_i32 : i32 to vector<256x1xi32>
    %18 = arith.cmpi ne, %16, %17 : vector<256x1xi32>
    %c0_i32_3 = arith.constant 0 : i32
    %19 = vector.broadcast %c0_i32_3 : i32 to vector<256x1xi32>
    %20 = arith.cmpi ne, %16, %19 : vector<256x1xi32>
    %cst = arith.constant 0.000000e+00 : f32
    %21 = vector.broadcast %cst : f32 to vector<17x6xf32>
    %c0 = arith.constant 0 : index
    %c0_4 = arith.constant 0 : index
    %22 = vector.load %arg7[%c0, %c0_4] : memref<288x6xf32, #tpu.memory_space<vmem>>, vector<17x6xf32>
    tpu.vector_store %arg7[%c0, %c0_4], %21 {strides = array<i32>} : memref<288x6xf32, #tpu.memory_space<vmem>>, vector<17x6xf32>,
    %cst_5 = arith.constant 0.000000e+00 : f32
    %23 = vector.broadcast %cst_5 : f32 to vector<17x6xf32>
    %c271 = arith.constant 271 : index
    %c0_6 = arith.constant 0 : index
    %24 = vector.load %arg7[%c271, %c0_6] : memref<288x6xf32, #tpu.memory_space<vmem>>, vector<17x6xf32>
    tpu.vector_store %arg7[%c271, %c0_6], %23 {strides = array<i32>} : memref<288x6xf32, #tpu.memory_space<vmem>>, vector<17x6xf32>,
    %c0_7 = arith.constant 0 : index
    %c0_8 = arith.constant 0 : index
    %c0_9 = arith.constant 0 : index
    %c0_10 = arith.constant 0 : index
    %25 = vector.load %arg1[%c0_7, %c0_8, %c0_9, %c0_10] : memref<1x16x16x4xf32, #tpu.memory_space<vmem>>, vector<1x16x16x4xf32>
    %26 = vector.shape_cast %25 : vector<1x16x16x4xf32> to vector<16x16x4xf32>
    %27 = vector.shape_cast %26 : vector<16x16x4xf32> to vector<256x4xf32>
    %28 = arith.truncf %27 : vector<256x4xf32> to vector<256x4xbf16>
    %c0_11 = arith.constant 0 : index
    %c0_12 = arith.constant 0 : index
    %c0_13 = arith.constant 0 : index
    %29 = vector.load %arg2[%c0_11, %c0_12, %c0_13] : memref<2x4x2xbf16, #tpu.memory_space<vmem>>, vector<1x4x2xbf16>
    %30 = vector.shape_cast %29 : vector<1x4x2xbf16> to vector<4x2xbf16>
    %cst_14 = arith.constant dense<0.000000e+00> : vector<256x2xf32>
    %31 = tpu.matmul %28, %30, %cst_14 {dimension_numbers = #tpu.dot_dimension_numbers<[1], [0], [0], [1], [0, 0, 1, 1], [], []>} : vector<256x4xbf16>, vector<4x2xbf16>, vector<256x2xf32> -> vector<256x2xf32>
    %c0_15 = arith.constant 0 : index
    %c0_16 = arith.constant 0 : index
    %c0_17 = arith.constant 0 : index
    %32 = vector.load %arg3[%c0_15, %c0_16, %c0_17] : memref<2x1x2xf32, #tpu.memory_space<vmem>>, vector<1x1x2xf32>
    %33 = vector.shape_cast %32 : vector<1x1x2xf32> to vector<1x2xf32>
    %34 = vector.broadcast %33 : vector<1x2xf32> to vector<256x2xf32>
    %35 = arith.addf %31, %34 : vector<256x2xf32>
    %cst_18 = arith.constant 0.000000e+00 : f32
    %36 = vector.broadcast %cst_18 : f32 to vector<256x2xf32>
    %37 = arith.cmpf ogt, %35, %36 : vector<256x2xf32>
    %cst_19 = arith.constant 1.000000e-01 : f32
    %38 = vector.broadcast %cst_19 : f32 to vector<256x2xf32>
    %39 = arith.mulf %38, %35 : vector<256x2xf32>
    %40 = arith.select %37, %35, %39 : vector<256x2xi1>, vector<256x2xf32>
    %cst_20 = arith.constant 0.000000e+00 : f32
    %41 = vector.shape_cast %18 : vector<256x1xi1> to vector<256x1xi1>
    %42 = vector.broadcast %41 : vector<256x1xi1> to vector<256x2xi1>
    %43 = vector.broadcast %cst_20 : f32 to vector<256x2xf32>
    %44 = arith.select %42, %40, %43 : vector<256x2xi1>, vector<256x2xf32>
    %c17 = arith.constant 17 : index
    %c0_21 = arith.constant 0 : index
    %45 = vector.load %arg7[%c17, %c0_21] : memref<288x6xf32, #tpu.memory_space<vmem>>, vector<256x2xf32>
    tpu.vector_store %arg7[%c17, %c0_21], %44 {strides = array<i32>} : memref<288x6xf32, #tpu.memory_space<vmem>>, vector<256x2xf32>,
    %c16 = arith.constant 16 : index
    %c2 = arith.constant 2 : index
    %46 = vector.load %arg7[%c16, %c2] : memref<288x6xf32, #tpu.memory_space<vmem>>, vector<256x2xf32>
    tpu.vector_store %arg7[%c16, %c2], %40 {strides = array<i32>} : memref<288x6xf32, #tpu.memory_space<vmem>>, vector<256x2xf32>,
    %cst_22 = arith.constant 0.000000e+00 : f32
    %47 = vector.shape_cast %20 : vector<256x1xi1> to vector<256x1xi1>
    %48 = vector.broadcast %47 : vector<256x1xi1> to vector<256x2xi1>
    %49 = vector.broadcast %cst_22 : f32 to vector<256x2xf32>
    %50 = arith.select %48, %40, %49 : vector<256x2xi1>, vector<256x2xf32>
    %c15 = arith.constant 15 : index
    %c4 = arith.constant 4 : index
    %51 = vector.load %arg7[%c15, %c4] : memref<288x6xf32, #tpu.memory_space<vmem>>, vector<256x2xf32>
    tpu.vector_store %arg7[%c15, %c4], %50 {strides = array<i32>} : memref<288x6xf32, #tpu.memory_space<vmem>>, vector<256x2xf32>,
    %c0_23 = arith.constant 0 : index
    %c0_24 = arith.constant 0 : index
    %52 = vector.load %arg7[%c0_23, %c0_24] : memref<288x6xf32, #tpu.memory_space<vmem>>, vector<256x6xf32>
    %53 = arith.truncf %52 : vector<256x6xf32> to vector<256x6xbf16>
    %c0_25 = arith.constant 0 : index
    %c0_26 = arith.constant 0 : index
    %c0_27 = arith.constant 0 : index
    %c0_28 = arith.constant 0 : index
    %54 = vector.load %arg4[%c0_25, %c0_26, %c0_27, %c0_28] : memref<2x3x6x4xbf16, #tpu.memory_space<vmem>>, vector<1x1x6x4xbf16>
    %55 = vector.shape_cast %54 : vector<1x1x6x4xbf16> to vector<6x4xbf16>
    %cst_29 = arith.constant dense<0.000000e+00> : vector<256x4xf32>
    %56 = tpu.matmul %53, %55, %cst_29 {dimension_numbers = #tpu.dot_dimension_numbers<[1], [0], [0], [1], [0, 0, 1, 1], [], []>} : vector<256x6xbf16>, vector<6x4xbf16>, vector<256x4xf32> -> vector<256x4xf32>
    %c0_30 = arith.constant 0 : index
    %c0_31 = arith.constant 0 : index
    %57 = vector.load %arg8[%c0_30, %c0_31] : memref<256x4xf32, #tpu.memory_space<vmem>>, vector<256x4xf32>
    tpu.vector_store %arg8[%c0_30, %c0_31], %56 {strides = array<i32>} : memref<256x4xf32, #tpu.memory_space<vmem>>, vector<256x4xf32>,
    %c16_32 = arith.constant 16 : index
    %c0_33 = arith.constant 0 : index
    %58 = vector.load %arg7[%c16_32, %c0_33] : memref<288x6xf32, #tpu.memory_space<vmem>>, vector<256x6xf32>
    %59 = arith.truncf %58 : vector<256x6xf32> to vector<256x6xbf16>
    %c0_34 = arith.constant 0 : index
    %c1 = arith.constant 1 : index
    %c0_35 = arith.constant 0 : index
    %c0_36 = arith.constant 0 : index
    %60 = vector.load %arg4[%c0_34, %c1, %c0_35, %c0_36] : memref<2x3x6x4xbf16, #tpu.memory_space<vmem>>, vector<1x1x6x4xbf16>
    %61 = vector.shape_cast %60 : vector<1x1x6x4xbf16> to vector<6x4xbf16>
    %cst_37 = arith.constant dense<0.000000e+00> : vector<256x4xf32>
    %62 = tpu.matmul %59, %61, %cst_37 {dimension_numbers = #tpu.dot_dimension_numbers<[1], [0], [0], [1], [0, 0, 1, 1], [], []>} : vector<256x6xbf16>, vector<6x4xbf16>, vector<256x4xf32> -> vector<256x4xf32>
    %c0_38 = arith.constant 0 : index
    %c0_39 = arith.constant 0 : index
    %63 = vector.load %arg8[%c0_38, %c0_39] : memref<256x4xf32, #tpu.memory_space<vmem>>, vector<256x4xf32>
    %64 = arith.addf %63, %62 : vector<256x4xf32>
    %c0_40 = arith.constant 0 : index
    %c0_41 = arith.constant 0 : index
    %65 = vector.load %arg8[%c0_40, %c0_41] : memref<256x4xf32, #tpu.memory_space<vmem>>, vector<256x4xf32>
    tpu.vector_store %arg8[%c0_40, %c0_41], %64 {strides = array<i32>} : memref<256x4xf32, #tpu.memory_space<vmem>>, vector<256x4xf32>,
    %c32 = arith.constant 32 : index
    %c0_42 = arith.constant 0 : index
    %66 = vector.load %arg7[%c32, %c0_42] : memref<288x6xf32, #tpu.memory_space<vmem>>, vector<256x6xf32>
    %67 = arith.truncf %66 : vector<256x6xf32> to vector<256x6xbf16>
    %c0_43 = arith.constant 0 : index
    %c2_44 = arith.constant 2 : index
    %c0_45 = arith.constant 0 : index
    %c0_46 = arith.constant 0 : index
    %68 = vector.load %arg4[%c0_43, %c2_44, %c0_45, %c0_46] : memref<2x3x6x4xbf16, #tpu.memory_space<vmem>>, vector<1x1x6x4xbf16>
    %69 = vector.shape_cast %68 : vector<1x1x6x4xbf16> to vector<6x4xbf16>
    %cst_47 = arith.constant dense<0.000000e+00> : vector<256x4xf32>
    %70 = tpu.matmul %67, %69, %cst_47 {dimension_numbers = #tpu.dot_dimension_numbers<[1], [0], [0], [1], [0, 0, 1, 1], [], []>} : vector<256x6xbf16>, vector<6x4xbf16>, vector<256x4xf32> -> vector<256x4xf32>
    %c0_48 = arith.constant 0 : index
    %c0_49 = arith.constant 0 : index
    %71 = vector.load %arg8[%c0_48, %c0_49] : memref<256x4xf32, #tpu.memory_space<vmem>>, vector<256x4xf32>
    %72 = arith.addf %71, %70 : vector<256x4xf32>
    %c0_50 = arith.constant 0 : index
    %c0_51 = arith.constant 0 : index
    %73 = vector.load %arg8[%c0_50, %c0_51] : memref<256x4xf32, #tpu.memory_space<vmem>>, vector<256x4xf32>
    tpu.vector_store %arg8[%c0_50, %c0_51], %72 {strides = array<i32>} : memref<256x4xf32, #tpu.memory_space<vmem>>, vector<256x4xf32>,
    %c0_52 = arith.constant 0 : index
    %c0_53 = arith.constant 0 : index
    %74 = vector.load %arg8[%c0_52, %c0_53] : memref<256x4xf32, #tpu.memory_space<vmem>>, vector<256x4xf32>
    %c0_54 = arith.constant 0 : index
    %c0_55 = arith.constant 0 : index
    %c0_56 = arith.constant 0 : index
    %75 = vector.load %arg5[%c0_54, %c0_55, %c0_56] : memref<2x1x4xf32, #tpu.memory_space<vmem>>, vector<1x1x4xf32>
    %76 = vector.shape_cast %75 : vector<1x1x4xf32> to vector<1x4xf32>
    %77 = vector.broadcast %76 : vector<1x4xf32> to vector<256x4xf32>
    %78 = arith.addf %74, %77 : vector<256x4xf32>
    %cst_57 = arith.constant 0.000000e+00 : f32
    %79 = vector.broadcast %cst_57 : f32 to vector<256x4xf32>
    %80 = arith.cmpf ogt, %78, %79 : vector<256x4xf32>
    %cst_58 = arith.constant 1.000000e-01 : f32
    %81 = vector.broadcast %cst_58 : f32 to vector<256x4xf32>
    %82 = arith.mulf %81, %78 : vector<256x4xf32>
    %83 = arith.select %80, %78, %82 : vector<256x4xi1>, vector<256x4xf32>
    %84 = arith.addf %83, %27 : vector<256x4xf32>
    %85 = arith.truncf %84 : vector<256x4xf32> to vector<256x4xbf16>
    %c1_59 = arith.constant 1 : index
    %c0_60 = arith.constant 0 : index
    %c0_61 = arith.constant 0 : index
    %86 = vector.load %arg2[%c1_59, %c0_60, %c0_61] : memref<2x4x2xbf16, #tpu.memory_space<vmem>>, vector<1x4x2xbf16>
    %87 = vector.shape_cast %86 : vector<1x4x2xbf16> to vector<4x2xbf16>
    %cst_62 = arith.constant dense<0.000000e+00> : vector<256x2xf32>
    %88 = tpu.matmul %85, %87, %cst_62 {dimension_numbers = #tpu.dot_dimension_numbers<[1], [0], [0], [1], [0, 0, 1, 1], [], []>} : vector<256x4xbf16>, vector<4x2xbf16>, vector<256x2xf32> -> vector<256x2xf32>
    %c1_63 = arith.constant 1 : index
    %c0_64 = arith.constant 0 : index
    %c0_65 = arith.constant 0 : index
    %89 = vector.load %arg3[%c1_63, %c0_64, %c0_65] : memref<2x1x2xf32, #tpu.memory_space<vmem>>, vector<1x1x2xf32>
    %90 = vector.shape_cast %89 : vector<1x1x2xf32> to vector<1x2xf32>
    %91 = vector.broadcast %90 : vector<1x2xf32> to vector<256x2xf32>
    %92 = arith.addf %88, %91 : vector<256x2xf32>
    %cst_66 = arith.constant 0.000000e+00 : f32
    %93 = vector.broadcast %cst_66 : f32 to vector<256x2xf32>
    %94 = arith.cmpf ogt, %92, %93 : vector<256x2xf32>
    %cst_67 = arith.constant 1.000000e-01 : f32
    %95 = vector.broadcast %cst_67 : f32 to vector<256x2xf32>
    %96 = arith.mulf %95, %92 : vector<256x2xf32>
    %97 = arith.select %94, %92, %96 : vector<256x2xi1>, vector<256x2xf32>
    %cst_68 = arith.constant 0.000000e+00 : f32
    %98 = vector.shape_cast %18 : vector<256x1xi1> to vector<256x1xi1>
    %99 = vector.broadcast %98 : vector<256x1xi1> to vector<256x2xi1>
    %100 = vector.broadcast %cst_68 : f32 to vector<256x2xf32>
    %101 = arith.select %99, %97, %100 : vector<256x2xi1>, vector<256x2xf32>
    %c17_69 = arith.constant 17 : index
    %c0_70 = arith.constant 0 : index
    %102 = vector.load %arg7[%c17_69, %c0_70] : memref<288x6xf32, #tpu.memory_space<vmem>>, vector<256x2xf32>
    tpu.vector_store %arg7[%c17_69, %c0_70], %101 {strides = array<i32>} : memref<288x6xf32, #tpu.memory_space<vmem>>, vector<256x2xf32>,
    %c16_71 = arith.constant 16 : index
    %c2_72 = arith.constant 2 : index
    %103 = vector.load %arg7[%c16_71, %c2_72] : memref<288x6xf32, #tpu.memory_space<vmem>>, vector<256x2xf32>
    tpu.vector_store %arg7[%c16_71, %c2_72], %97 {strides = array<i32>} : memref<288x6xf32, #tpu.memory_space<vmem>>, vector<256x2xf32>,
    %cst_73 = arith.constant 0.000000e+00 : f32
    %104 = vector.shape_cast %20 : vector<256x1xi1> to vector<256x1xi1>
    %105 = vector.broadcast %104 : vector<256x1xi1> to vector<256x2xi1>
    %106 = vector.broadcast %cst_73 : f32 to vector<256x2xf32>
    %107 = arith.select %105, %97, %106 : vector<256x2xi1>, vector<256x2xf32>
    %c15_74 = arith.constant 15 : index
    %c4_75 = arith.constant 4 : index
    %108 = vector.load %arg7[%c15_74, %c4_75] : memref<288x6xf32, #tpu.memory_space<vmem>>, vector<256x2xf32>
    tpu.vector_store %arg7[%c15_74, %c4_75], %107 {strides = array<i32>} : memref<288x6xf32, #tpu.memory_space<vmem>>, vector<256x2xf32>,
    %c0_76 = arith.constant 0 : index
    %c0_77 = arith.constant 0 : index
    %109 = vector.load %arg7[%c0_76, %c0_77] : memref<288x6xf32, #tpu.memory_space<vmem>>, vector<256x6xf32>
    %110 = arith.truncf %109 : vector<256x6xf32> to vector<256x6xbf16>
    %c1_78 = arith.constant 1 : index
    %c0_79 = arith.constant 0 : index
    %c0_80 = arith.constant 0 : index
    %c0_81 = arith.constant 0 : index
    %111 = vector.load %arg4[%c1_78, %c0_79, %c0_80, %c0_81] : memref<2x3x6x4xbf16, #tpu.memory_space<vmem>>, vector<1x1x6x4xbf16>
    %112 = vector.shape_cast %111 : vector<1x1x6x4xbf16> to vector<6x4xbf16>
    %cst_82 = arith.constant dense<0.000000e+00> : vector<256x4xf32>
    %113 = tpu.matmul %110, %112, %cst_82 {dimension_numbers = #tpu.dot_dimension_numbers<[1], [0], [0], [1], [0, 0, 1, 1], [], []>} : vector<256x6xbf16>, vector<6x4xbf16>, vector<256x4xf32> -> vector<256x4xf32>
    %c0_83 = arith.constant 0 : index
    %c0_84 = arith.constant 0 : index
    %114 = vector.load %arg8[%c0_83, %c0_84] : memref<256x4xf32, #tpu.memory_space<vmem>>, vector<256x4xf32>
    tpu.vector_store %arg8[%c0_83, %c0_84], %113 {strides = array<i32>} : memref<256x4xf32, #tpu.memory_space<vmem>>, vector<256x4xf32>,
    %c16_85 = arith.constant 16 : index
    %c0_86 = arith.constant 0 : index
    %115 = vector.load %arg7[%c16_85, %c0_86] : memref<288x6xf32, #tpu.memory_space<vmem>>, vector<256x6xf32>
    %116 = arith.truncf %115 : vector<256x6xf32> to vector<256x6xbf16>
    %c1_87 = arith.constant 1 : index
    %c1_88 = arith.constant 1 : index
    %c0_89 = arith.constant 0 : index
    %c0_90 = arith.constant 0 : index
    %117 = vector.load %arg4[%c1_87, %c1_88, %c0_89, %c0_90] : memref<2x3x6x4xbf16, #tpu.memory_space<vmem>>, vector<1x1x6x4xbf16>
    %118 = vector.shape_cast %117 : vector<1x1x6x4xbf16> to vector<6x4xbf16>
    %cst_91 = arith.constant dense<0.000000e+00> : vector<256x4xf32>
    %119 = tpu.matmul %116, %118, %cst_91 {dimension_numbers = #tpu.dot_dimension_numbers<[1], [0], [0], [1], [0, 0, 1, 1], [], []>} : vector<256x6xbf16>, vector<6x4xbf16>, vector<256x4xf32> -> vector<256x4xf32>
    %c0_92 = arith.constant 0 : index
    %c0_93 = arith.constant 0 : index
    %120 = vector.load %arg8[%c0_92, %c0_93] : memref<256x4xf32, #tpu.memory_space<vmem>>, vector<256x4xf32>
    %121 = arith.addf %120, %119 : vector<256x4xf32>
    %c0_94 = arith.constant 0 : index
    %c0_95 = arith.constant 0 : index
    %122 = vector.load %arg8[%c0_94, %c0_95] : memref<256x4xf32, #tpu.memory_space<vmem>>, vector<256x4xf32>
    tpu.vector_store %arg8[%c0_94, %c0_95], %121 {strides = array<i32>} : memref<256x4xf32, #tpu.memory_space<vmem>>, vector<256x4xf32>,
    %c32_96 = arith.constant 32 : index
    %c0_97 = arith.constant 0 : index
    %123 = vector.load %arg7[%c32_96, %c0_97] : memref<288x6xf32, #tpu.memory_space<vmem>>, vector<256x6xf32>
    %124 = arith.truncf %123 : vector<256x6xf32> to vector<256x6xbf16>
    %c1_98 = arith.constant 1 : index
    %c2_99 = arith.constant 2 : index
    %c0_100 = arith.constant 0 : index
    %c0_101 = arith.constant 0 : index
    %125 = vector.load %arg4[%c1_98, %c2_99, %c0_100, %c0_101] : memref<2x3x6x4xbf16, #tpu.memory_space<vmem>>, vector<1x1x6x4xbf16>
    %126 = vector.shape_cast %125 : vector<1x1x6x4xbf16> to vector<6x4xbf16>
    %cst_102 = arith.constant dense<0.000000e+00> : vector<256x4xf32>
    %127 = tpu.matmul %124, %126, %cst_102 {dimension_numbers = #tpu.dot_dimension_numbers<[1], [0], [0], [1], [0, 0, 1, 1], [], []>} : vector<256x6xbf16>, vector<6x4xbf16>, vector<256x4xf32> -> vector<256x4xf32>
    %c0_103 = arith.constant 0 : index
    %c0_104 = arith.constant 0 : index
    %128 = vector.load %arg8[%c0_103, %c0_104] : memref<256x4xf32, #tpu.memory_space<vmem>>, vector<256x4xf32>
    %129 = arith.addf %128, %127 : vector<256x4xf32>
    %c0_105 = arith.constant 0 : index
    %c0_106 = arith.constant 0 : index
    %130 = vector.load %arg8[%c0_105, %c0_106] : memref<256x4xf32, #tpu.memory_space<vmem>>, vector<256x4xf32>
    tpu.vector_store %arg8[%c0_105, %c0_106], %129 {strides = array<i32>} : memref<256x4xf32, #tpu.memory_space<vmem>>, vector<256x4xf32>,
    %c0_107 = arith.constant 0 : index
    %c0_108 = arith.constant 0 : index
    %131 = vector.load %arg8[%c0_107, %c0_108] : memref<256x4xf32, #tpu.memory_space<vmem>>, vector<256x4xf32>
    %c1_109 = arith.constant 1 : index
    %c0_110 = arith.constant 0 : index
    %c0_111 = arith.constant 0 : index
    %132 = vector.load %arg5[%c1_109, %c0_110, %c0_111] : memref<2x1x4xf32, #tpu.memory_space<vmem>>, vector<1x1x4xf32>
    %133 = vector.shape_cast %132 : vector<1x1x4xf32> to vector<1x4xf32>
    %134 = vector.broadcast %133 : vector<1x4xf32> to vector<256x4xf32>
    %135 = arith.addf %131, %134 : vector<256x4xf32>
    %cst_112 = arith.constant 0.000000e+00 : f32
    %136 = vector.broadcast %cst_112 : f32 to vector<256x4xf32>
    %137 = arith.cmpf ogt, %135, %136 : vector<256x4xf32>
    %cst_113 = arith.constant 1.000000e-01 : f32
    %138 = vector.broadcast %cst_113 : f32 to vector<256x4xf32>
    %139 = arith.mulf %138, %135 : vector<256x4xf32>
    %140 = arith.select %137, %135, %139 : vector<256x4xi1>, vector<256x4xf32>
    %141 = arith.addf %140, %84 : vector<256x4xf32>
    %142 = vector.shape_cast %141 : vector<256x4xf32> to vector<16x16x4xf32>
    %c0_114 = arith.constant 0 : index
    %c0_115 = arith.constant 0 : index
    %c0_116 = arith.constant 0 : index
    %c0_117 = arith.constant 0 : index
    %143 = vector.load %arg6[%c0_114, %c0_115, %c0_116, %c0_117] : memref<1x16x16x4xf32, #tpu.memory_space<vmem>>, vector<1x16x16x4xf32>
    %144 = vector.shape_cast %143 : vector<1x16x16x4xf32> to vector<16x16x4xf32>
    %145 = vector.shape_cast %142 : vector<16x16x4xf32> to vector<1x16x16x4xf32>
    tpu.vector_store %arg6[%c0_114, %c0_115, %c0_116, %c0_117], %145 {strides = array<i32>} : memref<1x16x16x4xf32, #tpu.memory_space<vmem>>, vector<1x16x16x4xf32>,
    return
  }
  func.func @transform_0(%arg0: i32) -> (i32, i32, i32, i32) {
    %c0_i32 = arith.constant 0 : i32
    %c0_i32_0 = arith.constant 0 : i32
    %c0_i32_1 = arith.constant 0 : i32
    %c0_i32_2 = arith.constant 0 : i32
    return %arg0, %c0_i32, %c0_i32_0, %c0_i32_1 : i32, i32, i32, i32
  }
  func.func @transform_1(%arg0: i32) -> (i32, i32, i32) {
    %c0_i32 = arith.constant 0 : i32
    %c0_i32_0 = arith.constant 0 : i32
    %c0_i32_1 = arith.constant 0 : i32
    %c0_i32_2 = arith.constant 0 : i32
    return %c0_i32, %c0_i32_0, %c0_i32_1 : i32, i32, i32
  }
  func.func @transform_2(%arg0: i32) -> (i32, i32, i32) {
    %c0_i32 = arith.constant 0 : i32
    %c0_i32_0 = arith.constant 0 : i32
    %c0_i32_1 = arith.constant 0 : i32
    %c0_i32_2 = arith.constant 0 : i32
    return %c0_i32, %c0_i32_0, %c0_i32_1 : i32, i32, i32
  }
  func.func @transform_3(%arg0: i32) -> (i32, i32, i32, i32) {
    %c0_i32 = arith.constant 0 : i32
    %c0_i32_0 = arith.constant 0 : i32
    %c0_i32_1 = arith.constant 0 : i32
    %c0_i32_2 = arith.constant 0 : i32
    %c0_i32_3 = arith.constant 0 : i32
    return %c0_i32, %c0_i32_0, %c0_i32_1, %c0_i32_2 : i32, i32, i32, i32
  }
  func.func @transform_4(%arg0: i32) -> (i32, i32, i32) {
    %c0_i32 = arith.constant 0 : i32
    %c0_i32_0 = arith.constant 0 : i32
    %c0_i32_1 = arith.constant 0 : i32
    %c0_i32_2 = arith.constant 0 : i32
    return %c0_i32, %c0_i32_0, %c0_i32_1 : i32, i32, i32
  }
  func.func @transform_5(%arg0: i32) -> (i32, i32, i32, i32) {
    %c0_i32 = arith.constant 0 : i32
    %c0_i32_0 = arith.constant 0 : i32
    %c0_i32_1 = arith.constant 0 : i32
    %c0_i32_2 = arith.constant 0 : i32
    return %arg0, %c0_i32, %c0_i32_0, %c0_i32_1 : i32, i32, i32, i32
  }
}

</mosaic_0001>

<llo_original>
// kernel: tpu_custom_call.1
$region0: #{tpu_custom_call.1}
  #allocation0 [shape = 'u32[]', space=smem, size = 0x4, offset = 0x4, fixed_abs, tag = 'smem constant byte address 0x4 - core index']
  #allocation1 [shape = 'u32[72,128]{1,0:T(1,128)}', space=vmem, size = 0x9000, scoped, tag = 'internal scratch']
  #allocation2 [shape = 'f32[288,6]{1,0:T(8,128)}', space=vmem, size = 0x24000, scoped, tag = 'scratch operand']
  #allocation3 [shape = 'f32[256,4]{1,0:T(8,128)}', space=vmem, size = 0x20000, scoped, tag = 'scratch operand']
  %s0 = inlined_call_operand.vmem [shape: f32[2,16,16,4], index: 0, kind: input, shape index: {}]
  %s1 = inlined_call_operand.vmem [shape: bf16[2,4,2], index: 1, kind: input, shape index: {}]
  %s2 = inlined_call_operand.vmem [shape: f32[2,1,2], index: 2, kind: input, shape index: {}]
  %s3 = inlined_call_operand.vmem [shape: bf16[2,3,6,4], index: 3, kind: input, shape index: {}]
  %s4 = inlined_call_operand.vmem [shape: f32[2,1,4], index: 4, kind: input, shape index: {}]
  %s5 = inlined_call_operand.vmem [shape: f32[2,16,16,4], index: 5, kind: output, shape index: {}]
  %s6 = sld [smem:[#allocation0]]
  $region53: #{tpu_custom_call.1} parent=0
    _
  %s8 = ssub.s32 1, %s6
  %s9 = scalar_select 0, %s8, %s6
  loop: start=0, step=1, limit=4
  $region2: #{tpu_custom_call.1} parent=0 // loop_pre_header
    _
  $region3: #{tpu_custom_call.1} parent=0 // loop_header
    %s11 = sphi 0, %s15
    %p12 = scmp.ge.s32.totalorder %s11, 4
    %s21 = sphi 0, %s23
    %s24 = sphi 0, %s21
    %s25 = sphi 0, %s24
    %s41 = sphi 0, %s25
    %s45 = sphi 0, %s45
    %s47 = sphi 0, %s45
    %s48 = sphi 0, %s47
    %s62 = sphi 0, %s48
    %s66 = sphi 0, %s66
    %s68 = sphi 0, %s66
    %s69 = sphi 0, %s68
    %s83 = sphi 0, %s69
    %s87 = sphi 0, %s87
    %s89 = sphi 0, %s87
    %s90 = sphi 0, %s89
    %s104 = sphi 0, %s90
    %s108 = sphi 0, %s108
    %s110 = sphi 0, %s108
    %s111 = sphi 0, %s110
    %s125 = sphi 0, %s111
    %s131 = sphi 0, %s133
    %s134 = sphi 0, %s131
    %s135 = sphi 0, %s134
    %s151 = sphi 0, %s135
  $region4: #{tpu_custom_call.1} parent=0 // loop_header_branch
    %14 = sbr.rel (%p12) target = $region8
  $region5: #{tpu_custom_call.1} parent=0 // loop_body
    %s16 = ssub.s32 %s11, 1
    %s17 = ssub.s32 %s11, 2
    %s18 = sadd.s32 %s11, 1
    %s19 = ssub.s32 %s11, %s18
    %p20 = scmp.eq.s32.totalorder %s19, 0
    %s22 = sadd.s32 %s21, 1
    %s23 = scalar_select %p20, %s21, %s22
    %p26 = pneg %p20
    %p27 = scmp.eq.s32.totalorder %s11, 1
    %p28 = por %p26, %p27
    %p29 = scmp.ne.s32.totalorder %s21, %s24
    %p30 = scmp.eq.s32.totalorder %s11, 0
    %p31 = por %p29, %p30
    %p32 = scmp.ne.s32.totalorder %s21, %s24
    %p33 = scmp.eq.s32.totalorder %s16, 1
    %p34 = por %p32, %p33
    %p35 = scmp.ne.s32.totalorder %s24, %s25
    %p36 = scmp.eq.s32.totalorder %s16, 0
    %p37 = por %p35, %p36
    %p38 = scmp.ne.s32.totalorder %s24, %s25
    %p39 = scmp.eq.s32.totalorder %s17, 1
    %p40 = por %p38, %p39
    %p42 = scmp.ne.s32.totalorder %s25, %s41
    %p43 = scmp.eq.s32.totalorder %s17, 0
    %p44 = por %p42, %p43
    %s46 = sadd.s32 %s45, 1
    %p49 = scmp.eq.s32.totalorder %s11, 1
    %p50 = scmp.ne.s32.totalorder %s45, %s47
    %p51 = scmp.eq.s32.totalorder %s11, 0
    %p52 = por %p50, %p51
    %p53 = scmp.ne.s32.totalorder %s45, %s47
    %p54 = scmp.eq.s32.totalorder %s16, 1
    %p55 = por %p53, %p54
    %p56 = scmp.ne.s32.totalorder %s47, %s48
    %p57 = scmp.eq.s32.totalorder %s16, 0
    %p58 = por %p56, %p57
    %p59 = scmp.ne.s32.totalorder %s47, %s48
    %p60 = scmp.eq.s32.totalorder %s17, 1
    %p61 = por %p59, %p60
    %p63 = scmp.ne.s32.totalorder %s48, %s62
    %p64 = scmp.eq.s32.totalorder %s17, 0
    %p65 = por %p63, %p64
    %s67 = sadd.s32 %s66, 1
    %p70 = scmp.eq.s32.totalorder %s11, 1
    %p71 = scmp.ne.s32.totalorder %s66, %s68
    %p72 = scmp.eq.s32.totalorder %s11, 0
    %p73 = por %p71, %p72
    %p74 = scmp.ne.s32.totalorder %s66, %s68
    %p75 = scmp.eq.s32.totalorder %s16, 1
    %p76 = por %p74, %p75
    %p77 = scmp.ne.s32.totalorder %s68, %s69
    %p78 = scmp.eq.s32.totalorder %s16, 0
    %p79 = por %p77, %p78
    %p80 = scmp.ne.s32.totalorder %s68, %s69
    %p81 = scmp.eq.s32.totalorder %s17, 1
    %p82 = por %p80, %p81
    %p84 = scmp.ne.s32.totalorder %s69, %s83
    %p85 = scmp.eq.s32.totalorder %s17, 0
    %p86 = por %p84, %p85
    %s88 = sadd.s32 %s87, 1
    %p91 = scmp.eq.s32.totalorder %s11, 1
    %p92 = scmp.ne.s32.totalorder %s87, %s89
    %p93 = scmp.eq.s32.totalorder %s11, 0
    %p94 = por %p92, %p93
    %p95 = scmp.ne.s32.totalorder %s87, %s89
    %p96 = scmp.eq.s32.totalorder %s16, 1
    %p97 = por %p95, %p96
    %p98 = scmp.ne.s32.totalorder %s89, %s90
    %p99 = scmp.eq.s32.totalorder %s16, 0
    %p100 = por %p98, %p99
    %p101 = scmp.ne.s32.totalorder %s89, %s90
    %p102 = scmp.eq.s32.totalorder %s17, 1
    %p103 = por %p101, %p102
    %p105 = scmp.ne.s32.totalorder %s90, %s104
    %p106 = scmp.eq.s32.totalorder %s17, 0
    %p107 = por %p105, %p106
    %s109 = sadd.s32 %s108, 1
    %p112 = scmp.eq.s32.totalorder %s11, 1
    %p113 = scmp.ne.s32.totalorder %s108, %s110
    %p114 = scmp.eq.s32.totalorder %s11, 0
    %p115 = por %p113, %p114
    %p116 = scmp.ne.s32.totalorder %s108, %s110
    %p117 = scmp.eq.s32.totalorder %s16, 1
    %p118 = por %p116, %p117
    %p119 = scmp.ne.s32.totalorder %s110, %s111
    %p120 = scmp.eq.s32.totalorder %s16, 0
    %p121 = por %p119, %p120
    %p122 = scmp.ne.s32.totalorder %s110, %s111
    %p123 = scmp.eq.s32.totalorder %s17, 1
    %p124 = por %p122, %p123
    %p126 = scmp.ne.s32.totalorder %s111, %s125
    %p127 = scmp.eq.s32.totalorder %s17, 0
    %p128 = por %p126, %p127
    %s129 = ssub.s32 %s11, %s18
    %p130 = scmp.eq.s32.totalorder %s129, 0
    %s132 = sadd.s32 %s131, 1
    %s133 = scalar_select %p130, %s131, %s132
    %p136 = pneg %p130
    %p137 = scmp.eq.s32.totalorder %s11, 1
    %p138 = por %p136, %p137
    %p139 = scmp.ne.s32.totalorder %s131, %s134
    %p140 = scmp.eq.s32.totalorder %s11, 0
    %p141 = por %p139, %p140
    %p142 = scmp.ne.s32.totalorder %s131, %s134
    %p143 = scmp.eq.s32.totalorder %s16, 1
    %p144 = por %p142, %p143
    %p145 = scmp.ne.s32.totalorder %s134, %s135
    %p146 = scmp.eq.s32.totalorder %s16, 0
    %p147 = por %p145, %p146
    %p148 = scmp.ne.s32.totalorder %s134, %s135
    %p149 = scmp.eq.s32.totalorder %s17, 1
    %p150 = por %p148, %p149
    %p152 = scmp.ne.s32.totalorder %s135, %s151
    %p153 = scmp.eq.s32.totalorder %s17, 0
    %p154 = por %p152, %p153
    %p155 = scmp.le.s32.totalorder 1, %s11
    %p156 = scmp.lt.s32.totalorder %s11, 3
    %p157 = pnand %p155, %p156
    %p158 = pneg %p157
    // Predicated region
    $region9: #{tpu_custom_call.1} parent=5 // pred_check
      _
    $region10: #{tpu_custom_call.1} parent=5 // pred_check_branch
      %160 = sbr.rel (%p157) target = $region12
    $region11: #{tpu_custom_call.1} parent=5 // pred_region
      %s161 = ssub.s32 %s11, 1
      // Predicated region
      $region13: #{tpu_custom_call.1} parent=11 // pred_check
        %p162 = pneg %p58
      $region14: #{tpu_custom_call.1} parent=11 // pred_check_branch
        %164 = sbr.rel (%p162) target = $region16
      $region15: #{tpu_custom_call.1} parent=11 // pred_region
        _
      $region16: #{tpu_custom_call.1} parent=11 // pred_fallthru
        _
      // Predicated region
      $region17: #{tpu_custom_call.1} parent=11 // pred_check
        %p165 = pneg %p79
      $region18: #{tpu_custom_call.1} parent=11 // pred_check_branch
        %167 = sbr.rel (%p165) target = $region20
      $region19: #{tpu_custom_call.1} parent=11 // pred_region
        _
      $region20: #{tpu_custom_call.1} parent=11 // pred_fallthru
        _
      // Predicated region
      $region21: #{tpu_custom_call.1} parent=11 // pred_check
        %p168 = pneg %p100
      $region22: #{tpu_custom_call.1} parent=11 // pred_check_branch
        %170 = sbr.rel (%p168) target = $region24
      $region23: #{tpu_custom_call.1} parent=11 // pred_region
        _
      $region24: #{tpu_custom_call.1} parent=11 // pred_fallthru
        _
      // Predicated region
      $region25: #{tpu_custom_call.1} parent=11 // pred_check
        %p171 = pneg %p121
      $region26: #{tpu_custom_call.1} parent=11 // pred_check_branch
        %173 = sbr.rel (%p171) target = $region28
      $region27: #{tpu_custom_call.1} parent=11 // pred_region
        _
      $region28: #{tpu_custom_call.1} parent=11 // pred_fallthru
        _
    $region12: #{tpu_custom_call.1} parent=5 // pred_fallthru
      _
    %p174 = scmp.lt.s32.totalorder %s11, 2
    // Predicated region
    $region29: #{tpu_custom_call.1} parent=5 // pred_check
      %p175 = pneg %p174
    $region30: #{tpu_custom_call.1} parent=5 // pred_check_branch
      %177 = sbr.rel (%p175) target = $region32
    $region31: #{tpu_custom_call.1} parent=5 // pred_region
      // Predicated region
      $region33: #{tpu_custom_call.1} parent=31 // pred_check
        %p178 = pneg %p31
      $region34: #{tpu_custom_call.1} parent=31 // pred_check_branch
        %180 = sbr.rel (%p178) target = $region36
      $region35: #{tpu_custom_call.1} parent=31 // pred_region
        %p181 = scmp.lt.s32.totalorder %s11, 1
        %s182 = scalar_select %p181, %s11, 1
        %s183 = smul.addr %s182, 32
        %s184 = smul.addr %s183, 8
        %s185 = scalar_lea.vmem %s0, %s184
      $region36: #{tpu_custom_call.1} parent=31 // pred_fallthru
        _
    $region32: #{tpu_custom_call.1} parent=5 // pred_fallthru
      _
    %p186 = scmp.le.s32.totalorder 1, %s11
    %p187 = scmp.lt.s32.totalorder %s11, 3
    %p188 = pnand %p186, %p187
    %p189 = pneg %p188
    // Predicated region
    $region37: #{tpu_custom_call.1} parent=5 // pred_check
      _
    $region38: #{tpu_custom_call.1} parent=5 // pred_check_branch
      %191 = sbr.rel (%p188) target = $region40
    $region39: #{tpu_custom_call.1} parent=5 // pred_region
      %s192 = ssub.s32 %s11, 1
      %p193 = scmp.lt.s32.totalorder %s16, 1
      %s194 = scalar_select %p193, %s16, 1
      %s195 = smul.addr %s194, 32
      %s196 = smul.addr %s195, 8
      %s197 = scalar_lea.vmem %s0, %s196
      %p198 = pneg %p37
      %p199 = pneg %p34
      %p200 = pneg %p58
      %p201 = pneg %p55
      %p202 = pneg %p79
      %p203 = pneg %p76
      %p204 = pneg %p100
      %p205 = pneg %p97
      %p206 = pneg %p121
      %p207 = pneg %p118
      %p208 = pneg %p147
      %p209 = pneg %p144
      %p210 = scmp.lt.s32.totalorder %s16, 1
      %s211 = scalar_select %p210, %s16, 1
      %s212 = smul.addr %s211, 32
      %s213 = smul.addr %s212, 8
      %s214 = scalar_lea.vmem %s5, %s213
      %p215 = scmp.lt.s32.totalorder %s16, 1
      %s216 = scalar_select %p215, %s16, 1
      %s217 = smul.addr %s216, 32
      %s218 = smul.addr %s217, 8
      %s219 = scalar_lea.vmem %s0, %s218
      %p220 = scmp.lt.s32.totalorder %s16, 1
      %s221 = scalar_select %p220, %s16, 1
      %s222 = smul.addr %s221, 32
      %s223 = smul.addr %s222, 8
      %s224 = scalar_lea.vmem %s5, %s223
      %v226 = vlaneseq
      %v227 = vshrl.u32 %v226, 7
      %v228 = vadd.s32 %v227, 8
      %v229 = vadd.s32 %v227, 16
      %v230 = vadd.s32 %v227, 24
      %v231 = vadd.s32 %v227, 32
      %v232 = vadd.s32 %v227, 40
      %v233 = vadd.s32 %v227, 48
      %v234 = vadd.s32 %v227, 56
      %v235 = vadd.s32 %v227, 64
      %v236 = vadd.s32 %v227, 72
      %v237 = vadd.s32 %v227, 80
      %v238 = vadd.s32 %v227, 88
      %v239 = vadd.s32 %v227, 96
      %v240 = vadd.s32 %v227, 104
      %v241 = vadd.s32 %v227, 112
      %v242 = vadd.s32 %v227, 120
      %v243 = vadd.s32 %v227, 128
      %v244 = vadd.s32 %v227, 136
      %v245 = vadd.s32 %v227, 144
      %v246 = vadd.s32 %v227, 152
      %v247 = vadd.s32 %v227, 160
      %v248 = vadd.s32 %v227, 168
      %v249 = vadd.s32 %v227, 176
      %v250 = vadd.s32 %v227, 184
      %v251 = vadd.s32 %v227, 192
      %v252 = vadd.s32 %v227, 200
      %v253 = vadd.s32 %v227, 208
      %v254 = vadd.s32 %v227, 216
      %v255 = vadd.s32 %v227, 224
      %v256 = vadd.s32 %v227, 232
      %v257 = vadd.s32 %v227, 240
      %v258 = vadd.s32 %v227, 248
      %vm259 = vcmp.lt.s32.totalorder %v227, 0
      %v260 = vsub.s32 0, %v227
      %v261 = vsel %vm259, %v260, %v227
      %v262 = vshrl.u32 %v261, 4
      %v263 = vand.u32 %v261, 15
      %v264 = vsub.s32 0, %v263
      %v265 = vsel %vm259, %v264, %v263
      %vm266 = vcmp.lt.s32.totalorder %v228, 0
      %v267 = vsub.s32 0, %v228
      %v268 = vsel %vm266, %v267, %v228
      %v269 = vshrl.u32 %v268, 4
      %v270 = vand.u32 %v268, 15
      %v271 = vsub.s32 0, %v270
      %v272 = vsel %vm266, %v271, %v270
      %vm273 = vcmp.lt.s32.totalorder %v229, 0
      %v274 = vsub.s32 0, %v229
      %v275 = vsel %vm273, %v274, %v229
      %v276 = vshrl.u32 %v275, 4
      %v277 = vand.u32 %v275, 15
      %v278 = vsub.s32 0, %v277
      %v279 = vsel %vm273, %v278, %v277
      %vm280 = vcmp.lt.s32.totalorder %v230, 0
      %v281 = vsub.s32 0, %v230
      %v282 = vsel %vm280, %v281, %v230
      %v283 = vshrl.u32 %v282, 4
      %v284 = vand.u32 %v282, 15
      %v285 = vsub.s32 0, %v284
      %v286 = vsel %vm280, %v285, %v284
      %vm287 = vcmp.lt.s32.totalorder %v231, 0
      %v288 = vsub.s32 0, %v231
      %v289 = vsel %vm287, %v288, %v231
      %v290 = vshrl.u32 %v289, 4
      %v291 = vand.u32 %v289, 15
      %v292 = vsub.s32 0, %v291
      %v293 = vsel %vm287, %v292, %v291
      %vm294 = vcmp.lt.s32.totalorder %v232, 0
      %v295 = vsub.s32 0, %v232
      %v296 = vsel %vm294, %v295, %v232
      %v297 = vshrl.u32 %v296, 4
      %v298 = vand.u32 %v296, 15
      %v299 = vsub.s32 0, %v298
      %v300 = vsel %vm294, %v299, %v298
      %vm301 = vcmp.lt.s32.totalorder %v233, 0
      %v302 = vsub.s32 0, %v233
      %v303 = vsel %vm301, %v302, %v233
      %v304 = vshrl.u32 %v303, 4
      %v305 = vand.u32 %v303, 15
      %v306 = vsub.s32 0, %v305
      %v307 = vsel %vm301, %v306, %v305
      %vm308 = vcmp.lt.s32.totalorder %v234, 0
      %v309 = vsub.s32 0, %v234
      %v310 = vsel %vm308, %v309, %v234
      %v311 = vshrl.u32 %v310, 4
      %v312 = vand.u32 %v310, 15
      %v313 = vsub.s32 0, %v312
      %v314 = vsel %vm308, %v313, %v312
      %vm315 = vcmp.lt.s32.totalorder %v235, 0
      %v316 = vsub.s32 0, %v235
      %v317 = vsel %vm315, %v316, %v235
      %v318 = vshrl.u32 %v317, 4
      %v319 = vand.u32 %v317, 15
      %v320 = vsub.s32 0, %v319
      %v321 = vsel %vm315, %v320, %v319
      %vm322 = vcmp.lt.s32.totalorder %v236, 0
      %v323 = vsub.s32 0, %v236
      %v324 = vsel %vm322, %v323, %v236
      %v325 = vshrl.u32 %v324, 4
      %v326 = vand.u32 %v324, 15
      %v327 = vsub.s32 0, %v326
      %v328 = vsel %vm322, %v327, %v326
      %vm329 = vcmp.lt.s32.totalorder %v237, 0
      %v330 = vsub.s32 0, %v237
      %v331 = vsel %vm329, %v330, %v237
      %v332 = vshrl.u32 %v331, 4
      %v333 = vand.u32 %v331, 15
      %v334 = vsub.s32 0, %v333
      %v335 = vsel %vm329, %v334, %v333
      %vm336 = vcmp.lt.s32.totalorder %v238, 0
      %v337 = vsub.s32 0, %v238
      %v338 = vsel %vm336, %v337, %v238
      %v339 = vshrl.u32 %v338, 4
      %v340 = vand.u32 %v338, 15
      %v341 = vsub.s32 0, %v340
      %v342 = vsel %vm336, %v341, %v340
      %vm343 = vcmp.lt.s32.totalorder %v239, 0
      %v344 = vsub.s32 0, %v239
      %v345 = vsel %vm343, %v344, %v239
      %v346 = vshrl.u32 %v345, 4
      %v347 = vand.u32 %v345, 15
      %v348 = vsub.s32 0, %v347
      %v349 = vsel %vm343, %v348, %v347
      %vm350 = vcmp.lt.s32.totalorder %v240, 0
      %v351 = vsub.s32 0, %v240
      %v352 = vsel %vm350, %v351, %v240
      %v353 = vshrl.u32 %v352, 4
      %v354 = vand.u32 %v352, 15
      %v355 = vsub.s32 0, %v354
      %v356 = vsel %vm350, %v355, %v354
      %vm357 = vcmp.lt.s32.totalorder %v241, 0
      %v358 = vsub.s32 0, %v241
      %v359 = vsel %vm357, %v358, %v241
      %v360 = vshrl.u32 %v359, 4
      %v361 = vand.u32 %v359, 15
      %v362 = vsub.s32 0, %v361
      %v363 = vsel %vm357, %v362, %v361
      %vm364 = vcmp.lt.s32.totalorder %v242, 0
      %v365 = vsub.s32 0, %v242
      %v366 = vsel %vm364, %v365, %v242
      %v367 = vshrl.u32 %v366, 4
      %v368 = vand.u32 %v366, 15
      %v369 = vsub.s32 0, %v368
      %v370 = vsel %vm364, %v369, %v368
      %vm371 = vcmp.lt.s32.totalorder %v243, 0
      %v372 = vsub.s32 0, %v243
      %v373 = vsel %vm371, %v372, %v243
      %v374 = vshrl.u32 %v373, 4
      %v375 = vand.u32 %v373, 15
      %v376 = vsub.s32 0, %v375
      %v377 = vsel %vm371, %v376, %v375
      %vm378 = vcmp.lt.s32.totalorder %v244, 0
      %v379 = vsub.s32 0, %v244
      %v380 = vsel %vm378, %v379, %v244
      %v381 = vshrl.u32 %v380, 4
      %v382 = vand.u32 %v380, 15
      %v383 = vsub.s32 0, %v382
      %v384 = vsel %vm378, %v383, %v382
      %vm385 = vcmp.lt.s32.totalorder %v245, 0
      %v386 = vsub.s32 0, %v245
      %v387 = vsel %vm385, %v386, %v245
      %v388 = vshrl.u32 %v387, 4
      %v389 = vand.u32 %v387, 15
      %v390 = vsub.s32 0, %v389
      %v391 = vsel %vm385, %v390, %v389
      %vm392 = vcmp.lt.s32.totalorder %v246, 0
      %v393 = vsub.s32 0, %v246
      %v394 = vsel %vm392, %v393, %v246
      %v395 = vshrl.u32 %v394, 4
      %v396 = vand.u32 %v394, 15
      %v397 = vsub.s32 0, %v396
      %v398 = vsel %vm392, %v397, %v396
      %vm399 = vcmp.lt.s32.totalorder %v247, 0
      %v400 = vsub.s32 0, %v247
      %v401 = vsel %vm399, %v400, %v247
      %v402 = vshrl.u32 %v401, 4
      %v403 = vand.u32 %v401, 15
      %v404 = vsub.s32 0, %v403
      %v405 = vsel %vm399, %v404, %v403
      %vm406 = vcmp.lt.s32.totalorder %v248, 0
      %v407 = vsub.s32 0, %v248
      %v408 = vsel %vm406, %v407, %v248
      %v409 = vshrl.u32 %v408, 4
      %v410 = vand.u32 %v408, 15
      %v411 = vsub.s32 0, %v410
      %v412 = vsel %vm406, %v411, %v410
      %vm413 = vcmp.lt.s32.totalorder %v249, 0
      %v414 = vsub.s32 0, %v249
      %v415 = vsel %vm413, %v414, %v249
      %v416 = vshrl.u32 %v415, 4
      %v417 = vand.u32 %v415, 15
      %v418 = vsub.s32 0, %v417
      %v419 = vsel %vm413, %v418, %v417
      %vm420 = vcmp.lt.s32.totalorder %v250, 0
      %v421 = vsub.s32 0, %v250
      %v422 = vsel %vm420, %v421, %v250
      %v423 = vshrl.u32 %v422, 4
      %v424 = vand.u32 %v422, 15
      %v425 = vsub.s32 0, %v424
      %v426 = vsel %vm420, %v425, %v424
      %vm427 = vcmp.lt.s32.totalorder %v251, 0
      %v428 = vsub.s32 0, %v251
      %v429 = vsel %vm427, %v428, %v251
      %v430 = vshrl.u32 %v429, 4
      %v431 = vand.u32 %v429, 15
      %v432 = vsub.s32 0, %v431
      %v433 = vsel %vm427, %v432, %v431
      %vm434 = vcmp.lt.s32.totalorder %v252, 0
      %v435 = vsub.s32 0, %v252
      %v436 = vsel %vm434, %v435, %v252
      %v437 = vshrl.u32 %v436, 4
      %v438 = vand.u32 %v436, 15
      %v439 = vsub.s32 0, %v438
      %v440 = vsel %vm434, %v439, %v438
      %vm441 = vcmp.lt.s32.totalorder %v253, 0
      %v442 = vsub.s32 0, %v253
      %v443 = vsel %vm441, %v442, %v253
      %v444 = vshrl.u32 %v443, 4
      %v445 = vand.u32 %v443, 15
      %v446 = vsub.s32 0, %v445
      %v447 = vsel %vm441, %v446, %v445
      %vm448 = vcmp.lt.s32.totalorder %v254, 0
      %v449 = vsub.s32 0, %v254
      %v450 = vsel %vm448, %v449, %v254
      %v451 = vshrl.u32 %v450, 4
      %v452 = vand.u32 %v450, 15
      %v453 = vsub.s32 0, %v452
      %v454 = vsel %vm448, %v453, %v452
      %vm455 = vcmp.lt.s32.totalorder %v255, 0
      %v456 = vsub.s32 0, %v255
      %v457 = vsel %vm455, %v456, %v255
      %v458 = vshrl.u32 %v457, 4
      %v459 = vand.u32 %v457, 15
      %v460 = vsub.s32 0, %v459
      %v461 = vsel %vm455, %v460, %v459
      %vm462 = vcmp.lt.s32.totalorder %v256, 0
      %v463 = vsub.s32 0, %v256
      %v464 = vsel %vm462, %v463, %v256
      %v465 = vshrl.u32 %v464, 4
      %v466 = vand.u32 %v464, 15
      %v467 = vsub.s32 0, %v466
      %v468 = vsel %vm462, %v467, %v466
      %vm469 = vcmp.lt.s32.totalorder %v257, 0
      %v470 = vsub.s32 0, %v257
      %v471 = vsel %vm469, %v470, %v257
      %v472 = vshrl.u32 %v471, 4
      %v473 = vand.u32 %v471, 15
      %v474 = vsub.s32 0, %v473
      %v475 = vsel %vm469, %v474, %v473
      %vm476 = vcmp.lt.s32.totalorder %v258, 0
      %v477 = vsub.s32 0, %v258
      %v478 = vsel %vm476, %v477, %v258
      %v479 = vshrl.u32 %v478, 4
      %v480 = vand.u32 %v478, 15
      %v481 = vsub.s32 0, %v480
      %v482 = vsel %vm476, %v481, %v480
      %vm483 = vcmp.ne.s32.totalorder %v265, 0
      %vm484 = vcmp.ne.s32.totalorder %v272, 0
      %vm485 = vcmp.ne.s32.totalorder %v279, 0
      %vm486 = vcmp.ne.s32.totalorder %v286, 0
      %vm487 = vcmp.ne.s32.totalorder %v293, 0
      %vm488 = vcmp.ne.s32.totalorder %v300, 0
      %vm489 = vcmp.ne.s32.totalorder %v307, 0
      %vm490 = vcmp.ne.s32.totalorder %v314, 0
      %vm491 = vcmp.ne.s32.totalorder %v321, 0
      %vm492 = vcmp.ne.s32.totalorder %v328, 0
      %vm493 = vcmp.ne.s32.totalorder %v335, 0
      %vm494 = vcmp.ne.s32.totalorder %v342, 0
      %vm495 = vcmp.ne.s32.totalorder %v349, 0
      %vm496 = vcmp.ne.s32.totalorder %v356, 0
      %vm497 = vcmp.ne.s32.totalorder %v363, 0
      %vm498 = vcmp.ne.s32.totalorder %v370, 0
      %vm499 = vcmp.ne.s32.totalorder %v377, 0
      %vm500 = vcmp.ne.s32.totalorder %v384, 0
      %vm501 = vcmp.ne.s32.totalorder %v391, 0
      %vm502 = vcmp.ne.s32.totalorder %v398, 0
      %vm503 = vcmp.ne.s32.totalorder %v405, 0
      %vm504 = vcmp.ne.s32.totalorder %v412, 0
      %vm505 = vcmp.ne.s32.totalorder %v419, 0
      %vm506 = vcmp.ne.s32.totalorder %v426, 0
      %vm507 = vcmp.ne.s32.totalorder %v433, 0
      %vm508 = vcmp.ne.s32.totalorder %v440, 0
      %vm509 = vcmp.ne.s32.totalorder %v447, 0
      %vm510 = vcmp.ne.s32.totalorder %v454, 0
      %vm511 = vcmp.ne.s32.totalorder %v461, 0
      %vm512 = vcmp.ne.s32.totalorder %v468, 0
      %vm513 = vcmp.ne.s32.totalorder %v475, 0
      %vm514 = vcmp.ne.s32.totalorder %v482, 0
      %vm515 = vcmp.lt.s32.totalorder %v265, 0
      %vm516 = vcmp.lt.s32.totalorder %v272, 0
      %vm517 = vcmp.lt.s32.totalorder %v279, 0
      %vm518 = vcmp.lt.s32.totalorder %v286, 0
      %vm519 = vcmp.lt.s32.totalorder %v293, 0
      %vm520 = vcmp.lt.s32.totalorder %v300, 0
      %vm521 = vcmp.lt.s32.totalorder %v307, 0
      %vm522 = vcmp.lt.s32.totalorder %v314, 0
      %vm523 = vcmp.lt.s32.totalorder %v321, 0
      %vm524 = vcmp.lt.s32.totalorder %v328, 0
      %vm525 = vcmp.lt.s32.totalorder %v335, 0
      %vm526 = vcmp.lt.s32.totalorder %v342, 0
      %vm527 = vcmp.lt.s32.totalorder %v349, 0
      %vm528 = vcmp.lt.s32.totalorder %v356, 0
      %vm529 = vcmp.lt.s32.totalorder %v363, 0
      %vm530 = vcmp.lt.s32.totalorder %v370, 0
      %vm531 = vcmp.lt.s32.totalorder %v377, 0
      %vm532 = vcmp.lt.s32.totalorder %v384, 0
      %vm533 = vcmp.lt.s32.totalorder %v391, 0
      %vm534 = vcmp.lt.s32.totalorder %v398, 0
      %vm535 = vcmp.lt.s32.totalorder %v405, 0
      %vm536 = vcmp.lt.s32.totalorder %v412, 0
      %vm537 = vcmp.lt.s32.totalorder %v419, 0
      %vm538 = vcmp.lt.s32.totalorder %v426, 0
      %vm539 = vcmp.lt.s32.totalorder %v433, 0
      %vm540 = vcmp.lt.s32.totalorder %v440, 0
      %vm541 = vcmp.lt.s32.totalorder %v447, 0
      %vm542 = vcmp.lt.s32.totalorder %v454, 0
      %vm543 = vcmp.lt.s32.totalorder %v461, 0
      %vm544 = vcmp.lt.s32.totalorder %v468, 0
      %vm545 = vcmp.lt.s32.totalorder %v475, 0
      %vm546 = vcmp.lt.s32.totalorder %v482, 0
      %vm547 = vmand %vm515, %vm483
      %vm548 = vmand %vm516, %vm484
      %vm549 = vmand %vm517, %vm485
      %vm550 = vmand %vm518, %vm486
      %vm551 = vmand %vm519, %vm487
      %vm552 = vmand %vm520, %vm488
      %vm553 = vmand %vm521, %vm489
      %vm554 = vmand %vm522, %vm490
      %vm555 = vmand %vm523, %vm491
      %vm556 = vmand %vm524, %vm492
      %vm557 = vmand %vm525, %vm493
      %vm558 = vmand %vm526, %vm494
      %vm559 = vmand %vm527, %vm495
      %vm560 = vmand %vm528, %vm496
      %vm561 = vmand %vm529, %vm497
      %vm562 = vmand %vm530, %vm498
      %vm563 = vmand %vm531, %vm499
      %vm564 = vmand %vm532, %vm500
      %vm565 = vmand %vm533, %vm501
      %vm566 = vmand %vm534, %vm502
      %vm567 = vmand %vm535, %vm503
      %vm568 = vmand %vm536, %vm504
      %vm569 = vmand %vm537, %vm505
      %vm570 = vmand %vm538, %vm506
      %vm571 = vmand %vm539, %vm507
      %vm572 = vmand %vm540, %vm508
      %vm573 = vmand %vm541, %vm509
      %vm574 = vmand %vm542, %vm510
      %vm575 = vmand %vm543, %vm511
      %vm576 = vmand %vm544, %vm512
      %vm577 = vmand %vm545, %vm513
      %vm578 = vmand %vm546, %vm514
      %v579 = vadd.s32 %v265, 16
      %v580 = vadd.s32 %v272, 16
      %v581 = vadd.s32 %v279, 16
      %v582 = vadd.s32 %v286, 16
      %v583 = vadd.s32 %v293, 16
      %v584 = vadd.s32 %v300, 16
      %v585 = vadd.s32 %v307, 16
      %v586 = vadd.s32 %v314, 16
      %v587 = vadd.s32 %v321, 16
      %v588 = vadd.s32 %v328, 16
      %v589 = vadd.s32 %v335, 16
      %v590 = vadd.s32 %v342, 16
      %v591 = vadd.s32 %v349, 16
      %v592 = vadd.s32 %v356, 16
      %v593 = vadd.s32 %v363, 16
      %v594 = vadd.s32 %v370, 16
      %v595 = vadd.s32 %v377, 16
      %v596 = vadd.s32 %v384, 16
      %v597 = vadd.s32 %v391, 16
      %v598 = vadd.s32 %v398, 16
      %v599 = vadd.s32 %v405, 16
      %v600 = vadd.s32 %v412, 16
      %v601 = vadd.s32 %v419, 16
      %v602 = vadd.s32 %v426, 16
      %v603 = vadd.s32 %v433, 16
      %v604 = vadd.s32 %v440, 16
      %v605 = vadd.s32 %v447, 16
      %v606 = vadd.s32 %v454, 16
      %v607 = vadd.s32 %v461, 16
      %v608 = vadd.s32 %v468, 16
      %v609 = vadd.s32 %v475, 16
      %v610 = vadd.s32 %v482, 16
      %v611 = vsel %vm547, %v579, %v265
      %v612 = vsel %vm548, %v580, %v272
      %v613 = vsel %vm549, %v581, %v279
      %v614 = vsel %vm550, %v582, %v286
      %v615 = vsel %vm551, %v583, %v293
      %v616 = vsel %vm552, %v584, %v300
      %v617 = vsel %vm553, %v585, %v307
      %v618 = vsel %vm554, %v586, %v314
      %v619 = vsel %vm555, %v587, %v321
      %v620 = vsel %vm556, %v588, %v328
      %v621 = vsel %vm557, %v589, %v335
      %v622 = vsel %vm558, %v590, %v342
      %v623 = vsel %vm559, %v591, %v349
      %v624 = vsel %vm560, %v592, %v356
      %v625 = vsel %vm561, %v593, %v363
      %v626 = vsel %vm562, %v594, %v370
      %v627 = vsel %vm563, %v595, %v377
      %v628 = vsel %vm564, %v596, %v384
      %v629 = vsel %vm565, %v597, %v391
      %v630 = vsel %vm566, %v598, %v398
      %v631 = vsel %vm567, %v599, %v405
      %v632 = vsel %vm568, %v600, %v412
      %v633 = vsel %vm569, %v601, %v419
      %v634 = vsel %vm570, %v602, %v426
      %v635 = vsel %vm571, %v603, %v433
      %v636 = vsel %vm572, %v604, %v440
      %v637 = vsel %vm573, %v605, %v447
      %v638 = vsel %vm574, %v606, %v454
      %v639 = vsel %vm575, %v607, %v461
      %v640 = vsel %vm576, %v608, %v468
      %v641 = vsel %vm577, %v609, %v475
      %v642 = vsel %vm578, %v610, %v482
      %vm643 = vcmp.ne.s32.totalorder %v611, 15
      %vm644 = vcmp.ne.s32.totalorder %v612, 15
      %vm645 = vcmp.ne.s32.totalorder %v613, 15
      %vm646 = vcmp.ne.s32.totalorder %v614, 15
      %vm647 = vcmp.ne.s32.totalorder %v615, 15
      %vm648 = vcmp.ne.s32.totalorder %v616, 15
      %vm649 = vcmp.ne.s32.totalorder %v617, 15
      %vm650 = vcmp.ne.s32.totalorder %v618, 15
      %vm651 = vcmp.ne.s32.totalorder %v619, 15
      %vm652 = vcmp.ne.s32.totalorder %v620, 15
      %vm653 = vcmp.ne.s32.totalorder %v621, 15
      %vm654 = vcmp.ne.s32.totalorder %v622, 15
      %vm655 = vcmp.ne.s32.totalorder %v623, 15
      %vm656 = vcmp.ne.s32.totalorder %v624, 15
      %vm657 = vcmp.ne.s32.totalorder %v625, 15
      %vm658 = vcmp.ne.s32.totalorder %v626, 15
      %vm659 = vcmp.ne.s32.totalorder %v627, 15
      %vm660 = vcmp.ne.s32.totalorder %v628, 15
      %vm661 = vcmp.ne.s32.totalorder %v629, 15
      %vm662 = vcmp.ne.s32.totalorder %v630, 15
      %vm663 = vcmp.ne.s32.totalorder %v631, 15
      %vm664 = vcmp.ne.s32.totalorder %v632, 15
      %vm665 = vcmp.ne.s32.totalorder %v633, 15
      %vm666 = vcmp.ne.s32.totalorder %v634, 15
      %vm667 = vcmp.ne.s32.totalorder %v635, 15
      %vm668 = vcmp.ne.s32.totalorder %v636, 15
      %vm669 = vcmp.ne.s32.totalorder %v637, 15
      %vm670 = vcmp.ne.s32.totalorder %v638, 15
      %vm671 = vcmp.ne.s32.totalorder %v639, 15
      %vm672 = vcmp.ne.s32.totalorder %v640, 15
      %vm673 = vcmp.ne.s32.totalorder %v641, 15
      %vm674 = vcmp.ne.s32.totalorder %v642, 15
      %vm675 = vcmp.ne.s32.totalorder %v611, 0
      %vm676 = vcmp.ne.s32.totalorder %v612, 0
      %vm677 = vcmp.ne.s32.totalorder %v613, 0
      %vm678 = vcmp.ne.s32.totalorder %v614, 0
      %vm679 = vcmp.ne.s32.totalorder %v615, 0
      %vm680 = vcmp.ne.s32.totalorder %v616, 0
      %vm681 = vcmp.ne.s32.totalorder %v617, 0
      %vm682 = vcmp.ne.s32.totalorder %v618, 0
      %vm683 = vcmp.ne.s32.totalorder %v619, 0
      %vm684 = vcmp.ne.s32.totalorder %v620, 0
      %vm685 = vcmp.ne.s32.totalorder %v621, 0
      %vm686 = vcmp.ne.s32.totalorder %v622, 0
      %vm687 = vcmp.ne.s32.totalorder %v623, 0
      %vm688 = vcmp.ne.s32.totalorder %v624, 0
      %vm689 = vcmp.ne.s32.totalorder %v625, 0
      %vm690 = vcmp.ne.s32.totalorder %v626, 0
      %vm691 = vcmp.ne.s32.totalorder %v627, 0
      %vm692 = vcmp.ne.s32.totalorder %v628, 0
      %vm693 = vcmp.ne.s32.totalorder %v629, 0
      %vm694 = vcmp.ne.s32.totalorder %v630, 0
      %vm695 = vcmp.ne.s32.totalorder %v631, 0
      %vm696 = vcmp.ne.s32.totalorder %v632, 0
      %vm697 = vcmp.ne.s32.totalorder %v633, 0
      %vm698 = vcmp.ne.s32.totalorder %v634, 0
      %vm699 = vcmp.ne.s32.totalorder %v635, 0
      %vm700 = vcmp.ne.s32.totalorder %v636, 0
      %vm701 = vcmp.ne.s32.totalorder %v637, 0
      %vm702 = vcmp.ne.s32.totalorder %v638, 0
      %vm703 = vcmp.ne.s32.totalorder %v639, 0
      %vm704 = vcmp.ne.s32.totalorder %v640, 0
      %vm705 = vcmp.ne.s32.totalorder %v641, 0
      %vm706 = vcmp.ne.s32.totalorder %v642, 0
      %vm707 = vcmask 48128
      %708 = vst.msk [vmem:[#allocation2] sm:$0xff] %vm707, 0.0
      %709 = vst.msk [vmem:[#allocation2 + $0x8] sm:$0xff] %vm707, 0.0
      %vm710 = vcmask 40960
      %711 = vst.msk [vmem:[#allocation2 + $0x10] sm:$0x1] %vm710, 0.0
      %712 = vst.msk [vmem:[#allocation2 + $0x10f] sm:$0xff] %vm707, 0.0
      %713 = vst.msk [vmem:[#allocation2 + $0x117] sm:$0xff] %vm707, 0.0
      %714 = vst.msk [vmem:[#allocation2 + $0x11f] sm:$0x1] %vm710, 0.0
      %v715 = vld [vmem:[%s219] sm:$0xff]
      %v716 = vld [vmem:[%s219 + $0x8] sm:$0xff]
      %v717 = vld [vmem:[%s219 + $0x10] sm:$0xff]
      %v718 = vld [vmem:[%s219 + $0x18] sm:$0xff]
      %v719 = vld [vmem:[%s219 + $0x20] sm:$0xff]
      %v720 = vld [vmem:[%s219 + $0x28] sm:$0xff]
      %v721 = vld [vmem:[%s219 + $0x30] sm:$0xff]
      %v722 = vld [vmem:[%s219 + $0x38] sm:$0xff]
      %v723 = vld [vmem:[%s219 + $0x40] sm:$0xff]
      %v724 = vld [vmem:[%s219 + $0x48] sm:$0xff]
      %v725 = vld [vmem:[%s219 + $0x50] sm:$0xff]
      %v726 = vld [vmem:[%s219 + $0x58] sm:$0xff]
      %v727 = vld [vmem:[%s219 + $0x60] sm:$0xff]
      %v728 = vld [vmem:[%s219 + $0x68] sm:$0xff]
      %v729 = vld [vmem:[%s219 + $0x70] sm:$0xff]
      %v730 = vld [vmem:[%s219 + $0x78] sm:$0xff]
      %v731 = vld [vmem:[%s219 + $0x80] sm:$0xff]
      %v732 = vld [vmem:[%s219 + $0x88] sm:$0xff]
      %v733 = vld [vmem:[%s219 + $0x90] sm:$0xff]
      %v734 = vld [vmem:[%s219 + $0x98] sm:$0xff]
      %v735 = vld [vmem:[%s219 + $0xa0] sm:$0xff]
      %v736 = vld [vmem:[%s219 + $0xa8] sm:$0xff]
      %v737 = vld [vmem:[%s219 + $0xb0] sm:$0xff]
      %v738 = vld [vmem:[%s219 + $0xb8] sm:$0xff]
      %v739 = vld [vmem:[%s219 + $0xc0] sm:$0xff]
      %v740 = vld [vmem:[%s219 + $0xc8] sm:$0xff]
      %v741 = vld [vmem:[%s219 + $0xd0] sm:$0xff]
      %v742 = vld [vmem:[%s219 + $0xd8] sm:$0xff]
      %v743 = vld [vmem:[%s219 + $0xe0] sm:$0xff]
      %v744 = vld [vmem:[%s219 + $0xe8] sm:$0xff]
      %v745 = vld [vmem:[%s219 + $0xf0] sm:$0xff]
      %v746 = vld [vmem:[%s219 + $0xf8] sm:$0xff]
      %v747 = vpack.c.bf16 %v716, %v715
      %v748 = vpack.c.bf16 %v718, %v717
      %v749 = vpack.c.bf16 %v720, %v719
      %v750 = vpack.c.bf16 %v722, %v721
      %v751 = vpack.c.bf16 %v724, %v723
      %v752 = vpack.c.bf16 %v726, %v725
      %v753 = vpack.c.bf16 %v728, %v727
      %v754 = vpack.c.bf16 %v730, %v729
      %v755 = vpack.c.bf16 %v732, %v731
      %v756 = vpack.c.bf16 %v734, %v733
      %v757 = vpack.c.bf16 %v736, %v735
      %v758 = vpack.c.bf16 %v738, %v737
      %v759 = vpack.c.bf16 %v740, %v739
      %v760 = vpack.c.bf16 %v742, %v741
      %v761 = vpack.c.bf16 %v744, %v743
      %v762 = vpack.c.bf16 %v746, %v745
      %v763 = vld [vmem:[%s1] sm:$0x3]
      %v764 = vld [vmem:[%s2] sm:$0x1]
      %v766 = vperm.slane %v764, 0
      %vm768 = vcmask 31744
      %v770 = vsel %vm768, %v747, 0
      %v773 = vsel %vm768, %v748, 0
      %v776 = vsel %vm768, %v749, 0
      %v779 = vsel %vm768, %v750, 0
      %v782 = vsel %vm768, %v751, 0
      %v785 = vsel %vm768, %v752, 0
      %v788 = vsel %vm768, %v753, 0
      %v791 = vsel %vm768, %v754, 0
      %v794 = vsel %vm768, %v755, 0
      %v797 = vsel %vm768, %v756, 0
      %v800 = vsel %vm768, %v757, 0
      %v803 = vsel %vm768, %v758, 0
      %v806 = vsel %vm768, %v759, 0
      %v809 = vsel %vm768, %v760, 0
      %v812 = vsel %vm768, %v761, 0
      %v815 = vsel %vm768, %v762, 0
      %vm817 = vcmask 1041408
      %v819 = vsel %vm817, %v763, 0
      %821 = vmatpush.bf16.msra.mxu0 0
      %822 = vmatpush.bf16.msra.mxu0 0
      %823 = vmatpush.bf16.msra.mxu0 0
      %824 = vmatpush.bf16.msra.mxu0 0
      %825 = vmatpush.bf16.msra.mxu0 0
      %826 = vmatpush.bf16.msra.mxu0 0
      %827 = vmatpush.bf16.msra.mxu0 0
      %828 = vmatpush.bf16.msra.mxu0 %v819
      %829 = vmatmul.bf16.gmra.mxu0 %v770
      %v830 = vpop.f32.mrf.mxu0
      %v831 = vadd.f32 %v766, %v830
      %v832 = vpop.f32.mrf.mxu0
      %v833 = vadd.f32 %v766, %v832
      %834 = vmatmul.bf16.gmra.mxu0 %v773
      %v835 = vpop.f32.mrf.mxu0
      %v836 = vadd.f32 %v766, %v835
      %v837 = vpop.f32.mrf.mxu0
      %v838 = vadd.f32 %v766, %v837
      %839 = vmatmul.bf16.gmra.mxu0 %v776
      %v840 = vpop.f32.mrf.mxu0
      %v841 = vadd.f32 %v766, %v840
      %v842 = vpop.f32.mrf.mxu0
      %v843 = vadd.f32 %v766, %v842
      %844 = vmatmul.bf16.gmra.mxu0 %v779
      %v845 = vpop.f32.mrf.mxu0
      %v846 = vadd.f32 %v766, %v845
      %v847 = vpop.f32.mrf.mxu0
      %v848 = vadd.f32 %v766, %v847
      %849 = vmatmul.bf16.gmra.mxu0 %v782
      %v850 = vpop.f32.mrf.mxu0
      %v851 = vadd.f32 %v766, %v850
      %v852 = vpop.f32.mrf.mxu0
      %v853 = vadd.f32 %v766, %v852
      %854 = vmatmul.bf16.gmra.mxu0 %v785
      %v855 = vpop.f32.mrf.mxu0
      %v856 = vadd.f32 %v766, %v855
      %v857 = vpop.f32.mrf.mxu0
      %v858 = vadd.f32 %v766, %v857
      %859 = vmatmul.bf16.gmra.mxu0 %v788
      %v860 = vpop.f32.mrf.mxu0
      %v861 = vadd.f32 %v766, %v860
      %v862 = vpop.f32.mrf.mxu0
      %v863 = vadd.f32 %v766, %v862
      %864 = vmatmul.bf16.gmra.mxu0 %v791
      %v865 = vpop.f32.mrf.mxu0
      %v866 = vadd.f32 %v766, %v865
      %v867 = vpop.f32.mrf.mxu0
      %v868 = vadd.f32 %v766, %v867
      %869 = vmatmul.bf16.gmra.mxu0 %v794
      %v870 = vpop.f32.mrf.mxu0
      %v871 = vadd.f32 %v766, %v870
      %v872 = vpop.f32.mrf.mxu0
      %v873 = vadd.f32 %v766, %v872
      %874 = vmatmul.bf16.gmra.mxu0 %v797
      %v875 = vpop.f32.mrf.mxu0
      %v876 = vadd.f32 %v766, %v875
      %v877 = vpop.f32.mrf.mxu0
      %v878 = vadd.f32 %v766, %v877
      %879 = vmatmul.bf16.gmra.mxu0 %v800
      %v880 = vpop.f32.mrf.mxu0
      %v881 = vadd.f32 %v766, %v880
      %v882 = vpop.f32.mrf.mxu0
      %v883 = vadd.f32 %v766, %v882
      %884 = vmatmul.bf16.gmra.mxu0 %v803
      %v885 = vpop.f32.mrf.mxu0
      %v886 = vadd.f32 %v766, %v885
      %v887 = vpop.f32.mrf.mxu0
      %v888 = vadd.f32 %v766, %v887
      %889 = vmatmul.bf16.gmra.mxu0 %v806
      %v890 = vpop.f32.mrf.mxu0
      %v891 = vadd.f32 %v766, %v890
      %v892 = vpop.f32.mrf.mxu0
      %v893 = vadd.f32 %v766, %v892
      %894 = vmatmul.bf16.gmra.mxu0 %v809
      %v895 = vpop.f32.mrf.mxu0
      %v896 = vadd.f32 %v766, %v895
      %v897 = vpop.f32.mrf.mxu0
      %v898 = vadd.f32 %v766, %v897
      %899 = vmatmul.bf16.gmra.mxu0 %v812
      %v900 = vpop.f32.mrf.mxu0
      %v901 = vadd.f32 %v766, %v900
      %v902 = vpop.f32.mrf.mxu0
      %v903 = vadd.f32 %v766, %v902
      %904 = vmatmul.bf16.gmra.mxu0 %v815
      %v905 = vpop.f32.mrf.mxu0
      %v906 = vadd.f32 %v766, %v905
      %v907 = vpop.f32.mrf.mxu0
      %v908 = vadd.f32 %v766, %v907
      %909 = vdwg.mxu0
      %vm910 = vcmp.gt.f32.partialorder %v831, 0.0
      %vm911 = vcmp.gt.f32.partialorder %v833, 0.0
      %vm912 = vcmp.gt.f32.partialorder %v836, 0.0
      %vm913 = vcmp.gt.f32.partialorder %v838, 0.0
      %vm914 = vcmp.gt.f32.partialorder %v841, 0.0
      %vm915 = vcmp.gt.f32.partialorder %v843, 0.0
      %vm916 = vcmp.gt.f32.partialorder %v846, 0.0
      %vm917 = vcmp.gt.f32.partialorder %v848, 0.0
      %vm918 = vcmp.gt.f32.partialorder %v851, 0.0
      %vm919 = vcmp.gt.f32.partialorder %v853, 0.0
      %vm920 = vcmp.gt.f32.partialorder %v856, 0.0
      %vm921 = vcmp.gt.f32.partialorder %v858, 0.0
      %vm922 = vcmp.gt.f32.partialorder %v861, 0.0
      %vm923 = vcmp.gt.f32.partialorder %v863, 0.0
      %vm924 = vcmp.gt.f32.partialorder %v866, 0.0
      %vm925 = vcmp.gt.f32.partialorder %v868, 0.0
      %vm926 = vcmp.gt.f32.partialorder %v871, 0.0
      %vm927 = vcmp.gt.f32.partialorder %v873, 0.0
      %vm928 = vcmp.gt.f32.partialorder %v876, 0.0
      %vm929 = vcmp.gt.f32.partialorder %v878, 0.0
      %vm930 = vcmp.gt.f32.partialorder %v881, 0.0
      %vm931 = vcmp.gt.f32.partialorder %v883, 0.0
      %vm932 = vcmp.gt.f32.partialorder %v886, 0.0
      %vm933 = vcmp.gt.f32.partialorder %v888, 0.0
      %vm934 = vcmp.gt.f32.partialorder %v891, 0.0
      %vm935 = vcmp.gt.f32.partialorder %v893, 0.0
      %vm936 = vcmp.gt.f32.partialorder %v896, 0.0
      %vm937 = vcmp.gt.f32.partialorder %v898, 0.0
      %vm938 = vcmp.gt.f32.partialorder %v901, 0.0
      %vm939 = vcmp.gt.f32.partialorder %v903, 0.0
      %vm940 = vcmp.gt.f32.partialorder %v906, 0.0
      %vm941 = vcmp.gt.f32.partialorder %v908, 0.0
      %v942 = vmul.f32 %v831, 0.1
      %v943 = vmul.f32 %v833, 0.1
      %v944 = vmul.f32 %v836, 0.1
      %v945 = vmul.f32 %v838, 0.1
      %v946 = vmul.f32 %v841, 0.1
      %v947 = vmul.f32 %v843, 0.1
      %v948 = vmul.f32 %v846, 0.1
      %v949 = vmul.f32 %v848, 0.1
      %v950 = vmul.f32 %v851, 0.1
      %v951 = vmul.f32 %v853, 0.1
      %v952 = vmul.f32 %v856, 0.1
      %v953 = vmul.f32 %v858, 0.1
      %v954 = vmul.f32 %v861, 0.1
      %v955 = vmul.f32 %v863, 0.1
      %v956 = vmul.f32 %v866, 0.1
      %v957 = vmul.f32 %v868, 0.1
      %v958 = vmul.f32 %v871, 0.1
      %v959 = vmul.f32 %v873, 0.1
      %v960 = vmul.f32 %v876, 0.1
      %v961 = vmul.f32 %v878, 0.1
      %v962 = vmul.f32 %v881, 0.1
      %v963 = vmul.f32 %v883, 0.1
      %v964 = vmul.f32 %v886, 0.1
      %v965 = vmul.f32 %v888, 0.1
      %v966 = vmul.f32 %v891, 0.1
      %v967 = vmul.f32 %v893, 0.1
      %v968 = vmul.f32 %v896, 0.1
      %v969 = vmul.f32 %v898, 0.1
      %v970 = vmul.f32 %v901, 0.1
      %v971 = vmul.f32 %v903, 0.1
      %v972 = vmul.f32 %v906, 0.1
      %v973 = vmul.f32 %v908, 0.1
      %v974 = vsel %vm910, %v831, %v942
      %v975 = vsel %vm911, %v833, %v943
      %v976 = vsel %vm912, %v836, %v944
      %v977 = vsel %vm913, %v838, %v945
      %v978 = vsel %vm914, %v841, %v946
      %v979 = vsel %vm915, %v843, %v947
      %v980 = vsel %vm916, %v846, %v948
      %v981 = vsel %vm917, %v848, %v949
      %v982 = vsel %vm918, %v851, %v950
      %v983 = vsel %vm919, %v853, %v951
      %v984 = vsel %vm920, %v856, %v952
      %v985 = vsel %vm921, %v858, %v953
      %v986 = vsel %vm922, %v861, %v954
      %v987 = vsel %vm923, %v863, %v955
      %v988 = vsel %vm924, %v866, %v956
      %v989 = vsel %vm925, %v868, %v957
      %v990 = vsel %vm926, %v871, %v958
      %v991 = vsel %vm927, %v873, %v959
      %v992 = vsel %vm928, %v876, %v960
      %v993 = vsel %vm929, %v878, %v961
      %v994 = vsel %vm930, %v881, %v962
      %v995 = vsel %vm931, %v883, %v963
      %v996 = vsel %vm932, %v886, %v964
      %v997 = vsel %vm933, %v888, %v965
      %v998 = vsel %vm934, %v891, %v966
      %v999 = vsel %vm935, %v893, %v967
      %v1000 = vsel %vm936, %v896, %v968
      %v1001 = vsel %vm937, %v898, %v969
      %v1002 = vsel %vm938, %v901, %v970
      %v1003 = vsel %vm939, %v903, %v971
      %v1004 = vsel %vm940, %v906, %v972
      %v1005 = vsel %vm941, %v908, %v973
      %v1006 = vsel %vm643, 1, 0
      %v1007 = vsel %vm644, 1, 0
      %v1008 = vsel %vm645, 1, 0
      %v1009 = vsel %vm646, 1, 0
      %v1010 = vsel %vm647, 1, 0
      %v1011 = vsel %vm648, 1, 0
      %v1012 = vsel %vm649, 1, 0
      %v1013 = vsel %vm650, 1, 0
      %v1014 = vsel %vm651, 1, 0
      %v1015 = vsel %vm652, 1, 0
      %v1016 = vsel %vm653, 1, 0
      %v1017 = vsel %vm654, 1, 0
      %v1018 = vsel %vm655, 1, 0
      %v1019 = vsel %vm656, 1, 0
      %v1020 = vsel %vm657, 1, 0
      %v1021 = vsel %vm658, 1, 0
      %v1022 = vsel %vm659, 1, 0
      %v1023 = vsel %vm660, 1, 0
      %v1024 = vsel %vm661, 1, 0
      %v1025 = vsel %vm662, 1, 0
      %v1026 = vsel %vm663, 1, 0
      %v1027 = vsel %vm664, 1, 0
      %v1028 = vsel %vm665, 1, 0
      %v1029 = vsel %vm666, 1, 0
      %v1030 = vsel %vm667, 1, 0
      %v1031 = vsel %vm668, 1, 0
      %v1032 = vsel %vm669, 1, 0
      %v1033 = vsel %vm670, 1, 0
      %v1034 = vsel %vm671, 1, 0
      %v1035 = vsel %vm672, 1, 0
      %v1036 = vsel %vm673, 1, 0
      %v1037 = vsel %vm674, 1, 0
      %vm1038 = vcmp.eq.s32.totalorder %v1006, 1
      %vm1039 = vcmp.eq.s32.totalorder %v1007, 1
      %vm1040 = vcmp.eq.s32.totalorder %v1008, 1
      %vm1041 = vcmp.eq.s32.totalorder %v1009, 1
      %vm1042 = vcmp.eq.s32.totalorder %v1010, 1
      %vm1043 = vcmp.eq.s32.totalorder %v1011, 1
      %vm1044 = vcmp.eq.s32.totalorder %v1012, 1
      %vm1045 = vcmp.eq.s32.totalorder %v1013, 1
      %vm1046 = vcmp.eq.s32.totalorder %v1014, 1
      %vm1047 = vcmp.eq.s32.totalorder %v1015, 1
      %vm1048 = vcmp.eq.s32.totalorder %v1016, 1
      %vm1049 = vcmp.eq.s32.totalorder %v1017, 1
      %vm1050 = vcmp.eq.s32.totalorder %v1018, 1
      %vm1051 = vcmp.eq.s32.totalorder %v1019, 1
      %vm1052 = vcmp.eq.s32.totalorder %v1020, 1
      %vm1053 = vcmp.eq.s32.totalorder %v1021, 1
      %vm1054 = vcmp.eq.s32.totalorder %v1022, 1
      %vm1055 = vcmp.eq.s32.totalorder %v1023, 1
      %vm1056 = vcmp.eq.s32.totalorder %v1024, 1
      %vm1057 = vcmp.eq.s32.totalorder %v1025, 1
      %vm1058 = vcmp.eq.s32.totalorder %v1026, 1
      %vm1059 = vcmp.eq.s32.totalorder %v1027, 1
      %vm1060 = vcmp.eq.s32.totalorder %v1028, 1
      %vm1061 = vcmp.eq.s32.totalorder %v1029, 1
      %vm1062 = vcmp.eq.s32.totalorder %v1030, 1
      %vm1063 = vcmp.eq.s32.totalorder %v1031, 1
      %vm1064 = vcmp.eq.s32.totalorder %v1032, 1
      %vm1065 = vcmp.eq.s32.totalorder %v1033, 1
      %vm1066 = vcmp.eq.s32.totalorder %v1034, 1
      %vm1067 = vcmp.eq.s32.totalorder %v1035, 1
      %vm1068 = vcmp.eq.s32.totalorder %v1036, 1
      %vm1069 = vcmp.eq.s32.totalorder %v1037, 1
      %v1070 = vsel %vm1038, %v974, 0.0
      %v1071 = vsel %vm1039, %v975, 0.0
      %v1072 = vsel %vm1040, %v976, 0.0
      %v1073 = vsel %vm1041, %v977, 0.0
      %v1074 = vsel %vm1042, %v978, 0.0
      %v1075 = vsel %vm1043, %v979, 0.0
      %v1076 = vsel %vm1044, %v980, 0.0
      %v1077 = vsel %vm1045, %v981, 0.0
      %v1078 = vsel %vm1046, %v982, 0.0
      %v1079 = vsel %vm1047, %v983, 0.0
      %v1080 = vsel %vm1048, %v984, 0.0
      %v1081 = vsel %vm1049, %v985, 0.0
      %v1082 = vsel %vm1050, %v986, 0.0
      %v1083 = vsel %vm1051, %v987, 0.0
      %v1084 = vsel %vm1052, %v988, 0.0
      %v1085 = vsel %vm1053, %v989, 0.0
      %v1086 = vsel %vm1054, %v990, 0.0
      %v1087 = vsel %vm1055, %v991, 0.0
      %v1088 = vsel %vm1056, %v992, 0.0
      %v1089 = vsel %vm1057, %v993, 0.0
      %v1090 = vsel %vm1058, %v994, 0.0
      %v1091 = vsel %vm1059, %v995, 0.0
      %v1092 = vsel %vm1060, %v996, 0.0
      %v1093 = vsel %vm1061, %v997, 0.0
      %v1094 = vsel %vm1062, %v998, 0.0
      %v1095 = vsel %vm1063, %v999, 0.0
      %v1096 = vsel %vm1064, %v1000, 0.0
      %v1097 = vsel %vm1065, %v1001, 0.0
      %v1098 = vsel %vm1066, %v1002, 0.0
      %v1099 = vsel %vm1067, %v1003, 0.0
      %v1100 = vsel %vm1068, %v1004, 0.0
      %v1101 = vsel %vm1069, %v1005, 0.0
      %vm1102 = vcmask 15360
      %1103 = vst.msk [vmem:[#allocation2 + $0x11] sm:$0xff] %vm1102, %v1070
      %1104 = vst.msk [vmem:[#allocation2 + $0x19] sm:$0xff] %vm1102, %v1071
      %1105 = vst.msk [vmem:[#allocation2 + $0x21] sm:$0xff] %vm1102, %v1072
      %1106 = vst.msk [vmem:[#allocation2 + $0x29] sm:$0xff] %vm1102, %v1073
      %1107 = vst.msk [vmem:[#allocation2 + $0x31] sm:$0xff] %vm1102, %v1074
      %1108 = vst.msk [vmem:[#allocation2 + $0x39] sm:$0xff] %vm1102, %v1075
      %1109 = vst.msk [vmem:[#allocation2 + $0x41] sm:$0xff] %vm1102, %v1076
      %1110 = vst.msk [vmem:[#allocation2 + $0x49] sm:$0xff] %vm1102, %v1077
      %1111 = vst.msk [vmem:[#allocation2 + $0x51] sm:$0xff] %vm1102, %v1078
      %1112 = vst.msk [vmem:[#allocation2 + $0x59] sm:$0xff] %vm1102, %v1079
      %1113 = vst.msk [vmem:[#allocation2 + $0x61] sm:$0xff] %vm1102, %v1080
      %1114 = vst.msk [vmem:[#allocation2 + $0x69] sm:$0xff] %vm1102, %v1081
      %1115 = vst.msk [vmem:[#allocation2 + $0x71] sm:$0xff] %vm1102, %v1082
      %1116 = vst.msk [vmem:[#allocation2 + $0x79] sm:$0xff] %vm1102, %v1083
      %1117 = vst.msk [vmem:[#allocation2 + $0x81] sm:$0xff] %vm1102, %v1084
      %1118 = vst.msk [vmem:[#allocation2 + $0x89] sm:$0xff] %vm1102, %v1085
      %1119 = vst.msk [vmem:[#allocation2 + $0x91] sm:$0xff] %vm1102, %v1086
      %1120 = vst.msk [vmem:[#allocation2 + $0x99] sm:$0xff] %vm1102, %v1087
      %1121 = vst.msk [vmem:[#allocation2 + $0xa1] sm:$0xff] %vm1102, %v1088
      %1122 = vst.msk [vmem:[#allocation2 + $0xa9] sm:$0xff] %vm1102, %v1089
      %1123 = vst.msk [vmem:[#allocation2 + $0xb1] sm:$0xff] %vm1102, %v1090
      %1124 = vst.msk [vmem:[#allocation2 + $0xb9] sm:$0xff] %vm1102, %v1091
      %1125 = vst.msk [vmem:[#allocation2 + $0xc1] sm:$0xff] %vm1102, %v1092
      %1126 = vst.msk [vmem:[#allocation2 + $0xc9] sm:$0xff] %vm1102, %v1093
      %1127 = vst.msk [vmem:[#allocation2 + $0xd1] sm:$0xff] %vm1102, %v1094
      %1128 = vst.msk [vmem:[#allocation2 + $0xd9] sm:$0xff] %vm1102, %v1095
      %1129 = vst.msk [vmem:[#allocation2 + $0xe1] sm:$0xff] %vm1102, %v1096
      %1130 = vst.msk [vmem:[#allocation2 + $0xe9] sm:$0xff] %vm1102, %v1097
      %1131 = vst.msk [vmem:[#allocation2 + $0xf1] sm:$0xff] %vm1102, %v1098
      %1132 = vst.msk [vmem:[#allocation2 + $0xf9] sm:$0xff] %vm1102, %v1099
      %1133 = vst.msk [vmem:[#allocation2 + $0x101] sm:$0xff] %vm1102, %v1100
      %1134 = vst.msk [vmem:[#allocation2 + $0x109] sm:$0xff] %vm1102, %v1101
      %1167 = vrot.lane.b32.xlu0 %v974, 2
      %v1168 = vpop.permute.xlu0 %1167
      %1169 = vrot.lane.b32.xlu0 %v975, 2
      %v1170 = vpop.permute.xlu0 %1169
      %1171 = vrot.lane.b32.xlu0 %v976, 2
      %v1172 = vpop.permute.xlu0 %1171
      %1173 = vrot.lane.b32.xlu0 %v977, 2
      %v1174 = vpop.permute.xlu0 %1173
      %1175 = vrot.lane.b32.xlu0 %v978, 2
      %v1176 = vpop.permute.xlu0 %1175
      %1177 = vrot.lane.b32.xlu0 %v979, 2
      %v1178 = vpop.permute.xlu0 %1177
      %1179 = vrot.lane.b32.xlu0 %v980, 2
      %v1180 = vpop.permute.xlu0 %1179
      %1181 = vrot.lane.b32.xlu0 %v981, 2
      %v1182 = vpop.permute.xlu0 %1181
      %1183 = vrot.lane.b32.xlu0 %v982, 2
      %v1184 = vpop.permute.xlu0 %1183
      %1185 = vrot.lane.b32.xlu0 %v983, 2
      %v1186 = vpop.permute.xlu0 %1185
      %1187 = vrot.lane.b32.xlu0 %v984, 2
      %v1188 = vpop.permute.xlu0 %1187
      %1189 = vrot.lane.b32.xlu0 %v985, 2
      %v1190 = vpop.permute.xlu0 %1189
      %1191 = vrot.lane.b32.xlu0 %v986, 2
      %v1192 = vpop.permute.xlu0 %1191
      %1193 = vrot.lane.b32.xlu0 %v987, 2
      %v1194 = vpop.permute.xlu0 %1193
      %1195 = vrot.lane.b32.xlu0 %v988, 2
      %v1196 = vpop.permute.xlu0 %1195
      %1197 = vrot.lane.b32.xlu0 %v989, 2
      %v1198 = vpop.permute.xlu0 %1197
      %1199 = vrot.lane.b32.xlu0 %v990, 2
      %v1200 = vpop.permute.xlu0 %1199
      %1201 = vrot.lane.b32.xlu0 %v991, 2
      %v1202 = vpop.permute.xlu0 %1201
      %1203 = vrot.lane.b32.xlu0 %v992, 2
      %v1204 = vpop.permute.xlu0 %1203
      %1205 = vrot.lane.b32.xlu0 %v993, 2
      %v1206 = vpop.permute.xlu0 %1205
      %1207 = vrot.lane.b32.xlu0 %v994, 2
      %v1208 = vpop.permute.xlu0 %1207
      %1209 = vrot.lane.b32.xlu0 %v995, 2
      %v1210 = vpop.permute.xlu0 %1209
      %1211 = vrot.lane.b32.xlu0 %v996, 2
      %v1212 = vpop.permute.xlu0 %1211
      %1213 = vrot.lane.b32.xlu0 %v997, 2
      %v1214 = vpop.permute.xlu0 %1213
      %1215 = vrot.lane.b32.xlu0 %v998, 2
      %v1216 = vpop.permute.xlu0 %1215
      %1217 = vrot.lane.b32.xlu0 %v999, 2
      %v1218 = vpop.permute.xlu0 %1217
      %1219 = vrot.lane.b32.xlu0 %v1000, 2
      %v1220 = vpop.permute.xlu0 %1219
      %1221 = vrot.lane.b32.xlu0 %v1001, 2
      %v1222 = vpop.permute.xlu0 %1221
      %1223 = vrot.lane.b32.xlu0 %v1002, 2
      %v1224 = vpop.permute.xlu0 %1223
      %1225 = vrot.lane.b32.xlu0 %v1003, 2
      %v1226 = vpop.permute.xlu0 %1225
      %1227 = vrot.lane.b32.xlu0 %v1004, 2
      %v1228 = vpop.permute.xlu0 %1227
      %1229 = vrot.lane.b32.xlu0 %v1005, 2
      %v1230 = vpop.permute.xlu0 %1229
      %vm1263 = vcmask 31760
      %1264 = vst.msk [vmem:[#allocation2 + $0x10] sm:$0xff] %vm1263, %v1168
      %1265 = vst.msk [vmem:[#allocation2 + $0x18] sm:$0xff] %vm1263, %v1170
      %1266 = vst.msk [vmem:[#allocation2 + $0x20] sm:$0xff] %vm1263, %v1172
      %1267 = vst.msk [vmem:[#allocation2 + $0x28] sm:$0xff] %vm1263, %v1174
      %1268 = vst.msk [vmem:[#allocation2 + $0x30] sm:$0xff] %vm1263, %v1176
      %1269 = vst.msk [vmem:[#allocation2 + $0x38] sm:$0xff] %vm1263, %v1178
      %1270 = vst.msk [vmem:[#allocation2 + $0x40] sm:$0xff] %vm1263, %v1180
      %1271 = vst.msk [vmem:[#allocation2 + $0x48] sm:$0xff] %vm1263, %v1182
      %1272 = vst.msk [vmem:[#allocation2 + $0x50] sm:$0xff] %vm1263, %v1184
      %1273 = vst.msk [vmem:[#allocation2 + $0x58] sm:$0xff] %vm1263, %v1186
      %1274 = vst.msk [vmem:[#allocation2 + $0x60] sm:$0xff] %vm1263, %v1188
      %1275 = vst.msk [vmem:[#allocation2 + $0x68] sm:$0xff] %vm1263, %v1190
      %1276 = vst.msk [vmem:[#allocation2 + $0x70] sm:$0xff] %vm1263, %v1192
      %1277 = vst.msk [vmem:[#allocation2 + $0x78] sm:$0xff] %vm1263, %v1194
      %1278 = vst.msk [vmem:[#allocation2 + $0x80] sm:$0xff] %vm1263, %v1196
      %1279 = vst.msk [vmem:[#allocation2 + $0x88] sm:$0xff] %vm1263, %v1198
      %1280 = vst.msk [vmem:[#allocation2 + $0x90] sm:$0xff] %vm1263, %v1200
      %1281 = vst.msk [vmem:[#allocation2 + $0x98] sm:$0xff] %vm1263, %v1202
      %1282 = vst.msk [vmem:[#allocation2 + $0xa0] sm:$0xff] %vm1263, %v1204
      %1283 = vst.msk [vmem:[#allocation2 + $0xa8] sm:$0xff] %vm1263, %v1206
      %1284 = vst.msk [vmem:[#allocation2 + $0xb0] sm:$0xff] %vm1263, %v1208
      %1285 = vst.msk [vmem:[#allocation2 + $0xb8] sm:$0xff] %vm1263, %v1210
      %1286 = vst.msk [vmem:[#allocation2 + $0xc0] sm:$0xff] %vm1263, %v1212
      %1287 = vst.msk [vmem:[#allocation2 + $0xc8] sm:$0xff] %vm1263, %v1214
      %1288 = vst.msk [vmem:[#allocation2 + $0xd0] sm:$0xff] %vm1263, %v1216
      %1289 = vst.msk [vmem:[#allocation2 + $0xd8] sm:$0xff] %vm1263, %v1218
      %1290 = vst.msk [vmem:[#allocation2 + $0xe0] sm:$0xff] %vm1263, %v1220
      %1291 = vst.msk [vmem:[#allocation2 + $0xe8] sm:$0xff] %vm1263, %v1222
      %1292 = vst.msk [vmem:[#allocation2 + $0xf0] sm:$0xff] %vm1263, %v1224
      %1293 = vst.msk [vmem:[#allocation2 + $0xf8] sm:$0xff] %vm1263, %v1226
      %1294 = vst.msk [vmem:[#allocation2 + $0x100] sm:$0xff] %vm1263, %v1228
      %1295 = vst.msk [vmem:[#allocation2 + $0x108] sm:$0xff] %vm1263, %v1230
      %v1296 = vsel %vm675, 1, 0
      %v1297 = vsel %vm676, 1, 0
      %v1298 = vsel %vm677, 1, 0
      %v1299 = vsel %vm678, 1, 0
      %v1300 = vsel %vm679, 1, 0
      %v1301 = vsel %vm680, 1, 0
      %v1302 = vsel %vm681, 1, 0
      %v1303 = vsel %vm682, 1, 0
      %v1304 = vsel %vm683, 1, 0
      %v1305 = vsel %vm684, 1, 0
      %v1306 = vsel %vm685, 1, 0
      %v1307 = vsel %vm686, 1, 0
      %v1308 = vsel %vm687, 1, 0
      %v1309 = vsel %vm688, 1, 0
      %v1310 = vsel %vm689, 1, 0
      %v1311 = vsel %vm690, 1, 0
      %v1312 = vsel %vm691, 1, 0
      %v1313 = vsel %vm692, 1, 0
      %v1314 = vsel %vm693, 1, 0
      %v1315 = vsel %vm694, 1, 0
      %v1316 = vsel %vm695, 1, 0
      %v1317 = vsel %vm696, 1, 0
      %v1318 = vsel %vm697, 1, 0
      %v1319 = vsel %vm698, 1, 0
      %v1320 = vsel %vm699, 1, 0
      %v1321 = vsel %vm700, 1, 0
      %v1322 = vsel %vm701, 1, 0
      %v1323 = vsel %vm702, 1, 0
      %v1324 = vsel %vm703, 1, 0
      %v1325 = vsel %vm704, 1, 0
      %v1326 = vsel %vm705, 1, 0
      %v1327 = vsel %vm706, 1, 0
      %vm1328 = vcmp.eq.s32.totalorder %v1296, 1
      %vm1329 = vcmp.eq.s32.totalorder %v1297, 1
      %vm1330 = vcmp.eq.s32.totalorder %v1298, 1
      %vm1331 = vcmp.eq.s32.totalorder %v1299, 1
      %vm1332 = vcmp.eq.s32.totalorder %v1300, 1
      %vm1333 = vcmp.eq.s32.totalorder %v1301, 1
      %vm1334 = vcmp.eq.s32.totalorder %v1302, 1
      %vm1335 = vcmp.eq.s32.totalorder %v1303, 1
      %vm1336 = vcmp.eq.s32.totalorder %v1304, 1
      %vm1337 = vcmp.eq.s32.totalorder %v1305, 1
      %vm1338 = vcmp.eq.s32.totalorder %v1306, 1
      %vm1339 = vcmp.eq.s32.totalorder %v1307, 1
      %vm1340 = vcmp.eq.s32.totalorder %v1308, 1
      %vm1341 = vcmp.eq.s32.totalorder %v1309, 1
      %vm1342 = vcmp.eq.s32.totalorder %v1310, 1
      %vm1343 = vcmp.eq.s32.totalorder %v1311, 1
      %vm1344 = vcmp.eq.s32.totalorder %v1312, 1
      %vm1345 = vcmp.eq.s32.totalorder %v1313, 1
      %vm1346 = vcmp.eq.s32.totalorder %v1314, 1
      %vm1347 = vcmp.eq.s32.totalorder %v1315, 1
      %vm1348 = vcmp.eq.s32.totalorder %v1316, 1
      %vm1349 = vcmp.eq.s32.totalorder %v1317, 1
      %vm1350 = vcmp.eq.s32.totalorder %v1318, 1
      %vm1351 = vcmp.eq.s32.totalorder %v1319, 1
      %vm1352 = vcmp.eq.s32.totalorder %v1320, 1
      %vm1353 = vcmp.eq.s32.totalorder %v1321, 1
      %vm1354 = vcmp.eq.s32.totalorder %v1322, 1
      %vm1355 = vcmp.eq.s32.totalorder %v1323, 1
      %vm1356 = vcmp.eq.s32.totalorder %v1324, 1
      %vm1357 = vcmp.eq.s32.totalorder %v1325, 1
      %vm1358 = vcmp.eq.s32.totalorder %v1326, 1
      %vm1359 = vcmp.eq.s32.totalorder %v1327, 1
      %v1360 = vsel %vm1328, %v974, 0.0
      %v1361 = vsel %vm1329, %v975, 0.0
      %v1362 = vsel %vm1330, %v976, 0.0
      %v1363 = vsel %vm1331, %v977, 0.0
      %v1364 = vsel %vm1332, %v978, 0.0
      %v1365 = vsel %vm1333, %v979, 0.0
      %v1366 = vsel %vm1334, %v980, 0.0
      %v1367 = vsel %vm1335, %v981, 0.0
      %v1368 = vsel %vm1336, %v982, 0.0
      %v1369 = vsel %vm1337, %v983, 0.0
      %v1370 = vsel %vm1338, %v984, 0.0
      %v1371 = vsel %vm1339, %v985, 0.0
      %v1372 = vsel %vm1340, %v986, 0.0
      %v1373 = vsel %vm1341, %v987, 0.0
      %v1374 = vsel %vm1342, %v988, 0.0
      %v1375 = vsel %vm1343, %v989, 0.0
      %v1376 = vsel %vm1344, %v990, 0.0
      %v1377 = vsel %vm1345, %v991, 0.0
      %v1378 = vsel %vm1346, %v992, 0.0
      %v1379 = vsel %vm1347, %v993, 0.0
      %v1380 = vsel %vm1348, %v994, 0.0
      %v1381 = vsel %vm1349, %v995, 0.0
      %v1382 = vsel %vm1350, %v996, 0.0
      %v1383 = vsel %vm1351, %v997, 0.0
      %v1384 = vsel %vm1352, %v998, 0.0
      %v1385 = vsel %vm1353, %v999, 0.0
      %v1386 = vsel %vm1354, %v1000, 0.0
      %v1387 = vsel %vm1355, %v1001, 0.0
      %v1388 = vsel %vm1356, %v1002, 0.0
      %v1389 = vsel %vm1357, %v1003, 0.0
      %v1390 = vsel %vm1358, %v1004, 0.0
      %v1391 = vsel %vm1359, %v1005, 0.0
      %1424 = vrot.lane.b32.xlu0 %v1360, 4
      %v1425 = vpop.permute.xlu0 %1424
      %1426 = vrot.lane.b32.xlu0 %v1361, 4
      %v1427 = vpop.permute.xlu0 %1426
      %1428 = vrot.lane.b32.xlu0 %v1362, 4
      %v1429 = vpop.permute.xlu0 %1428
      %1430 = vrot.lane.b32.xlu0 %v1363, 4
      %v1431 = vpop.permute.xlu0 %1430
      %1432 = vrot.lane.b32.xlu0 %v1364, 4
      %v1433 = vpop.permute.xlu0 %1432
      %1434 = vrot.lane.b32.xlu0 %v1365, 4
      %v1435 = vpop.permute.xlu0 %1434
      %1436 = vrot.lane.b32.xlu0 %v1366, 4
      %v1437 = vpop.permute.xlu0 %1436
      %1438 = vrot.lane.b32.xlu0 %v1367, 4
      %v1439 = vpop.permute.xlu0 %1438
      %1440 = vrot.lane.b32.xlu0 %v1368, 4
      %v1441 = vpop.permute.xlu0 %1440
      %1442 = vrot.lane.b32.xlu0 %v1369, 4
      %v1443 = vpop.permute.xlu0 %1442
      %1444 = vrot.lane.b32.xlu0 %v1370, 4
      %v1445 = vpop.permute.xlu0 %1444
      %1446 = vrot.lane.b32.xlu0 %v1371, 4
      %v1447 = vpop.permute.xlu0 %1446
      %1448 = vrot.lane.b32.xlu0 %v1372, 4
      %v1449 = vpop.permute.xlu0 %1448
      %1450 = vrot.lane.b32.xlu0 %v1373, 4
      %v1451 = vpop.permute.xlu0 %1450
      %1452 = vrot.lane.b32.xlu0 %v1374, 4
      %v1453 = vpop.permute.xlu0 %1452
      %1454 = vrot.lane.b32.xlu0 %v1375, 4
      %v1455 = vpop.permute.xlu0 %1454
      %1456 = vrot.lane.b32.xlu0 %v1376, 4
      %v1457 = vpop.permute.xlu0 %1456
      %1458 = vrot.lane.b32.xlu0 %v1377, 4
      %v1459 = vpop.permute.xlu0 %1458
      %1460 = vrot.lane.b32.xlu0 %v1378, 4
      %v1461 = vpop.permute.xlu0 %1460
      %1462 = vrot.lane.b32.xlu0 %v1379, 4
      %v1463 = vpop.permute.xlu0 %1462
      %1464 = vrot.lane.b32.xlu0 %v1380, 4
      %v1465 = vpop.permute.xlu0 %1464
      %1466 = vrot.lane.b32.xlu0 %v1381, 4
      %v1467 = vpop.permute.xlu0 %1466
      %1468 = vrot.lane.b32.xlu0 %v1382, 4
      %v1469 = vpop.permute.xlu0 %1468
      %1470 = vrot.lane.b32.xlu0 %v1383, 4
      %v1471 = vpop.permute.xlu0 %1470
      %1472 = vrot.lane.b32.xlu0 %v1384, 4
      %v1473 = vpop.permute.xlu0 %1472
      %1474 = vrot.lane.b32.xlu0 %v1385, 4
      %v1475 = vpop.permute.xlu0 %1474
      %1476 = vrot.lane.b32.xlu0 %v1386, 4
      %v1477 = vpop.permute.xlu0 %1476
      %1478 = vrot.lane.b32.xlu0 %v1387, 4
      %v1479 = vpop.permute.xlu0 %1478
      %1480 = vrot.lane.b32.xlu0 %v1388, 4
      %v1481 = vpop.permute.xlu0 %1480
      %1482 = vrot.lane.b32.xlu0 %v1389, 4
      %v1483 = vpop.permute.xlu0 %1482
      %1484 = vrot.lane.b32.xlu0 %v1390, 4
      %v1485 = vpop.permute.xlu0 %1484
      %1486 = vrot.lane.b32.xlu0 %v1391, 4
      %v1487 = vpop.permute.xlu0 %1486
      %vm1520 = vcmask 48160
      %1521 = vst.msk [vmem:[#allocation2 + $0xf] sm:$0xff] %vm1520, %v1425
      %1522 = vst.msk [vmem:[#allocation2 + $0x17] sm:$0xff] %vm1520, %v1427
      %1523 = vst.msk [vmem:[#allocation2 + $0x1f] sm:$0xff] %vm1520, %v1429
      %1524 = vst.msk [vmem:[#allocation2 + $0x27] sm:$0xff] %vm1520, %v1431
      %1525 = vst.msk [vmem:[#allocation2 + $0x2f] sm:$0xff] %vm1520, %v1433
      %1526 = vst.msk [vmem:[#allocation2 + $0x37] sm:$0xff] %vm1520, %v1435
      %1527 = vst.msk [vmem:[#allocation2 + $0x3f] sm:$0xff] %vm1520, %v1437
      %1528 = vst.msk [vmem:[#allocation2 + $0x47] sm:$0xff] %vm1520, %v1439
      %1529 = vst.msk [vmem:[#allocation2 + $0x4f] sm:$0xff] %vm1520, %v1441
      %1530 = vst.msk [vmem:[#allocation2 + $0x57] sm:$0xff] %vm1520, %v1443
      %1531 = vst.msk [vmem:[#allocation2 + $0x5f] sm:$0xff] %vm1520, %v1445
      %1532 = vst.msk [vmem:[#allocation2 + $0x67] sm:$0xff] %vm1520, %v1447
      %1533 = vst.msk [vmem:[#allocation2 + $0x6f] sm:$0xff] %vm1520, %v1449
      %1534 = vst.msk [vmem:[#allocation2 + $0x77] sm:$0xff] %vm1520, %v1451
      %1535 = vst.msk [vmem:[#allocation2 + $0x7f] sm:$0xff] %vm1520, %v1453
      %1536 = vst.msk [vmem:[#allocation2 + $0x87] sm:$0xff] %vm1520, %v1455
      %1537 = vst.msk [vmem:[#allocation2 + $0x8f] sm:$0xff] %vm1520, %v1457
      %1538 = vst.msk [vmem:[#allocation2 + $0x97] sm:$0xff] %vm1520, %v1459
      %1539 = vst.msk [vmem:[#allocation2 + $0x9f] sm:$0xff] %vm1520, %v1461
      %1540 = vst.msk [vmem:[#allocation2 + $0xa7] sm:$0xff] %vm1520, %v1463
      %1541 = vst.msk [vmem:[#allocation2 + $0xaf] sm:$0xff] %vm1520, %v1465
      %1542 = vst.msk [vmem:[#allocation2 + $0xb7] sm:$0xff] %vm1520, %v1467
      %1543 = vst.msk [vmem:[#allocation2 + $0xbf] sm:$0xff] %vm1520, %v1469
      %1544 = vst.msk [vmem:[#allocation2 + $0xc7] sm:$0xff] %vm1520, %v1471
      %1545 = vst.msk [vmem:[#allocation2 + $0xcf] sm:$0xff] %vm1520, %v1473
      %1546 = vst.msk [vmem:[#allocation2 + $0xd7] sm:$0xff] %vm1520, %v1475
      %1547 = vst.msk [vmem:[#allocation2 + $0xdf] sm:$0xff] %vm1520, %v1477
      %1548 = vst.msk [vmem:[#allocation2 + $0xe7] sm:$0xff] %vm1520, %v1479
      %1549 = vst.msk [vmem:[#allocation2 + $0xef] sm:$0xff] %vm1520, %v1481
      %1550 = vst.msk [vmem:[#allocation2 + $0xf7] sm:$0xff] %vm1520, %v1483
      %1551 = vst.msk [vmem:[#allocation2 + $0xff] sm:$0xff] %vm1520, %v1485
      %1552 = vst.msk [vmem:[#allocation2 + $0x107] sm:$0xff] %vm1520, %v1487
      %v1553 = vld [vmem:[#allocation2] sm:$0xff]
      %v1554 = vld [vmem:[#allocation2 + $0x8] sm:$0xff]
      %v1555 = vld [vmem:[#allocation2 + $0x10] sm:$0xff]
      %v1556 = vld [vmem:[#allocation2 + $0x18] sm:$0xff]
      %v1557 = vld [vmem:[#allocation2 + $0x20] sm:$0xff]
      %v1558 = vld [vmem:[#allocation2 + $0x28] sm:$0xff]
      %v1559 = vld [vmem:[#allocation2 + $0x30] sm:$0xff]
      %v1560 = vld [vmem:[#allocation2 + $0x38] sm:$0xff]
      %v1561 = vld [vmem:[#allocation2 + $0x40] sm:$0xff]
      %v1562 = vld [vmem:[#allocation2 + $0x48] sm:$0xff]
      %v1563 = vld [vmem:[#allocation2 + $0x50] sm:$0xff]
      %v1564 = vld [vmem:[#allocation2 + $0x58] sm:$0xff]
      %v1565 = vld [vmem:[#allocation2 + $0x60] sm:$0xff]
      %v1566 = vld [vmem:[#allocation2 + $0x68] sm:$0xff]
      %v1567 = vld [vmem:[#allocation2 + $0x70] sm:$0xff]
      %v1568 = vld [vmem:[#allocation2 + $0x78] sm:$0xff]
      %v1569 = vld [vmem:[#allocation2 + $0x80] sm:$0xff]
      %v1570 = vld [vmem:[#allocation2 + $0x88] sm:$0xff]
      %v1571 = vld [vmem:[#allocation2 + $0x90] sm:$0xff]
      %v1572 = vld [vmem:[#allocation2 + $0x98] sm:$0xff]
      %v1573 = vld [vmem:[#allocation2 + $0xa0] sm:$0xff]
      %v1574 = vld [vmem:[#allocation2 + $0xa8] sm:$0xff]
      %v1575 = vld [vmem:[#allocation2 + $0xb0] sm:$0xff]
      %v1576 = vld [vmem:[#allocation2 + $0xb8] sm:$0xff]
      %v1577 = vld [vmem:[#allocation2 + $0xc0] sm:$0xff]
      %v1578 = vld [vmem:[#allocation2 + $0xc8] sm:$0xff]
      %v1579 = vld [vmem:[#allocation2 + $0xd0] sm:$0xff]
      %v1580 = vld [vmem:[#allocation2 + $0xd8] sm:$0xff]
      %v1581 = vld [vmem:[#allocation2 + $0xe0] sm:$0xff]
      %v1582 = vld [vmem:[#allocation2 + $0xe8] sm:$0xff]
      %v1583 = vld [vmem:[#allocation2 + $0xf0] sm:$0xff]
      %v1584 = vld [vmem:[#allocation2 + $0xf8] sm:$0xff]
      %v1585 = vpack.c.bf16 %v1554, %v1553
      %v1586 = vpack.c.bf16 %v1556, %v1555
      %v1587 = vpack.c.bf16 %v1558, %v1557
      %v1588 = vpack.c.bf16 %v1560, %v1559
      %v1589 = vpack.c.bf16 %v1562, %v1561
      %v1590 = vpack.c.bf16 %v1564, %v1563
      %v1591 = vpack.c.bf16 %v1566, %v1565
      %v1592 = vpack.c.bf16 %v1568, %v1567
      %v1593 = vpack.c.bf16 %v1570, %v1569
      %v1594 = vpack.c.bf16 %v1572, %v1571
      %v1595 = vpack.c.bf16 %v1574, %v1573
      %v1596 = vpack.c.bf16 %v1576, %v1575
      %v1597 = vpack.c.bf16 %v1578, %v1577
      %v1598 = vpack.c.bf16 %v1580, %v1579
      %v1599 = vpack.c.bf16 %v1582, %v1581
      %v1600 = vpack.c.bf16 %v1584, %v1583
      %v1601 = vld [vmem:[%s3] sm:$0x7]
      %v1603 = vsel %vm707, %v1585, 0
      %v1606 = vsel %vm707, %v1586, 0
      %v1609 = vsel %vm707, %v1587, 0
      %v1612 = vsel %vm707, %v1588, 0
      %v1615 = vsel %vm707, %v1589, 0
      %v1618 = vsel %vm707, %v1590, 0
      %v1621 = vsel %vm707, %v1591, 0
      %v1624 = vsel %vm707, %v1592, 0
      %v1627 = vsel %vm707, %v1593, 0
      %v1630 = vsel %vm707, %v1594, 0
      %v1633 = vsel %vm707, %v1595, 0
      %v1636 = vsel %vm707, %v1596, 0
      %v1639 = vsel %vm707, %v1597, 0
      %v1642 = vsel %vm707, %v1598, 0
      %v1645 = vsel %vm707, %v1599, 0
      %v1648 = vsel %vm707, %v1600, 0
      %vm1650 = vcmask 1042432
      %v1652 = vsel %vm1650, %v1601, 0
      %1654 = vmatpush.bf16.msra.mxu0 0
      %1655 = vmatpush.bf16.msra.mxu0 0
      %1656 = vmatpush.bf16.msra.mxu0 0
      %1657 = vmatpush.bf16.msra.mxu0 0
      %1658 = vmatpush.bf16.msra.mxu0 0
      %1659 = vmatpush.bf16.msra.mxu0 0
      %1660 = vmatpush.bf16.msra.mxu0 0
      %1661 = vmatpush.bf16.msra.mxu0 %v1652
      %1662 = vmatmul.bf16.gmra.mxu0 %v1603
      %v1663 = vpop.f32.mrf.mxu0
      %v1664 = vadd.f32 0.0, %v1663
      %v1665 = vpop.f32.mrf.mxu0
      %v1666 = vadd.f32 0.0, %v1665
      %1667 = vmatmul.bf16.gmra.mxu0 %v1606
      %v1668 = vpop.f32.mrf.mxu0
      %v1669 = vadd.f32 0.0, %v1668
      %v1670 = vpop.f32.mrf.mxu0
      %v1671 = vadd.f32 0.0, %v1670
      %1672 = vmatmul.bf16.gmra.mxu0 %v1609
      %v1673 = vpop.f32.mrf.mxu0
      %v1674 = vadd.f32 0.0, %v1673
      %v1675 = vpop.f32.mrf.mxu0
      %v1676 = vadd.f32 0.0, %v1675
      %1677 = vmatmul.bf16.gmra.mxu0 %v1612
      %v1678 = vpop.f32.mrf.mxu0
      %v1679 = vadd.f32 0.0, %v1678
      %v1680 = vpop.f32.mrf.mxu0
      %v1681 = vadd.f32 0.0, %v1680
      %1682 = vmatmul.bf16.gmra.mxu0 %v1615
      %v1683 = vpop.f32.mrf.mxu0
      %v1684 = vadd.f32 0.0, %v1683
      %v1685 = vpop.f32.mrf.mxu0
      %v1686 = vadd.f32 0.0, %v1685
      %1687 = vmatmul.bf16.gmra.mxu0 %v1618
      %v1688 = vpop.f32.mrf.mxu0
      %v1689 = vadd.f32 0.0, %v1688
      %v1690 = vpop.f32.mrf.mxu0
      %v1691 = vadd.f32 0.0, %v1690
      %1692 = vmatmul.bf16.gmra.mxu0 %v1621
      %v1693 = vpop.f32.mrf.mxu0
      %v1694 = vadd.f32 0.0, %v1693
      %v1695 = vpop.f32.mrf.mxu0
      %v1696 = vadd.f32 0.0, %v1695
      %1697 = vmatmul.bf16.gmra.mxu0 %v1624
      %v1698 = vpop.f32.mrf.mxu0
      %v1699 = vadd.f32 0.0, %v1698
      %v1700 = vpop.f32.mrf.mxu0
      %v1701 = vadd.f32 0.0, %v1700
      %1702 = vmatmul.bf16.gmra.mxu0 %v1627
      %v1703 = vpop.f32.mrf.mxu0
      %v1704 = vadd.f32 0.0, %v1703
      %v1705 = vpop.f32.mrf.mxu0
      %v1706 = vadd.f32 0.0, %v1705
      %1707 = vmatmul.bf16.gmra.mxu0 %v1630
      %v1708 = vpop.f32.mrf.mxu0
      %v1709 = vadd.f32 0.0, %v1708
      %v1710 = vpop.f32.mrf.mxu0
      %v1711 = vadd.f32 0.0, %v1710
      %1712 = vmatmul.bf16.gmra.mxu0 %v1633
      %v1713 = vpop.f32.mrf.mxu0
      %v1714 = vadd.f32 0.0, %v1713
      %v1715 = vpop.f32.mrf.mxu0
      %v1716 = vadd.f32 0.0, %v1715
      %1717 = vmatmul.bf16.gmra.mxu0 %v1636
      %v1718 = vpop.f32.mrf.mxu0
      %v1719 = vadd.f32 0.0, %v1718
      %v1720 = vpop.f32.mrf.mxu0
      %v1721 = vadd.f32 0.0, %v1720
      %1722 = vmatmul.bf16.gmra.mxu0 %v1639
      %v1723 = vpop.f32.mrf.mxu0
      %v1724 = vadd.f32 0.0, %v1723
      %v1725 = vpop.f32.mrf.mxu0
      %v1726 = vadd.f32 0.0, %v1725
      %1727 = vmatmul.bf16.gmra.mxu0 %v1642
      %v1728 = vpop.f32.mrf.mxu0
      %v1729 = vadd.f32 0.0, %v1728
      %v1730 = vpop.f32.mrf.mxu0
      %v1731 = vadd.f32 0.0, %v1730
      %1732 = vmatmul.bf16.gmra.mxu0 %v1645
      %v1733 = vpop.f32.mrf.mxu0
      %v1734 = vadd.f32 0.0, %v1733
      %v1735 = vpop.f32.mrf.mxu0
      %v1736 = vadd.f32 0.0, %v1735
      %1737 = vmatmul.bf16.gmra.mxu0 %v1648
      %v1738 = vpop.f32.mrf.mxu0
      %v1739 = vadd.f32 0.0, %v1738
      %v1740 = vpop.f32.mrf.mxu0
      %v1741 = vadd.f32 0.0, %v1740
      %1742 = vdwg.mxu0
      %1743 = vst.msk [vmem:[#allocation3] sm:$0xff] %vm768, %v1664
      %1744 = vst.msk [vmem:[#allocation3 + $0x8] sm:$0xff] %vm768, %v1666
      %1745 = vst.msk [vmem:[#allocation3 + $0x10] sm:$0xff] %vm768, %v1669
      %1746 = vst.msk [vmem:[#allocation3 + $0x18] sm:$0xff] %vm768, %v1671
      %1747 = vst.msk [vmem:[#allocation3 + $0x20] sm:$0xff] %vm768, %v1674
      %1748 = vst.msk [vmem:[#allocation3 + $0x28] sm:$0xff] %vm768, %v1676
      %1749 = vst.msk [vmem:[#allocation3 + $0x30] sm:$0xff] %vm768, %v1679
      %1750 = vst.msk [vmem:[#allocation3 + $0x38] sm:$0xff] %vm768, %v1681
      %1751 = vst.msk [vmem:[#allocation3 + $0x40] sm:$0xff] %vm768, %v1684
      %1752 = vst.msk [vmem:[#allocation3 + $0x48] sm:$0xff] %vm768, %v1686
      %1753 = vst.msk [vmem:[#allocation3 + $0x50] sm:$0xff] %vm768, %v1689
      %1754 = vst.msk [vmem:[#allocation3 + $0x58] sm:$0xff] %vm768, %v1691
      %1755 = vst.msk [vmem:[#allocation3 + $0x60] sm:$0xff] %vm768, %v1694
      %1756 = vst.msk [vmem:[#allocation3 + $0x68] sm:$0xff] %vm768, %v1696
      %1757 = vst.msk [vmem:[#allocation3 + $0x70] sm:$0xff] %vm768, %v1699
      %1758 = vst.msk [vmem:[#allocation3 + $0x78] sm:$0xff] %vm768, %v1701
      %1759 = vst.msk [vmem:[#allocation3 + $0x80] sm:$0xff] %vm768, %v1704
      %1760 = vst.msk [vmem:[#allocation3 + $0x88] sm:$0xff] %vm768, %v1706
      %1761 = vst.msk [vmem:[#allocation3 + $0x90] sm:$0xff] %vm768, %v1709
      %1762 = vst.msk [vmem:[#allocation3 + $0x98] sm:$0xff] %vm768, %v1711
      %1763 = vst.msk [vmem:[#allocation3 + $0xa0] sm:$0xff] %vm768, %v1714
      %1764 = vst.msk [vmem:[#allocation3 + $0xa8] sm:$0xff] %vm768, %v1716
      %1765 = vst.msk [vmem:[#allocation3 + $0xb0] sm:$0xff] %vm768, %v1719
      %1766 = vst.msk [vmem:[#allocation3 + $0xb8] sm:$0xff] %vm768, %v1721
      %1767 = vst.msk [vmem:[#allocation3 + $0xc0] sm:$0xff] %vm768, %v1724
      %1768 = vst.msk [vmem:[#allocation3 + $0xc8] sm:$0xff] %vm768, %v1726
      %1769 = vst.msk [vmem:[#allocation3 + $0xd0] sm:$0xff] %vm768, %v1729
      %1770 = vst.msk [vmem:[#allocation3 + $0xd8] sm:$0xff] %vm768, %v1731
      %1771 = vst.msk [vmem:[#allocation3 + $0xe0] sm:$0xff] %vm768, %v1734
      %1772 = vst.msk [vmem:[#allocation3 + $0xe8] sm:$0xff] %vm768, %v1736
      %1773 = vst.msk [vmem:[#allocation3 + $0xf0] sm:$0xff] %vm768, %v1739
      %1774 = vst.msk [vmem:[#allocation3 + $0xf8] sm:$0xff] %vm768, %v1741
      %v1775 = vld [vmem:[#allocation2 + $0x10] sm:$0xff]
      %v1776 = vld [vmem:[#allocation2 + $0x18] sm:$0xff]
      %v1777 = vld [vmem:[#allocation2 + $0x20] sm:$0xff]
      %v1778 = vld [vmem:[#allocation2 + $0x28] sm:$0xff]
      %v1779 = vld [vmem:[#allocation2 + $0x30] sm:$0xff]
      %v1780 = vld [vmem:[#allocation2 + $0x38] sm:$0xff]
      %v1781 = vld [vmem:[#allocation2 + $0x40] sm:$0xff]
      %v1782 = vld [vmem:[#allocation2 + $0x48] sm:$0xff]
      %v1783 = vld [vmem:[#allocation2 + $0x50] sm:$0xff]
      %v1784 = vld [vmem:[#allocation2 + $0x58] sm:$0xff]
      %v1785 = vld [vmem:[#allocation2 + $0x60] sm:$0xff]
      %v1786 = vld [vmem:[#allocation2 + $0x68] sm:$0xff]
      %v1787 = vld [vmem:[#allocation2 + $0x70] sm:$0xff]
      %v1788 = vld [vmem:[#allocation2 + $0x78] sm:$0xff]
      %v1789 = vld [vmem:[#allocation2 + $0x80] sm:$0xff]
      %v1790 = vld [vmem:[#allocation2 + $0x88] sm:$0xff]
      %v1791 = vld [vmem:[#allocation2 + $0x90] sm:$0xff]
      %v1792 = vld [vmem:[#allocation2 + $0x98] sm:$0xff]
      %v1793 = vld [vmem:[#allocation2 + $0xa0] sm:$0xff]
      %v1794 = vld [vmem:[#allocation2 + $0xa8] sm:$0xff]
      %v1795 = vld [vmem:[#allocation2 + $0xb0] sm:$0xff]
      %v1796 = vld [vmem:[#allocation2 + $0xb8] sm:$0xff]
      %v1797 = vld [vmem:[#allocation2 + $0xc0] sm:$0xff]
      %v1798 = vld [vmem:[#allocation2 + $0xc8] sm:$0xff]
      %v1799 = vld [vmem:[#allocation2 + $0xd0] sm:$0xff]
      %v1800 = vld [vmem:[#allocation2 + $0xd8] sm:$0xff]
      %v1801 = vld [vmem:[#allocation2 + $0xe0] sm:$0xff]
      %v1802 = vld [vmem:[#allocation2 + $0xe8] sm:$0xff]
      %v1803 = vld [vmem:[#allocation2 + $0xf0] sm:$0xff]
      %v1804 = vld [vmem:[#allocation2 + $0xf8] sm:$0xff]
      %v1805 = vld [vmem:[#allocation2 + $0x100] sm:$0xff]
      %v1806 = vld [vmem:[#allocation2 + $0x108] sm:$0xff]
      %v1807 = vpack.c.bf16 %v1776, %v1775
      %v1808 = vpack.c.bf16 %v1778, %v1777
      %v1809 = vpack.c.bf16 %v1780, %v1779
      %v1810 = vpack.c.bf16 %v1782, %v1781
      %v1811 = vpack.c.bf16 %v1784, %v1783
      %v1812 = vpack.c.bf16 %v1786, %v1785
      %v1813 = vpack.c.bf16 %v1788, %v1787
      %v1814 = vpack.c.bf16 %v1790, %v1789
      %v1815 = vpack.c.bf16 %v1792, %v1791
      %v1816 = vpack.c.bf16 %v1794, %v1793
      %v1817 = vpack.c.bf16 %v1796, %v1795
      %v1818 = vpack.c.bf16 %v1798, %v1797
      %v1819 = vpack.c.bf16 %v1800, %v1799
      %v1820 = vpack.c.bf16 %v1802, %v1801
      %v1821 = vpack.c.bf16 %v1804, %v1803
      %v1822 = vpack.c.bf16 %v1806, %v1805
      %s1823 = scalar_lea.vmem %s3, 4
      %v1824 = vld [vmem:[%s1823] sm:$0x7]
      %v1826 = vsel %vm707, %v1807, 0
      %v1829 = vsel %vm707, %v1808, 0
      %v1832 = vsel %vm707, %v1809, 0
      %v1835 = vsel %vm707, %v1810, 0
      %v1838 = vsel %vm707, %v1811, 0
      %v1841 = vsel %vm707, %v1812, 0
      %v1844 = vsel %vm707, %v1813, 0
      %v1847 = vsel %vm707, %v1814, 0
      %v1850 = vsel %vm707, %v1815, 0
      %v1853 = vsel %vm707, %v1816, 0
      %v1856 = vsel %vm707, %v1817, 0
      %v1859 = vsel %vm707, %v1818, 0
      %v1862 = vsel %vm707, %v1819, 0
      %v1865 = vsel %vm707, %v1820, 0
      %v1868 = vsel %vm707, %v1821, 0
      %v1871 = vsel %vm707, %v1822, 0
      %v1874 = vsel %vm1650, %v1824, 0
      %1876 = vmatpush.bf16.msra.mxu0 0
      %1877 = vmatpush.bf16.msra.mxu0 0
      %1878 = vmatpush.bf16.msra.mxu0 0
      %1879 = vmatpush.bf16.msra.mxu0 0
      %1880 = vmatpush.bf16.msra.mxu0 0
      %1881 = vmatpush.bf16.msra.mxu0 0
      %1882 = vmatpush.bf16.msra.mxu0 0
      %1883 = vmatpush.bf16.msra.mxu0 %v1874
      %1884 = vmatmul.bf16.gmra.mxu0 %v1826
      %v1885 = vpop.f32.mrf.mxu0
      %v1886 = vadd.f32 0.0, %v1885
      %v1887 = vpop.f32.mrf.mxu0
      %v1888 = vadd.f32 0.0, %v1887
      %1889 = vmatmul.bf16.gmra.mxu0 %v1829
      %v1890 = vpop.f32.mrf.mxu0
      %v1891 = vadd.f32 0.0, %v1890
      %v1892 = vpop.f32.mrf.mxu0
      %v1893 = vadd.f32 0.0, %v1892
      %1894 = vmatmul.bf16.gmra.mxu0 %v1832
      %v1895 = vpop.f32.mrf.mxu0
      %v1896 = vadd.f32 0.0, %v1895
      %v1897 = vpop.f32.mrf.mxu0
      %v1898 = vadd.f32 0.0, %v1897
      %1899 = vmatmul.bf16.gmra.mxu0 %v1835
      %v1900 = vpop.f32.mrf.mxu0
      %v1901 = vadd.f32 0.0, %v1900
      %v1902 = vpop.f32.mrf.mxu0
      %v1903 = vadd.f32 0.0, %v1902
      %1904 = vmatmul.bf16.gmra.mxu0 %v1838
      %v1905 = vpop.f32.mrf.mxu0
      %v1906 = vadd.f32 0.0, %v1905
      %v1907 = vpop.f32.mrf.mxu0
      %v1908 = vadd.f32 0.0, %v1907
      %1909 = vmatmul.bf16.gmra.mxu0 %v1841
      %v1910 = vpop.f32.mrf.mxu0
      %v1911 = vadd.f32 0.0, %v1910
      %v1912 = vpop.f32.mrf.mxu0
      %v1913 = vadd.f32 0.0, %v1912
      %1914 = vmatmul.bf16.gmra.mxu0 %v1844
      %v1915 = vpop.f32.mrf.mxu0
      %v1916 = vadd.f32 0.0, %v1915
      %v1917 = vpop.f32.mrf.mxu0
      %v1918 = vadd.f32 0.0, %v1917
      %1919 = vmatmul.bf16.gmra.mxu0 %v1847
      %v1920 = vpop.f32.mrf.mxu0
      %v1921 = vadd.f32 0.0, %v1920
      %v1922 = vpop.f32.mrf.mxu0
      %v1923 = vadd.f32 0.0, %v1922
      %1924 = vmatmul.bf16.gmra.mxu0 %v1850
      %v1925 = vpop.f32.mrf.mxu0
      %v1926 = vadd.f32 0.0, %v1925
      %v1927 = vpop.f32.mrf.mxu0
      %v1928 = vadd.f32 0.0, %v1927
      %1929 = vmatmul.bf16.gmra.mxu0 %v1853
      %v1930 = vpop.f32.mrf.mxu0
      %v1931 = vadd.f32 0.0, %v1930
      %v1932 = vpop.f32.mrf.mxu0
      %v1933 = vadd.f32 0.0, %v1932
      %1934 = vmatmul.bf16.gmra.mxu0 %v1856
      %v1935 = vpop.f32.mrf.mxu0
      %v1936 = vadd.f32 0.0, %v1935
      %v1937 = vpop.f32.mrf.mxu0
      %v1938 = vadd.f32 0.0, %v1937
      %1939 = vmatmul.bf16.gmra.mxu0 %v1859
      %v1940 = vpop.f32.mrf.mxu0
      %v1941 = vadd.f32 0.0, %v1940
      %v1942 = vpop.f32.mrf.mxu0
      %v1943 = vadd.f32 0.0, %v1942
      %1944 = vmatmul.bf16.gmra.mxu0 %v1862
      %v1945 = vpop.f32.mrf.mxu0
      %v1946 = vadd.f32 0.0, %v1945
      %v1947 = vpop.f32.mrf.mxu0
      %v1948 = vadd.f32 0.0, %v1947
      %1949 = vmatmul.bf16.gmra.mxu0 %v1865
      %v1950 = vpop.f32.mrf.mxu0
      %v1951 = vadd.f32 0.0, %v1950
      %v1952 = vpop.f32.mrf.mxu0
      %v1953 = vadd.f32 0.0, %v1952
      %1954 = vmatmul.bf16.gmra.mxu0 %v1868
      %v1955 = vpop.f32.mrf.mxu0
      %v1956 = vadd.f32 0.0, %v1955
      %v1957 = vpop.f32.mrf.mxu0
      %v1958 = vadd.f32 0.0, %v1957
      %1959 = vmatmul.bf16.gmra.mxu0 %v1871
      %v1960 = vpop.f32.mrf.mxu0
      %v1961 = vadd.f32 0.0, %v1960
      %v1962 = vpop.f32.mrf.mxu0
      %v1963 = vadd.f32 0.0, %v1962
      %1964 = vdwg.mxu0
      %v1965 = vld [vmem:[#allocation3] sm:$0xff]
      %v1966 = vld [vmem:[#allocation3 + $0x8] sm:$0xff]
      %v1967 = vld [vmem:[#allocation3 + $0x10] sm:$0xff]
      %v1968 = vld [vmem:[#allocation3 + $0x18] sm:$0xff]
      %v1969 = vld [vmem:[#allocation3 + $0x20] sm:$0xff]
      %v1970 = vld [vmem:[#allocation3 + $0x28] sm:$0xff]
      %v1971 = vld [vmem:[#allocation3 + $0x30] sm:$0xff]
      %v1972 = vld [vmem:[#allocation3 + $0x38] sm:$0xff]
      %v1973 = vld [vmem:[#allocation3 + $0x40] sm:$0xff]
      %v1974 = vld [vmem:[#allocation3 + $0x48] sm:$0xff]
      %v1975 = vld [vmem:[#allocation3 + $0x50] sm:$0xff]
      %v1976 = vld [vmem:[#allocation3 + $0x58] sm:$0xff]
      %v1977 = vld [vmem:[#allocation3 + $0x60] sm:$0xff]
      %v1978 = vld [vmem:[#allocation3 + $0x68] sm:$0xff]
      %v1979 = vld [vmem:[#allocation3 + $0x70] sm:$0xff]
      %v1980 = vld [vmem:[#allocation3 + $0x78] sm:$0xff]
      %v1981 = vld [vmem:[#allocation3 + $0x80] sm:$0xff]
      %v1982 = vld [vmem:[#allocation3 + $0x88] sm:$0xff]
      %v1983 = vld [vmem:[#allocation3 + $0x90] sm:$0xff]
      %v1984 = vld [vmem:[#allocation3 + $0x98] sm:$0xff]
      %v1985 = vld [vmem:[#allocation3 + $0xa0] sm:$0xff]
      %v1986 = vld [vmem:[#allocation3 + $0xa8] sm:$0xff]
      %v1987 = vld [vmem:[#allocation3 + $0xb0] sm:$0xff]
      %v1988 = vld [vmem:[#allocation3 + $0xb8] sm:$0xff]
      %v1989 = vld [vmem:[#allocation3 + $0xc0] sm:$0xff]
      %v1990 = vld [vmem:[#allocation3 + $0xc8] sm:$0xff]
      %v1991 = vld [vmem:[#allocation3 + $0xd0] sm:$0xff]
      %v1992 = vld [vmem:[#allocation3 + $0xd8] sm:$0xff]
      %v1993 = vld [vmem:[#allocation3 + $0xe0] sm:$0xff]
      %v1994 = vld [vmem:[#allocation3 + $0xe8] sm:$0xff]
      %v1995 = vld [vmem:[#allocation3 + $0xf0] sm:$0xff]
      %v1996 = vld [vmem:[#allocation3 + $0xf8] sm:$0xff]
      %v1997 = vadd.f32 %v1965, %v1886
      %v1998 = vadd.f32 %v1966, %v1888
      %v1999 = vadd.f32 %v1967, %v1891
      %v2000 = vadd.f32 %v1968, %v1893
      %v2001 = vadd.f32 %v1969, %v1896
      %v2002 = vadd.f32 %v1970, %v1898
      %v2003 = vadd.f32 %v1971, %v1901
      %v2004 = vadd.f32 %v1972, %v1903
      %v2005 = vadd.f32 %v1973, %v1906
      %v2006 = vadd.f32 %v1974, %v1908
      %v2007 = vadd.f32 %v1975, %v1911
      %v2008 = vadd.f32 %v1976, %v1913
      %v2009 = vadd.f32 %v1977, %v1916
      %v2010 = vadd.f32 %v1978, %v1918
      %v2011 = vadd.f32 %v1979, %v1921
      %v2012 = vadd.f32 %v1980, %v1923
      %v2013 = vadd.f32 %v1981, %v1926
      %v2014 = vadd.f32 %v1982, %v1928
      %v2015 = vadd.f32 %v1983, %v1931
      %v2016 = vadd.f32 %v1984, %v1933
      %v2017 = vadd.f32 %v1985, %v1936
      %v2018 = vadd.f32 %v1986, %v1938
      %v2019 = vadd.f32 %v1987, %v1941
      %v2020 = vadd.f32 %v1988, %v1943
      %v2021 = vadd.f32 %v1989, %v1946
      %v2022 = vadd.f32 %v1990, %v1948
      %v2023 = vadd.f32 %v1991, %v1951
      %v2024 = vadd.f32 %v1992, %v1953
      %v2025 = vadd.f32 %v1993, %v1956
      %v2026 = vadd.f32 %v1994, %v1958
      %v2027 = vadd.f32 %v1995, %v1961
      %v2028 = vadd.f32 %v1996, %v1963
      %2029 = vst.msk [vmem:[#allocation3] sm:$0xff] %vm768, %v1997
      %2030 = vst.msk [vmem:[#allocation3 + $0x8] sm:$0xff] %vm768, %v1998
      %2031 = vst.msk [vmem:[#allocation3 + $0x10] sm:$0xff] %vm768, %v1999
      %2032 = vst.msk [vmem:[#allocation3 + $0x18] sm:$0xff] %vm768, %v2000
      %2033 = vst.msk [vmem:[#allocation3 + $0x20] sm:$0xff] %vm768, %v2001
      %2034 = vst.msk [vmem:[#allocation3 + $0x28] sm:$0xff] %vm768, %v2002
      %2035 = vst.msk [vmem:[#allocation3 + $0x30] sm:$0xff] %vm768, %v2003
      %2036 = vst.msk [vmem:[#allocation3 + $0x38] sm:$0xff] %vm768, %v2004
      %2037 = vst.msk [vmem:[#allocation3 + $0x40] sm:$0xff] %vm768, %v2005
      %2038 = vst.msk [vmem:[#allocation3 + $0x48] sm:$0xff] %vm768, %v2006
      %2039 = vst.msk [vmem:[#allocation3 + $0x50] sm:$0xff] %vm768, %v2007
      %2040 = vst.msk [vmem:[#allocation3 + $0x58] sm:$0xff] %vm768, %v2008
      %2041 = vst.msk [vmem:[#allocation3 + $0x60] sm:$0xff] %vm768, %v2009
      %2042 = vst.msk [vmem:[#allocation3 + $0x68] sm:$0xff] %vm768, %v2010
      %2043 = vst.msk [vmem:[#allocation3 + $0x70] sm:$0xff] %vm768, %v2011
      %2044 = vst.msk [vmem:[#allocation3 + $0x78] sm:$0xff] %vm768, %v2012
      %2045 = vst.msk [vmem:[#allocation3 + $0x80] sm:$0xff] %vm768, %v2013
      %2046 = vst.msk [vmem:[#allocation3 + $0x88] sm:$0xff] %vm768, %v2014
      %2047 = vst.msk [vmem:[#allocation3 + $0x90] sm:$0xff] %vm768, %v2015
      %2048 = vst.msk [vmem:[#allocation3 + $0x98] sm:$0xff] %vm768, %v2016
      %2049 = vst.msk [vmem:[#allocation3 + $0xa0] sm:$0xff] %vm768, %v2017
      %2050 = vst.msk [vmem:[#allocation3 + $0xa8] sm:$0xff] %vm768, %v2018
      %2051 = vst.msk [vmem:[#allocation3 + $0xb0] sm:$0xff] %vm768, %v2019
      %2052 = vst.msk [vmem:[#allocation3 + $0xb8] sm:$0xff] %vm768, %v2020
      %2053 = vst.msk [vmem:[#allocation3 + $0xc0] sm:$0xff] %vm768, %v2021
      %2054 = vst.msk [vmem:[#allocation3 + $0xc8] sm:$0xff] %vm768, %v2022
      %2055 = vst.msk [vmem:[#allocation3 + $0xd0] sm:$0xff] %vm768, %v2023
      %2056 = vst.msk [vmem:[#allocation3 + $0xd8] sm:$0xff] %vm768, %v2024
      %2057 = vst.msk [vmem:[#allocation3 + $0xe0] sm:$0xff] %vm768, %v2025
      %2058 = vst.msk [vmem:[#allocation3 + $0xe8] sm:$0xff] %vm768, %v2026
      %2059 = vst.msk [vmem:[#allocation3 + $0xf0] sm:$0xff] %vm768, %v2027
      %2060 = vst.msk [vmem:[#allocation3 + $0xf8] sm:$0xff] %vm768, %v2028
      %v2061 = vld [vmem:[#allocation2 + $0x20] sm:$0xff]
      %v2062 = vld [vmem:[#allocation2 + $0x28] sm:$0xff]
      %v2063 = vld [vmem:[#allocation2 + $0x30] sm:$0xff]
      %v2064 = vld [vmem:[#allocation2 + $0x38] sm:$0xff]
      %v2065 = vld [vmem:[#allocation2 + $0x40] sm:$0xff]
      %v2066 = vld [vmem:[#allocation2 + $0x48] sm:$0xff]
      %v2067 = vld [vmem:[#allocation2 + $0x50] sm:$0xff]
      %v2068 = vld [vmem:[#allocation2 + $0x58] sm:$0xff]
      %v2069 = vld [vmem:[#allocation2 + $0x60] sm:$0xff]
      %v2070 = vld [vmem:[#allocation2 + $0x68] sm:$0xff]
      %v2071 = vld [vmem:[#allocation2 + $0x70] sm:$0xff]
      %v2072 = vld [vmem:[#allocation2 + $0x78] sm:$0xff]
      %v2073 = vld [vmem:[#allocation2 + $0x80] sm:$0xff]
      %v2074 = vld [vmem:[#allocation2 + $0x88] sm:$0xff]
      %v2075 = vld [vmem:[#allocation2 + $0x90] sm:$0xff]
      %v2076 = vld [vmem:[#allocation2 + $0x98] sm:$0xff]
      %v2077 = vld [vmem:[#allocation2 + $0xa0] sm:$0xff]
      %v2078 = vld [vmem:[#allocation2 + $0xa8] sm:$0xff]
      %v2079 = vld [vmem:[#allocation2 + $0xb0] sm:$0xff]
      %v2080 = vld [vmem:[#allocation2 + $0xb8] sm:$0xff]
      %v2081 = vld [vmem:[#allocation2 + $0xc0] sm:$0xff]
      %v2082 = vld [vmem:[#allocation2 + $0xc8] sm:$0xff]
      %v2083 = vld [vmem:[#allocation2 + $0xd0] sm:$0xff]
      %v2084 = vld [vmem:[#allocation2 + $0xd8] sm:$0xff]
      %v2085 = vld [vmem:[#allocation2 + $0xe0] sm:$0xff]
      %v2086 = vld [vmem:[#allocation2 + $0xe8] sm:$0xff]
      %v2087 = vld [vmem:[#allocation2 + $0xf0] sm:$0xff]
      %v2088 = vld [vmem:[#allocation2 + $0xf8] sm:$0xff]
      %v2089 = vld [vmem:[#allocation2 + $0x100] sm:$0xff]
      %v2090 = vld [vmem:[#allocation2 + $0x108] sm:$0xff]
      %v2091 = vld [vmem:[#allocation2 + $0x110] sm:$0xff]
      %v2092 = vld [vmem:[#allocation2 + $0x118] sm:$0xff]
      %v2093 = vpack.c.bf16 %v2062, %v2061
      %v2094 = vpack.c.bf16 %v2064, %v2063
      %v2095 = vpack.c.bf16 %v2066, %v2065
      %v2096 = vpack.c.bf16 %v2068, %v2067
      %v2097 = vpack.c.bf16 %v2070, %v2069
      %v2098 = vpack.c.bf16 %v2072, %v2071
      %v2099 = vpack.c.bf16 %v2074, %v2073
      %v2100 = vpack.c.bf16 %v2076, %v2075
      %v2101 = vpack.c.bf16 %v2078, %v2077
      %v2102 = vpack.c.bf16 %v2080, %v2079
      %v2103 = vpack.c.bf16 %v2082, %v2081
      %v2104 = vpack.c.bf16 %v2084, %v2083
      %v2105 = vpack.c.bf16 %v2086, %v2085
      %v2106 = vpack.c.bf16 %v2088, %v2087
      %v2107 = vpack.c.bf16 %v2090, %v2089
      %v2108 = vpack.c.bf16 %v2092, %v2091
      %s2109 = scalar_lea.vmem %s3, 8
      %v2110 = vld [vmem:[%s2109] sm:$0x7]
      %v2112 = vsel %vm707, %v2093, 0
      %v2115 = vsel %vm707, %v2094, 0
      %v2118 = vsel %vm707, %v2095, 0
      %v2121 = vsel %vm707, %v2096, 0
      %v2124 = vsel %vm707, %v2097, 0
      %v2127 = vsel %vm707, %v2098, 0
      %v2130 = vsel %vm707, %v2099, 0
      %v2133 = vsel %vm707, %v2100, 0
      %v2136 = vsel %vm707, %v2101, 0
      %v2139 = vsel %vm707, %v2102, 0
      %v2142 = vsel %vm707, %v2103, 0
      %v2145 = vsel %vm707, %v2104, 0
      %v2148 = vsel %vm707, %v2105, 0
      %v2151 = vsel %vm707, %v2106, 0
      %v2154 = vsel %vm707, %v2107, 0
      %v2157 = vsel %vm707, %v2108, 0
      %v2160 = vsel %vm1650, %v2110, 0
      %2162 = vmatpush.bf16.msra.mxu0 0
      %2163 = vmatpush.bf16.msra.mxu0 0
      %2164 = vmatpush.bf16.msra.mxu0 0
      %2165 = vmatpush.bf16.msra.mxu0 0
      %2166 = vmatpush.bf16.msra.mxu0 0
      %2167 = vmatpush.bf16.msra.mxu0 0
      %2168 = vmatpush.bf16.msra.mxu0 0
      %2169 = vmatpush.bf16.msra.mxu0 %v2160
      %2170 = vmatmul.bf16.gmra.mxu0 %v2112
      %v2171 = vpop.f32.mrf.mxu0
      %v2172 = vadd.f32 0.0, %v2171
      %v2173 = vpop.f32.mrf.mxu0
      %v2174 = vadd.f32 0.0, %v2173
      %2175 = vmatmul.bf16.gmra.mxu0 %v2115
      %v2176 = vpop.f32.mrf.mxu0
      %v2177 = vadd.f32 0.0, %v2176
      %v2178 = vpop.f32.mrf.mxu0
      %v2179 = vadd.f32 0.0, %v2178
      %2180 = vmatmul.bf16.gmra.mxu0 %v2118
      %v2181 = vpop.f32.mrf.mxu0
      %v2182 = vadd.f32 0.0, %v2181
      %v2183 = vpop.f32.mrf.mxu0
      %v2184 = vadd.f32 0.0, %v2183
      %2185 = vmatmul.bf16.gmra.mxu0 %v2121
      %v2186 = vpop.f32.mrf.mxu0
      %v2187 = vadd.f32 0.0, %v2186
      %v2188 = vpop.f32.mrf.mxu0
      %v2189 = vadd.f32 0.0, %v2188
      %2190 = vmatmul.bf16.gmra.mxu0 %v2124
      %v2191 = vpop.f32.mrf.mxu0
      %v2192 = vadd.f32 0.0, %v2191
      %v2193 = vpop.f32.mrf.mxu0
      %v2194 = vadd.f32 0.0, %v2193
      %2195 = vmatmul.bf16.gmra.mxu0 %v2127
      %v2196 = vpop.f32.mrf.mxu0
      %v2197 = vadd.f32 0.0, %v2196
      %v2198 = vpop.f32.mrf.mxu0
      %v2199 = vadd.f32 0.0, %v2198
      %2200 = vmatmul.bf16.gmra.mxu0 %v2130
      %v2201 = vpop.f32.mrf.mxu0
      %v2202 = vadd.f32 0.0, %v2201
      %v2203 = vpop.f32.mrf.mxu0
      %v2204 = vadd.f32 0.0, %v2203
      %2205 = vmatmul.bf16.gmra.mxu0 %v2133
      %v2206 = vpop.f32.mrf.mxu0
      %v2207 = vadd.f32 0.0, %v2206
      %v2208 = vpop.f32.mrf.mxu0
      %v2209 = vadd.f32 0.0, %v2208
      %2210 = vmatmul.bf16.gmra.mxu0 %v2136
      %v2211 = vpop.f32.mrf.mxu0
      %v2212 = vadd.f32 0.0, %v2211
      %v2213 = vpop.f32.mrf.mxu0
      %v2214 = vadd.f32 0.0, %v2213
      %2215 = vmatmul.bf16.gmra.mxu0 %v2139
      %v2216 = vpop.f32.mrf.mxu0
      %v2217 = vadd.f32 0.0, %v2216
      %v2218 = vpop.f32.mrf.mxu0
      %v2219 = vadd.f32 0.0, %v2218
      %2220 = vmatmul.bf16.gmra.mxu0 %v2142
      %v2221 = vpop.f32.mrf.mxu0
      %v2222 = vadd.f32 0.0, %v2221
      %v2223 = vpop.f32.mrf.mxu0
      %v2224 = vadd.f32 0.0, %v2223
      %2225 = vmatmul.bf16.gmra.mxu0 %v2145
      %v2226 = vpop.f32.mrf.mxu0
      %v2227 = vadd.f32 0.0, %v2226
      %v2228 = vpop.f32.mrf.mxu0
      %v2229 = vadd.f32 0.0, %v2228
      %2230 = vmatmul.bf16.gmra.mxu0 %v2148
      %v2231 = vpop.f32.mrf.mxu0
      %v2232 = vadd.f32 0.0, %v2231
      %v2233 = vpop.f32.mrf.mxu0
      %v2234 = vadd.f32 0.0, %v2233
      %2235 = vmatmul.bf16.gmra.mxu0 %v2151
      %v2236 = vpop.f32.mrf.mxu0
      %v2237 = vadd.f32 0.0, %v2236
      %v2238 = vpop.f32.mrf.mxu0
      %v2239 = vadd.f32 0.0, %v2238
      %2240 = vmatmul.bf16.gmra.mxu0 %v2154
      %v2241 = vpop.f32.mrf.mxu0
      %v2242 = vadd.f32 0.0, %v2241
      %v2243 = vpop.f32.mrf.mxu0
      %v2244 = vadd.f32 0.0, %v2243
      %2245 = vmatmul.bf16.gmra.mxu0 %v2157
      %v2246 = vpop.f32.mrf.mxu0
      %v2247 = vadd.f32 0.0, %v2246
      %v2248 = vpop.f32.mrf.mxu0
      %v2249 = vadd.f32 0.0, %v2248
      %2250 = vdwg.mxu0
      %v2251 = vld [vmem:[#allocation3] sm:$0xff]
      %v2252 = vld [vmem:[#allocation3 + $0x8] sm:$0xff]
      %v2253 = vld [vmem:[#allocation3 + $0x10] sm:$0xff]
      %v2254 = vld [vmem:[#allocation3 + $0x18] sm:$0xff]
      %v2255 = vld [vmem:[#allocation3 + $0x20] sm:$0xff]
      %v2256 = vld [vmem:[#allocation3 + $0x28] sm:$0xff]
      %v2257 = vld [vmem:[#allocation3 + $0x30] sm:$0xff]
      %v2258 = vld [vmem:[#allocation3 + $0x38] sm:$0xff]
      %v2259 = vld [vmem:[#allocation3 + $0x40] sm:$0xff]
      %v2260 = vld [vmem:[#allocation3 + $0x48] sm:$0xff]
      %v2261 = vld [vmem:[#allocation3 + $0x50] sm:$0xff]
      %v2262 = vld [vmem:[#allocation3 + $0x58] sm:$0xff]
      %v2263 = vld [vmem:[#allocation3 + $0x60] sm:$0xff]
      %v2264 = vld [vmem:[#allocation3 + $0x68] sm:$0xff]
      %v2265 = vld [vmem:[#allocation3 + $0x70] sm:$0xff]
      %v2266 = vld [vmem:[#allocation3 + $0x78] sm:$0xff]
      %v2267 = vld [vmem:[#allocation3 + $0x80] sm:$0xff]
      %v2268 = vld [vmem:[#allocation3 + $0x88] sm:$0xff]
      %v2269 = vld [vmem:[#allocation3 + $0x90] sm:$0xff]
      %v2270 = vld [vmem:[#allocation3 + $0x98] sm:$0xff]
      %v2271 = vld [vmem:[#allocation3 + $0xa0] sm:$0xff]
      %v2272 = vld [vmem:[#allocation3 + $0xa8] sm:$0xff]
      %v2273 = vld [vmem:[#allocation3 + $0xb0] sm:$0xff]
      %v2274 = vld [vmem:[#allocation3 + $0xb8] sm:$0xff]
      %v2275 = vld [vmem:[#allocation3 + $0xc0] sm:$0xff]
      %v2276 = vld [vmem:[#allocation3 + $0xc8] sm:$0xff]
      %v2277 = vld [vmem:[#allocation3 + $0xd0] sm:$0xff]
      %v2278 = vld [vmem:[#allocation3 + $0xd8] sm:$0xff]
      %v2279 = vld [vmem:[#allocation3 + $0xe0] sm:$0xff]
      %v2280 = vld [vmem:[#allocation3 + $0xe8] sm:$0xff]
      %v2281 = vld [vmem:[#allocation3 + $0xf0] sm:$0xff]
      %v2282 = vld [vmem:[#allocation3 + $0xf8] sm:$0xff]
      %v2283 = vadd.f32 %v2251, %v2172
      %v2284 = vadd.f32 %v2252, %v2174
      %v2285 = vadd.f32 %v2253, %v2177
      %v2286 = vadd.f32 %v2254, %v2179
      %v2287 = vadd.f32 %v2255, %v2182
      %v2288 = vadd.f32 %v2256, %v2184
      %v2289 = vadd.f32 %v2257, %v2187
      %v2290 = vadd.f32 %v2258, %v2189
      %v2291 = vadd.f32 %v2259, %v2192
      %v2292 = vadd.f32 %v2260, %v2194
      %v2293 = vadd.f32 %v2261, %v2197
      %v2294 = vadd.f32 %v2262, %v2199
      %v2295 = vadd.f32 %v2263, %v2202
      %v2296 = vadd.f32 %v2264, %v2204
      %v2297 = vadd.f32 %v2265, %v2207
      %v2298 = vadd.f32 %v2266, %v2209
      %v2299 = vadd.f32 %v2267, %v2212
      %v2300 = vadd.f32 %v2268, %v2214
      %v2301 = vadd.f32 %v2269, %v2217
      %v2302 = vadd.f32 %v2270, %v2219
      %v2303 = vadd.f32 %v2271, %v2222
      %v2304 = vadd.f32 %v2272, %v2224
      %v2305 = vadd.f32 %v2273, %v2227
      %v2306 = vadd.f32 %v2274, %v2229
      %v2307 = vadd.f32 %v2275, %v2232
      %v2308 = vadd.f32 %v2276, %v2234
      %v2309 = vadd.f32 %v2277, %v2237
      %v2310 = vadd.f32 %v2278, %v2239
      %v2311 = vadd.f32 %v2279, %v2242
      %v2312 = vadd.f32 %v2280, %v2244
      %v2313 = vadd.f32 %v2281, %v2247
      %v2314 = vadd.f32 %v2282, %v2249
      %2315 = vst.msk [vmem:[#allocation3] sm:$0xff] %vm768, %v2283
      %2316 = vst.msk [vmem:[#allocation3 + $0x8] sm:$0xff] %vm768, %v2284
      %2317 = vst.msk [vmem:[#allocation3 + $0x10] sm:$0xff] %vm768, %v2285
      %2318 = vst.msk [vmem:[#allocation3 + $0x18] sm:$0xff] %vm768, %v2286
      %2319 = vst.msk [vmem:[#allocation3 + $0x20] sm:$0xff] %vm768, %v2287
      %2320 = vst.msk [vmem:[#allocation3 + $0x28] sm:$0xff] %vm768, %v2288
      %2321 = vst.msk [vmem:[#allocation3 + $0x30] sm:$0xff] %vm768, %v2289
      %2322 = vst.msk [vmem:[#allocation3 + $0x38] sm:$0xff] %vm768, %v2290
      %2323 = vst.msk [vmem:[#allocation3 + $0x40] sm:$0xff] %vm768, %v2291
      %2324 = vst.msk [vmem:[#allocation3 + $0x48] sm:$0xff] %vm768, %v2292
      %2325 = vst.msk [vmem:[#allocation3 + $0x50] sm:$0xff] %vm768, %v2293
      %2326 = vst.msk [vmem:[#allocation3 + $0x58] sm:$0xff] %vm768, %v2294
      %2327 = vst.msk [vmem:[#allocation3 + $0x60] sm:$0xff] %vm768, %v2295
      %2328 = vst.msk [vmem:[#allocation3 + $0x68] sm:$0xff] %vm768, %v2296
      %2329 = vst.msk [vmem:[#allocation3 + $0x70] sm:$0xff] %vm768, %v2297
      %2330 = vst.msk [vmem:[#allocation3 + $0x78] sm:$0xff] %vm768, %v2298
      %2331 = vst.msk [vmem:[#allocation3 + $0x80] sm:$0xff] %vm768, %v2299
      %2332 = vst.msk [vmem:[#allocation3 + $0x88] sm:$0xff] %vm768, %v2300
      %2333 = vst.msk [vmem:[#allocation3 + $0x90] sm:$0xff] %vm768, %v2301
      %2334 = vst.msk [vmem:[#allocation3 + $0x98] sm:$0xff] %vm768, %v2302
      %2335 = vst.msk [vmem:[#allocation3 + $0xa0] sm:$0xff] %vm768, %v2303
      %2336 = vst.msk [vmem:[#allocation3 + $0xa8] sm:$0xff] %vm768, %v2304
      %2337 = vst.msk [vmem:[#allocation3 + $0xb0] sm:$0xff] %vm768, %v2305
      %2338 = vst.msk [vmem:[#allocation3 + $0xb8] sm:$0xff] %vm768, %v2306
      %2339 = vst.msk [vmem:[#allocation3 + $0xc0] sm:$0xff] %vm768, %v2307
      %2340 = vst.msk [vmem:[#allocation3 + $0xc8] sm:$0xff] %vm768, %v2308
      %2341 = vst.msk [vmem:[#allocation3 + $0xd0] sm:$0xff] %vm768, %v2309
      %2342 = vst.msk [vmem:[#allocation3 + $0xd8] sm:$0xff] %vm768, %v2310
      %2343 = vst.msk [vmem:[#allocation3 + $0xe0] sm:$0xff] %vm768, %v2311
      %2344 = vst.msk [vmem:[#allocation3 + $0xe8] sm:$0xff] %vm768, %v2312
      %2345 = vst.msk [vmem:[#allocation3 + $0xf0] sm:$0xff] %vm768, %v2313
      %2346 = vst.msk [vmem:[#allocation3 + $0xf8] sm:$0xff] %vm768, %v2314
      %v2347 = vld [vmem:[#allocation3] sm:$0xff]
      %v2348 = vld [vmem:[#allocation3 + $0x8] sm:$0xff]
      %v2349 = vld [vmem:[#allocation3 + $0x10] sm:$0xff]
      %v2350 = vld [vmem:[#allocation3 + $0x18] sm:$0xff]
      %v2351 = vld [vmem:[#allocation3 + $0x20] sm:$0xff]
      %v2352 = vld [vmem:[#allocation3 + $0x28] sm:$0xff]
      %v2353 = vld [vmem:[#allocation3 + $0x30] sm:$0xff]
      %v2354 = vld [vmem:[#allocation3 + $0x38] sm:$0xff]
      %v2355 = vld [vmem:[#allocation3 + $0x40] sm:$0xff]
      %v2356 = vld [vmem:[#allocation3 + $0x48] sm:$0xff]
      %v2357 = vld [vmem:[#allocation3 + $0x50] sm:$0xff]
      %v2358 = vld [vmem:[#allocation3 + $0x58] sm:$0xff]
      %v2359 = vld [vmem:[#allocation3 + $0x60] sm:$0xff]
      %v2360 = vld [vmem:[#allocation3 + $0x68] sm:$0xff]
      %v2361 = vld [vmem:[#allocation3 + $0x70] sm:$0xff]
      %v2362 = vld [vmem:[#allocation3 + $0x78] sm:$0xff]
      %v2363 = vld [vmem:[#allocation3 + $0x80] sm:$0xff]
      %v2364 = vld [vmem:[#allocation3 + $0x88] sm:$0xff]
      %v2365 = vld [vmem:[#allocation3 + $0x90] sm:$0xff]
      %v2366 = vld [vmem:[#allocation3 + $0x98] sm:$0xff]
      %v2367 = vld [vmem:[#allocation3 + $0xa0] sm:$0xff]
      %v2368 = vld [vmem:[#allocation3 + $0xa8] sm:$0xff]
      %v2369 = vld [vmem:[#allocation3 + $0xb0] sm:$0xff]
      %v2370 = vld [vmem:[#allocation3 + $0xb8] sm:$0xff]
      %v2371 = vld [vmem:[#allocation3 + $0xc0] sm:$0xff]
      %v2372 = vld [vmem:[#allocation3 + $0xc8] sm:$0xff]
      %v2373 = vld [vmem:[#allocation3 + $0xd0] sm:$0xff]
      %v2374 = vld [vmem:[#allocation3 + $0xd8] sm:$0xff]
      %v2375 = vld [vmem:[#allocation3 + $0xe0] sm:$0xff]
      %v2376 = vld [vmem:[#allocation3 + $0xe8] sm:$0xff]
      %v2377 = vld [vmem:[#allocation3 + $0xf0] sm:$0xff]
      %v2378 = vld [vmem:[#allocation3 + $0xf8] sm:$0xff]
      %v2379 = vld [vmem:[%s4] sm:$0x1]
      %v2381 = vperm.slane %v2379, 0
      %v2383 = vadd.f32 %v2347, %v2381
      %v2384 = vadd.f32 %v2348, %v2381
      %v2385 = vadd.f32 %v2349, %v2381
      %v2386 = vadd.f32 %v2350, %v2381
      %v2387 = vadd.f32 %v2351, %v2381
      %v2388 = vadd.f32 %v2352, %v2381
      %v2389 = vadd.f32 %v2353, %v2381
      %v2390 = vadd.f32 %v2354, %v2381
      %v2391 = vadd.f32 %v2355, %v2381
      %v2392 = vadd.f32 %v2356, %v2381
      %v2393 = vadd.f32 %v2357, %v2381
      %v2394 = vadd.f32 %v2358, %v2381
      %v2395 = vadd.f32 %v2359, %v2381
      %v2396 = vadd.f32 %v2360, %v2381
      %v2397 = vadd.f32 %v2361, %v2381
      %v2398 = vadd.f32 %v2362, %v2381
      %v2399 = vadd.f32 %v2363, %v2381
      %v2400 = vadd.f32 %v2364, %v2381
      %v2401 = vadd.f32 %v2365, %v2381
      %v2402 = vadd.f32 %v2366, %v2381
      %v2403 = vadd.f32 %v2367, %v2381
      %v2404 = vadd.f32 %v2368, %v2381
      %v2405 = vadd.f32 %v2369, %v2381
      %v2406 = vadd.f32 %v2370, %v2381
      %v2407 = vadd.f32 %v2371, %v2381
      %v2408 = vadd.f32 %v2372, %v2381
      %v2409 = vadd.f32 %v2373, %v2381
      %v2410 = vadd.f32 %v2374, %v2381
      %v2411 = vadd.f32 %v2375, %v2381
      %v2412 = vadd.f32 %v2376, %v2381
      %v2413 = vadd.f32 %v2377, %v2381
      %v2414 = vadd.f32 %v2378, %v2381
      %vm2415 = vcmp.gt.f32.partialorder %v2383, 0.0
      %vm2416 = vcmp.gt.f32.partialorder %v2384, 0.0
      %vm2417 = vcmp.gt.f32.partialorder %v2385, 0.0
      %vm2418 = vcmp.gt.f32.partialorder %v2386, 0.0
      %vm2419 = vcmp.gt.f32.partialorder %v2387, 0.0
      %vm2420 = vcmp.gt.f32.partialorder %v2388, 0.0
      %vm2421 = vcmp.gt.f32.partialorder %v2389, 0.0
      %vm2422 = vcmp.gt.f32.partialorder %v2390, 0.0
      %vm2423 = vcmp.gt.f32.partialorder %v2391, 0.0
      %vm2424 = vcmp.gt.f32.partialorder %v2392, 0.0
      %vm2425 = vcmp.gt.f32.partialorder %v2393, 0.0
      %vm2426 = vcmp.gt.f32.partialorder %v2394, 0.0
      %vm2427 = vcmp.gt.f32.partialorder %v2395, 0.0
      %vm2428 = vcmp.gt.f32.partialorder %v2396, 0.0
      %vm2429 = vcmp.gt.f32.partialorder %v2397, 0.0
      %vm2430 = vcmp.gt.f32.partialorder %v2398, 0.0
      %vm2431 = vcmp.gt.f32.partialorder %v2399, 0.0
      %vm2432 = vcmp.gt.f32.partialorder %v2400, 0.0
      %vm2433 = vcmp.gt.f32.partialorder %v2401, 0.0
      %vm2434 = vcmp.gt.f32.partialorder %v2402, 0.0
      %vm2435 = vcmp.gt.f32.partialorder %v2403, 0.0
      %vm2436 = vcmp.gt.f32.partialorder %v2404, 0.0
      %vm2437 = vcmp.gt.f32.partialorder %v2405, 0.0
      %vm2438 = vcmp.gt.f32.partialorder %v2406, 0.0
      %vm2439 = vcmp.gt.f32.partialorder %v2407, 0.0
      %vm2440 = vcmp.gt.f32.partialorder %v2408, 0.0
      %vm2441 = vcmp.gt.f32.partialorder %v2409, 0.0
      %vm2442 = vcmp.gt.f32.partialorder %v2410, 0.0
      %vm2443 = vcmp.gt.f32.partialorder %v2411, 0.0
      %vm2444 = vcmp.gt.f32.partialorder %v2412, 0.0
      %vm2445 = vcmp.gt.f32.partialorder %v2413, 0.0
      %vm2446 = vcmp.gt.f32.partialorder %v2414, 0.0
      %v2447 = vmul.f32 %v2383, 0.1
      %v2448 = vmul.f32 %v2384, 0.1
      %v2449 = vmul.f32 %v2385, 0.1
      %v2450 = vmul.f32 %v2386, 0.1
      %v2451 = vmul.f32 %v2387, 0.1
      %v2452 = vmul.f32 %v2388, 0.1
      %v2453 = vmul.f32 %v2389, 0.1
      %v2454 = vmul.f32 %v2390, 0.1
      %v2455 = vmul.f32 %v2391, 0.1
      %v2456 = vmul.f32 %v2392, 0.1
      %v2457 = vmul.f32 %v2393, 0.1
      %v2458 = vmul.f32 %v2394, 0.1
      %v2459 = vmul.f32 %v2395, 0.1
      %v2460 = vmul.f32 %v2396, 0.1
      %v2461 = vmul.f32 %v2397, 0.1
      %v2462 = vmul.f32 %v2398, 0.1
      %v2463 = vmul.f32 %v2399, 0.1
      %v2464 = vmul.f32 %v2400, 0.1
      %v2465 = vmul.f32 %v2401, 0.1
      %v2466 = vmul.f32 %v2402, 0.1
      %v2467 = vmul.f32 %v2403, 0.1
      %v2468 = vmul.f32 %v2404, 0.1
      %v2469 = vmul.f32 %v2405, 0.1
      %v2470 = vmul.f32 %v2406, 0.1
      %v2471 = vmul.f32 %v2407, 0.1
      %v2472 = vmul.f32 %v2408, 0.1
      %v2473 = vmul.f32 %v2409, 0.1
      %v2474 = vmul.f32 %v2410, 0.1
      %v2475 = vmul.f32 %v2411, 0.1
      %v2476 = vmul.f32 %v2412, 0.1
      %v2477 = vmul.f32 %v2413, 0.1
      %v2478 = vmul.f32 %v2414, 0.1
      %v2479 = vsel %vm2415, %v2383, %v2447
      %v2480 = vsel %vm2416, %v2384, %v2448
      %v2481 = vsel %vm2417, %v2385, %v2449
      %v2482 = vsel %vm2418, %v2386, %v2450
      %v2483 = vsel %vm2419, %v2387, %v2451
      %v2484 = vsel %vm2420, %v2388, %v2452
      %v2485 = vsel %vm2421, %v2389, %v2453
      %v2486 = vsel %vm2422, %v2390, %v2454
      %v2487 = vsel %vm2423, %v2391, %v2455
      %v2488 = vsel %vm2424, %v2392, %v2456
      %v2489 = vsel %vm2425, %v2393, %v2457
      %v2490 = vsel %vm2426, %v2394, %v2458
      %v2491 = vsel %vm2427, %v2395, %v2459
      %v2492 = vsel %vm2428, %v2396, %v2460
      %v2493 = vsel %vm2429, %v2397, %v2461
      %v2494 = vsel %vm2430, %v2398, %v2462
      %v2495 = vsel %vm2431, %v2399, %v2463
      %v2496 = vsel %vm2432, %v2400, %v2464
      %v2497 = vsel %vm2433, %v2401, %v2465
      %v2498 = vsel %vm2434, %v2402, %v2466
      %v2499 = vsel %vm2435, %v2403, %v2467
      %v2500 = vsel %vm2436, %v2404, %v2468
      %v2501 = vsel %vm2437, %v2405, %v2469
      %v2502 = vsel %vm2438, %v2406, %v2470
      %v2503 = vsel %vm2439, %v2407, %v2471
      %v2504 = vsel %vm2440, %v2408, %v2472
      %v2505 = vsel %vm2441, %v2409, %v2473
      %v2506 = vsel %vm2442, %v2410, %v2474
      %v2507 = vsel %vm2443, %v2411, %v2475
      %v2508 = vsel %vm2444, %v2412, %v2476
      %v2509 = vsel %vm2445, %v2413, %v2477
      %v2510 = vsel %vm2446, %v2414, %v2478
      %v2511 = vadd.f32 %v2479, %v715
      %v2512 = vadd.f32 %v2480, %v716
      %v2513 = vadd.f32 %v2481, %v717
      %v2514 = vadd.f32 %v2482, %v718
      %v2515 = vadd.f32 %v2483, %v719
      %v2516 = vadd.f32 %v2484, %v720
      %v2517 = vadd.f32 %v2485, %v721
      %v2518 = vadd.f32 %v2486, %v722
      %v2519 = vadd.f32 %v2487, %v723
      %v2520 = vadd.f32 %v2488, %v724
      %v2521 = vadd.f32 %v2489, %v725
      %v2522 = vadd.f32 %v2490, %v726
      %v2523 = vadd.f32 %v2491, %v727
      %v2524 = vadd.f32 %v2492, %v728
      %v2525 = vadd.f32 %v2493, %v729
      %v2526 = vadd.f32 %v2494, %v730
      %v2527 = vadd.f32 %v2495, %v731
      %v2528 = vadd.f32 %v2496, %v732
      %v2529 = vadd.f32 %v2497, %v733
      %v2530 = vadd.f32 %v2498, %v734
      %v2531 = vadd.f32 %v2499, %v735
      %v2532 = vadd.f32 %v2500, %v736
      %v2533 = vadd.f32 %v2501, %v737
      %v2534 = vadd.f32 %v2502, %v738
      %v2535 = vadd.f32 %v2503, %v739
      %v2536 = vadd.f32 %v2504, %v740
      %v2537 = vadd.f32 %v2505, %v741
      %v2538 = vadd.f32 %v2506, %v742
      %v2539 = vadd.f32 %v2507, %v743
      %v2540 = vadd.f32 %v2508, %v744
      %v2541 = vadd.f32 %v2509, %v745
      %v2542 = vadd.f32 %v2510, %v746
      %v2543 = vpack.c.bf16 %v2512, %v2511
      %v2544 = vpack.c.bf16 %v2514, %v2513
      %v2545 = vpack.c.bf16 %v2516, %v2515
      %v2546 = vpack.c.bf16 %v2518, %v2517
      %v2547 = vpack.c.bf16 %v2520, %v2519
      %v2548 = vpack.c.bf16 %v2522, %v2521
      %v2549 = vpack.c.bf16 %v2524, %v2523
      %v2550 = vpack.c.bf16 %v2526, %v2525
      %v2551 = vpack.c.bf16 %v2528, %v2527
      %v2552 = vpack.c.bf16 %v2530, %v2529
      %v2553 = vpack.c.bf16 %v2532, %v2531
      %v2554 = vpack.c.bf16 %v2534, %v2533
      %v2555 = vpack.c.bf16 %v2536, %v2535
      %v2556 = vpack.c.bf16 %v2538, %v2537
      %v2557 = vpack.c.bf16 %v2540, %v2539
      %v2558 = vpack.c.bf16 %v2542, %v2541
      %s2559 = scalar_lea.vmem %s1, 2
      %v2560 = vld [vmem:[%s2559] sm:$0x3]
      %s2561 = scalar_lea.vmem %s2, 1
      %v2562 = vld [vmem:[%s2561] sm:$0x1]
      %v2564 = vperm.slane %v2562, 0
      %v2567 = vsel %vm768, %v2543, 0
      %v2570 = vsel %vm768, %v2544, 0
      %v2573 = vsel %vm768, %v2545, 0
      %v2576 = vsel %vm768, %v2546, 0
      %v2579 = vsel %vm768, %v2547, 0
      %v2582 = vsel %vm768, %v2548, 0
      %v2585 = vsel %vm768, %v2549, 0
      %v2588 = vsel %vm768, %v2550, 0
      %v2591 = vsel %vm768, %v2551, 0
      %v2594 = vsel %vm768, %v2552, 0
      %v2597 = vsel %vm768, %v2553, 0
      %v2600 = vsel %vm768, %v2554, 0
      %v2603 = vsel %vm768, %v2555, 0
      %v2606 = vsel %vm768, %v2556, 0
      %v2609 = vsel %vm768, %v2557, 0
      %v2612 = vsel %vm768, %v2558, 0
      %v2615 = vsel %vm817, %v2560, 0
      %2617 = vmatpush.bf16.msra.mxu0 0
      %2618 = vmatpush.bf16.msra.mxu0 0
      %2619 = vmatpush.bf16.msra.mxu0 0
      %2620 = vmatpush.bf16.msra.mxu0 0
      %2621 = vmatpush.bf16.msra.mxu0 0
      %2622 = vmatpush.bf16.msra.mxu0 0
      %2623 = vmatpush.bf16.msra.mxu0 0
      %2624 = vmatpush.bf16.msra.mxu0 %v2615
      %2625 = vmatmul.bf16.gmra.mxu0 %v2567
      %v2626 = vpop.f32.mrf.mxu0
      %v2627 = vadd.f32 %v2564, %v2626
      %v2628 = vpop.f32.mrf.mxu0
      %v2629 = vadd.f32 %v2564, %v2628
      %2630 = vmatmul.bf16.gmra.mxu0 %v2570
      %v2631 = vpop.f32.mrf.mxu0
      %v2632 = vadd.f32 %v2564, %v2631
      %v2633 = vpop.f32.mrf.mxu0
      %v2634 = vadd.f32 %v2564, %v2633
      %2635 = vmatmul.bf16.gmra.mxu0 %v2573
      %v2636 = vpop.f32.mrf.mxu0
      %v2637 = vadd.f32 %v2564, %v2636
      %v2638 = vpop.f32.mrf.mxu0
      %v2639 = vadd.f32 %v2564, %v2638
      %2640 = vmatmul.bf16.gmra.mxu0 %v2576
      %v2641 = vpop.f32.mrf.mxu0
      %v2642 = vadd.f32 %v2564, %v2641
      %v2643 = vpop.f32.mrf.mxu0
      %v2644 = vadd.f32 %v2564, %v2643
      %2645 = vmatmul.bf16.gmra.mxu0 %v2579
      %v2646 = vpop.f32.mrf.mxu0
      %v2647 = vadd.f32 %v2564, %v2646
      %v2648 = vpop.f32.mrf.mxu0
      %v2649 = vadd.f32 %v2564, %v2648
      %2650 = vmatmul.bf16.gmra.mxu0 %v2582
      %v2651 = vpop.f32.mrf.mxu0
      %v2652 = vadd.f32 %v2564, %v2651
      %v2653 = vpop.f32.mrf.mxu0
      %v2654 = vadd.f32 %v2564, %v2653
      %2655 = vmatmul.bf16.gmra.mxu0 %v2585
      %v2656 = vpop.f32.mrf.mxu0
      %v2657 = vadd.f32 %v2564, %v2656
      %v2658 = vpop.f32.mrf.mxu0
      %v2659 = vadd.f32 %v2564, %v2658
      %2660 = vmatmul.bf16.gmra.mxu0 %v2588
      %v2661 = vpop.f32.mrf.mxu0
      %v2662 = vadd.f32 %v2564, %v2661
      %v2663 = vpop.f32.mrf.mxu0
      %v2664 = vadd.f32 %v2564, %v2663
      %2665 = vmatmul.bf16.gmra.mxu0 %v2591
      %v2666 = vpop.f32.mrf.mxu0
      %v2667 = vadd.f32 %v2564, %v2666
      %v2668 = vpop.f32.mrf.mxu0
      %v2669 = vadd.f32 %v2564, %v2668
      %2670 = vmatmul.bf16.gmra.mxu0 %v2594
      %v2671 = vpop.f32.mrf.mxu0
      %v2672 = vadd.f32 %v2564, %v2671
      %v2673 = vpop.f32.mrf.mxu0
      %v2674 = vadd.f32 %v2564, %v2673
      %2675 = vmatmul.bf16.gmra.mxu0 %v2597
      %v2676 = vpop.f32.mrf.mxu0
      %v2677 = vadd.f32 %v2564, %v2676
      %v2678 = vpop.f32.mrf.mxu0
      %v2679 = vadd.f32 %v2564, %v2678
      %2680 = vmatmul.bf16.gmra.mxu0 %v2600
      %v2681 = vpop.f32.mrf.mxu0
      %v2682 = vadd.f32 %v2564, %v2681
      %v2683 = vpop.f32.mrf.mxu0
      %v2684 = vadd.f32 %v2564, %v2683
      %2685 = vmatmul.bf16.gmra.mxu0 %v2603
      %v2686 = vpop.f32.mrf.mxu0
      %v2687 = vadd.f32 %v2564, %v2686
      %v2688 = vpop.f32.mrf.mxu0
      %v2689 = vadd.f32 %v2564, %v2688
      %2690 = vmatmul.bf16.gmra.mxu0 %v2606
      %v2691 = vpop.f32.mrf.mxu0
      %v2692 = vadd.f32 %v2564, %v2691
      %v2693 = vpop.f32.mrf.mxu0
      %v2694 = vadd.f32 %v2564, %v2693
      %2695 = vmatmul.bf16.gmra.mxu0 %v2609
      %v2696 = vpop.f32.mrf.mxu0
      %v2697 = vadd.f32 %v2564, %v2696
      %v2698 = vpop.f32.mrf.mxu0
      %v2699 = vadd.f32 %v2564, %v2698
      %2700 = vmatmul.bf16.gmra.mxu0 %v2612
      %v2701 = vpop.f32.mrf.mxu0
      %v2702 = vadd.f32 %v2564, %v2701
      %v2703 = vpop.f32.mrf.mxu0
      %v2704 = vadd.f32 %v2564, %v2703
      %2705 = vdwg.mxu0
      %vm2706 = vcmp.gt.f32.partialorder %v2627, 0.0
      %vm2707 = vcmp.gt.f32.partialorder %v2629, 0.0
      %vm2708 = vcmp.gt.f32.partialorder %v2632, 0.0
      %vm2709 = vcmp.gt.f32.partialorder %v2634, 0.0
      %vm2710 = vcmp.gt.f32.partialorder %v2637, 0.0
      %vm2711 = vcmp.gt.f32.partialorder %v2639, 0.0
      %vm2712 = vcmp.gt.f32.partialorder %v2642, 0.0
      %vm2713 = vcmp.gt.f32.partialorder %v2644, 0.0
      %vm2714 = vcmp.gt.f32.partialorder %v2647, 0.0
      %vm2715 = vcmp.gt.f32.partialorder %v2649, 0.0
      %vm2716 = vcmp.gt.f32.partialorder %v2652, 0.0
      %vm2717 = vcmp.gt.f32.partialorder %v2654, 0.0
      %vm2718 = vcmp.gt.f32.partialorder %v2657, 0.0
      %vm2719 = vcmp.gt.f32.partialorder %v2659, 0.0
      %vm2720 = vcmp.gt.f32.partialorder %v2662, 0.0
      %vm2721 = vcmp.gt.f32.partialorder %v2664, 0.0
      %vm2722 = vcmp.gt.f32.partialorder %v2667, 0.0
      %vm2723 = vcmp.gt.f32.partialorder %v2669, 0.0
      %vm2724 = vcmp.gt.f32.partialorder %v2672, 0.0
      %vm2725 = vcmp.gt.f32.partialorder %v2674, 0.0
      %vm2726 = vcmp.gt.f32.partialorder %v2677, 0.0
      %vm2727 = vcmp.gt.f32.partialorder %v2679, 0.0
      %vm2728 = vcmp.gt.f32.partialorder %v2682, 0.0
      %vm2729 = vcmp.gt.f32.partialorder %v2684, 0.0
      %vm2730 = vcmp.gt.f32.partialorder %v2687, 0.0
      %vm2731 = vcmp.gt.f32.partialorder %v2689, 0.0
      %vm2732 = vcmp.gt.f32.partialorder %v2692, 0.0
      %vm2733 = vcmp.gt.f32.partialorder %v2694, 0.0
      %vm2734 = vcmp.gt.f32.partialorder %v2697, 0.0
      %vm2735 = vcmp.gt.f32.partialorder %v2699, 0.0
      %vm2736 = vcmp.gt.f32.partialorder %v2702, 0.0
      %vm2737 = vcmp.gt.f32.partialorder %v2704, 0.0
      %v2738 = vmul.f32 %v2627, 0.1
      %v2739 = vmul.f32 %v2629, 0.1
      %v2740 = vmul.f32 %v2632, 0.1
      %v2741 = vmul.f32 %v2634, 0.1
      %v2742 = vmul.f32 %v2637, 0.1
      %v2743 = vmul.f32 %v2639, 0.1
      %v2744 = vmul.f32 %v2642, 0.1
      %v2745 = vmul.f32 %v2644, 0.1
      %v2746 = vmul.f32 %v2647, 0.1
      %v2747 = vmul.f32 %v2649, 0.1
      %v2748 = vmul.f32 %v2652, 0.1
      %v2749 = vmul.f32 %v2654, 0.1
      %v2750 = vmul.f32 %v2657, 0.1
      %v2751 = vmul.f32 %v2659, 0.1
      %v2752 = vmul.f32 %v2662, 0.1
      %v2753 = vmul.f32 %v2664, 0.1
      %v2754 = vmul.f32 %v2667, 0.1
      %v2755 = vmul.f32 %v2669, 0.1
      %v2756 = vmul.f32 %v2672, 0.1
      %v2757 = vmul.f32 %v2674, 0.1
      %v2758 = vmul.f32 %v2677, 0.1
      %v2759 = vmul.f32 %v2679, 0.1
      %v2760 = vmul.f32 %v2682, 0.1
      %v2761 = vmul.f32 %v2684, 0.1
      %v2762 = vmul.f32 %v2687, 0.1
      %v2763 = vmul.f32 %v2689, 0.1
      %v2764 = vmul.f32 %v2692, 0.1
      %v2765 = vmul.f32 %v2694, 0.1
      %v2766 = vmul.f32 %v2697, 0.1
      %v2767 = vmul.f32 %v2699, 0.1
      %v2768 = vmul.f32 %v2702, 0.1
      %v2769 = vmul.f32 %v2704, 0.1
      %v2770 = vsel %vm2706, %v2627, %v2738
      %v2771 = vsel %vm2707, %v2629, %v2739
      %v2772 = vsel %vm2708, %v2632, %v2740
      %v2773 = vsel %vm2709, %v2634, %v2741
      %v2774 = vsel %vm2710, %v2637, %v2742
      %v2775 = vsel %vm2711, %v2639, %v2743
      %v2776 = vsel %vm2712, %v2642, %v2744
      %v2777 = vsel %vm2713, %v2644, %v2745
      %v2778 = vsel %vm2714, %v2647, %v2746
      %v2779 = vsel %vm2715, %v2649, %v2747
      %v2780 = vsel %vm2716, %v2652, %v2748
      %v2781 = vsel %vm2717, %v2654, %v2749
      %v2782 = vsel %vm2718, %v2657, %v2750
      %v2783 = vsel %vm2719, %v2659, %v2751
      %v2784 = vsel %vm2720, %v2662, %v2752
      %v2785 = vsel %vm2721, %v2664, %v2753
      %v2786 = vsel %vm2722, %v2667, %v2754
      %v2787 = vsel %vm2723, %v2669, %v2755
      %v2788 = vsel %vm2724, %v2672, %v2756
      %v2789 = vsel %vm2725, %v2674, %v2757
      %v2790 = vsel %vm2726, %v2677, %v2758
      %v2791 = vsel %vm2727, %v2679, %v2759
      %v2792 = vsel %vm2728, %v2682, %v2760
      %v2793 = vsel %vm2729, %v2684, %v2761
      %v2794 = vsel %vm2730, %v2687, %v2762
      %v2795 = vsel %vm2731, %v2689, %v2763
      %v2796 = vsel %vm2732, %v2692, %v2764
      %v2797 = vsel %vm2733, %v2694, %v2765
      %v2798 = vsel %vm2734, %v2697, %v2766
      %v2799 = vsel %vm2735, %v2699, %v2767
      %v2800 = vsel %vm2736, %v2702, %v2768
      %v2801 = vsel %vm2737, %v2704, %v2769
      %v2802 = vsel %vm1038, %v2770, 0.0
      %v2803 = vsel %vm1039, %v2771, 0.0
      %v2804 = vsel %vm1040, %v2772, 0.0
      %v2805 = vsel %vm1041, %v2773, 0.0
      %v2806 = vsel %vm1042, %v2774, 0.0
      %v2807 = vsel %vm1043, %v2775, 0.0
      %v2808 = vsel %vm1044, %v2776, 0.0
      %v2809 = vsel %vm1045, %v2777, 0.0
      %v2810 = vsel %vm1046, %v2778, 0.0
      %v2811 = vsel %vm1047, %v2779, 0.0
      %v2812 = vsel %vm1048, %v2780, 0.0
      %v2813 = vsel %vm1049, %v2781, 0.0
      %v2814 = vsel %vm1050, %v2782, 0.0
      %v2815 = vsel %vm1051, %v2783, 0.0
      %v2816 = vsel %vm1052, %v2784, 0.0
      %v2817 = vsel %vm1053, %v2785, 0.0
      %v2818 = vsel %vm1054, %v2786, 0.0
      %v2819 = vsel %vm1055, %v2787, 0.0
      %v2820 = vsel %vm1056, %v2788, 0.0
      %v2821 = vsel %vm1057, %v2789, 0.0
      %v2822 = vsel %vm1058, %v2790, 0.0
      %v2823 = vsel %vm1059, %v2791, 0.0
      %v2824 = vsel %vm1060, %v2792, 0.0
      %v2825 = vsel %vm1061, %v2793, 0.0
      %v2826 = vsel %vm1062, %v2794, 0.0
      %v2827 = vsel %vm1063, %v2795, 0.0
      %v2828 = vsel %vm1064, %v2796, 0.0
      %v2829 = vsel %vm1065, %v2797, 0.0
      %v2830 = vsel %vm1066, %v2798, 0.0
      %v2831 = vsel %vm1067, %v2799, 0.0
      %v2832 = vsel %vm1068, %v2800, 0.0
      %v2833 = vsel %vm1069, %v2801, 0.0
      %2834 = vst.msk [vmem:[#allocation2 + $0x11] sm:$0xff] %vm1102, %v2802
      %2835 = vst.msk [vmem:[#allocation2 + $0x19] sm:$0xff] %vm1102, %v2803
      %2836 = vst.msk [vmem:[#allocation2 + $0x21] sm:$0xff] %vm1102, %v2804
      %2837 = vst.msk [vmem:[#allocation2 + $0x29] sm:$0xff] %vm1102, %v2805
      %2838 = vst.msk [vmem:[#allocation2 + $0x31] sm:$0xff] %vm1102, %v2806
      %2839 = vst.msk [vmem:[#allocation2 + $0x39] sm:$0xff] %vm1102, %v2807
      %2840 = vst.msk [vmem:[#allocation2 + $0x41] sm:$0xff] %vm1102, %v2808
      %2841 = vst.msk [vmem:[#allocation2 + $0x49] sm:$0xff] %vm1102, %v2809
      %2842 = vst.msk [vmem:[#allocation2 + $0x51] sm:$0xff] %vm1102, %v2810
      %2843 = vst.msk [vmem:[#allocation2 + $0x59] sm:$0xff] %vm1102, %v2811
      %2844 = vst.msk [vmem:[#allocation2 + $0x61] sm:$0xff] %vm1102, %v2812
      %2845 = vst.msk [vmem:[#allocation2 + $0x69] sm:$0xff] %vm1102, %v2813
      %2846 = vst.msk [vmem:[#allocation2 + $0x71] sm:$0xff] %vm1102, %v2814
      %2847 = vst.msk [vmem:[#allocation2 + $0x79] sm:$0xff] %vm1102, %v2815
      %2848 = vst.msk [vmem:[#allocation2 + $0x81] sm:$0xff] %vm1102, %v2816
      %2849 = vst.msk [vmem:[#allocation2 + $0x89] sm:$0xff] %vm1102, %v2817
      %2850 = vst.msk [vmem:[#allocation2 + $0x91] sm:$0xff] %vm1102, %v2818
      %2851 = vst.msk [vmem:[#allocation2 + $0x99] sm:$0xff] %vm1102, %v2819
      %2852 = vst.msk [vmem:[#allocation2 + $0xa1] sm:$0xff] %vm1102, %v2820
      %2853 = vst.msk [vmem:[#allocation2 + $0xa9] sm:$0xff] %vm1102, %v2821
      %2854 = vst.msk [vmem:[#allocation2 + $0xb1] sm:$0xff] %vm1102, %v2822
      %2855 = vst.msk [vmem:[#allocation2 + $0xb9] sm:$0xff] %vm1102, %v2823
      %2856 = vst.msk [vmem:[#allocation2 + $0xc1] sm:$0xff] %vm1102, %v2824
      %2857 = vst.msk [vmem:[#allocation2 + $0xc9] sm:$0xff] %vm1102, %v2825
      %2858 = vst.msk [vmem:[#allocation2 + $0xd1] sm:$0xff] %vm1102, %v2826
      %2859 = vst.msk [vmem:[#allocation2 + $0xd9] sm:$0xff] %vm1102, %v2827
      %2860 = vst.msk [vmem:[#allocation2 + $0xe1] sm:$0xff] %vm1102, %v2828
      %2861 = vst.msk [vmem:[#allocation2 + $0xe9] sm:$0xff] %vm1102, %v2829
      %2862 = vst.msk [vmem:[#allocation2 + $0xf1] sm:$0xff] %vm1102, %v2830
      %2863 = vst.msk [vmem:[#allocation2 + $0xf9] sm:$0xff] %vm1102, %v2831
      %2864 = vst.msk [vmem:[#allocation2 + $0x101] sm:$0xff] %vm1102, %v2832
      %2865 = vst.msk [vmem:[#allocation2 + $0x109] sm:$0xff] %vm1102, %v2833
      %2898 = vrot.lane.b32.xlu0 %v2770, 2
      %v2899 = vpop.permute.xlu0 %2898
      %2900 = vrot.lane.b32.xlu0 %v2771, 2
      %v2901 = vpop.permute.xlu0 %2900
      %2902 = vrot.lane.b32.xlu0 %v2772, 2
      %v2903 = vpop.permute.xlu0 %2902
      %2904 = vrot.lane.b32.xlu0 %v2773, 2
      %v2905 = vpop.permute.xlu0 %2904
      %2906 = vrot.lane.b32.xlu0 %v2774, 2
      %v2907 = vpop.permute.xlu0 %2906
      %2908 = vrot.lane.b32.xlu0 %v2775, 2
      %v2909 = vpop.permute.xlu0 %2908
      %2910 = vrot.lane.b32.xlu0 %v2776, 2
      %v2911 = vpop.permute.xlu0 %2910
      %2912 = vrot.lane.b32.xlu0 %v2777, 2
      %v2913 = vpop.permute.xlu0 %2912
      %2914 = vrot.lane.b32.xlu0 %v2778, 2
      %v2915 = vpop.permute.xlu0 %2914
      %2916 = vrot.lane.b32.xlu0 %v2779, 2
      %v2917 = vpop.permute.xlu0 %2916
      %2918 = vrot.lane.b32.xlu0 %v2780, 2
      %v2919 = vpop.permute.xlu0 %2918
      %2920 = vrot.lane.b32.xlu0 %v2781, 2
      %v2921 = vpop.permute.xlu0 %2920
      %2922 = vrot.lane.b32.xlu0 %v2782, 2
      %v2923 = vpop.permute.xlu0 %2922
      %2924 = vrot.lane.b32.xlu0 %v2783, 2
      %v2925 = vpop.permute.xlu0 %2924
      %2926 = vrot.lane.b32.xlu0 %v2784, 2
      %v2927 = vpop.permute.xlu0 %2926
      %2928 = vrot.lane.b32.xlu0 %v2785, 2
      %v2929 = vpop.permute.xlu0 %2928
      %2930 = vrot.lane.b32.xlu0 %v2786, 2
      %v2931 = vpop.permute.xlu0 %2930
      %2932 = vrot.lane.b32.xlu0 %v2787, 2
      %v2933 = vpop.permute.xlu0 %2932
      %2934 = vrot.lane.b32.xlu0 %v2788, 2
      %v2935 = vpop.permute.xlu0 %2934
      %2936 = vrot.lane.b32.xlu0 %v2789, 2
      %v2937 = vpop.permute.xlu0 %2936
      %2938 = vrot.lane.b32.xlu0 %v2790, 2
      %v2939 = vpop.permute.xlu0 %2938
      %2940 = vrot.lane.b32.xlu0 %v2791, 2
      %v2941 = vpop.permute.xlu0 %2940
      %2942 = vrot.lane.b32.xlu0 %v2792, 2
      %v2943 = vpop.permute.xlu0 %2942
      %2944 = vrot.lane.b32.xlu0 %v2793, 2
      %v2945 = vpop.permute.xlu0 %2944
      %2946 = vrot.lane.b32.xlu0 %v2794, 2
      %v2947 = vpop.permute.xlu0 %2946
      %2948 = vrot.lane.b32.xlu0 %v2795, 2
      %v2949 = vpop.permute.xlu0 %2948
      %2950 = vrot.lane.b32.xlu0 %v2796, 2
      %v2951 = vpop.permute.xlu0 %2950
      %2952 = vrot.lane.b32.xlu0 %v2797, 2
      %v2953 = vpop.permute.xlu0 %2952
      %2954 = vrot.lane.b32.xlu0 %v2798, 2
      %v2955 = vpop.permute.xlu0 %2954
      %2956 = vrot.lane.b32.xlu0 %v2799, 2
      %v2957 = vpop.permute.xlu0 %2956
      %2958 = vrot.lane.b32.xlu0 %v2800, 2
      %v2959 = vpop.permute.xlu0 %2958
      %2960 = vrot.lane.b32.xlu0 %v2801, 2
      %v2961 = vpop.permute.xlu0 %2960
      %2994 = vst.msk [vmem:[#allocation2 + $0x10] sm:$0xff] %vm1263, %v2899
      %2995 = vst.msk [vmem:[#allocation2 + $0x18] sm:$0xff] %vm1263, %v2901
      %2996 = vst.msk [vmem:[#allocation2 + $0x20] sm:$0xff] %vm1263, %v2903
      %2997 = vst.msk [vmem:[#allocation2 + $0x28] sm:$0xff] %vm1263, %v2905
      %2998 = vst.msk [vmem:[#allocation2 + $0x30] sm:$0xff] %vm1263, %v2907
      %2999 = vst.msk [vmem:[#allocation2 + $0x38] sm:$0xff] %vm1263, %v2909
      %3000 = vst.msk [vmem:[#allocation2 + $0x40] sm:$0xff] %vm1263, %v2911
      %3001 = vst.msk [vmem:[#allocation2 + $0x48] sm:$0xff] %vm1263, %v2913
      %3002 = vst.msk [vmem:[#allocation2 + $0x50] sm:$0xff] %vm1263, %v2915
      %3003 = vst.msk [vmem:[#allocation2 + $0x58] sm:$0xff] %vm1263, %v2917
      %3004 = vst.msk [vmem:[#allocation2 + $0x60] sm:$0xff] %vm1263, %v2919
      %3005 = vst.msk [vmem:[#allocation2 + $0x68] sm:$0xff] %vm1263, %v2921
      %3006 = vst.msk [vmem:[#allocation2 + $0x70] sm:$0xff] %vm1263, %v2923
      %3007 = vst.msk [vmem:[#allocation2 + $0x78] sm:$0xff] %vm1263, %v2925
      %3008 = vst.msk [vmem:[#allocation2 + $0x80] sm:$0xff] %vm1263, %v2927
      %3009 = vst.msk [vmem:[#allocation2 + $0x88] sm:$0xff] %vm1263, %v2929
      %3010 = vst.msk [vmem:[#allocation2 + $0x90] sm:$0xff] %vm1263, %v2931
      %3011 = vst.msk [vmem:[#allocation2 + $0x98] sm:$0xff] %vm1263, %v2933
      %3012 = vst.msk [vmem:[#allocation2 + $0xa0] sm:$0xff] %vm1263, %v2935
      %3013 = vst.msk [vmem:[#allocation2 + $0xa8] sm:$0xff] %vm1263, %v2937
      %3014 = vst.msk [vmem:[#allocation2 + $0xb0] sm:$0xff] %vm1263, %v2939
      %3015 = vst.msk [vmem:[#allocation2 + $0xb8] sm:$0xff] %vm1263, %v2941
      %3016 = vst.msk [vmem:[#allocation2 + $0xc0] sm:$0xff] %vm1263, %v2943
      %3017 = vst.msk [vmem:[#allocation2 + $0xc8] sm:$0xff] %vm1263, %v2945
      %3018 = vst.msk [vmem:[#allocation2 + $0xd0] sm:$0xff] %vm1263, %v2947
      %3019 = vst.msk [vmem:[#allocation2 + $0xd8] sm:$0xff] %vm1263, %v2949
      %3020 = vst.msk [vmem:[#allocation2 + $0xe0] sm:$0xff] %vm1263, %v2951
      %3021 = vst.msk [vmem:[#allocation2 + $0xe8] sm:$0xff] %vm1263, %v2953
      %3022 = vst.msk [vmem:[#allocation2 + $0xf0] sm:$0xff] %vm1263, %v2955
      %3023 = vst.msk [vmem:[#allocation2 + $0xf8] sm:$0xff] %vm1263, %v2957
      %3024 = vst.msk [vmem:[#allocation2 + $0x100] sm:$0xff] %vm1263, %v2959
      %3025 = vst.msk [vmem:[#allocation2 + $0x108] sm:$0xff] %vm1263, %v2961
      %v3026 = vsel %vm1328, %v2770, 0.0
      %v3027 = vsel %vm1329, %v2771, 0.0
      %v3028 = vsel %vm1330, %v2772, 0.0
      %v3029 = vsel %vm1331, %v2773, 0.0
      %v3030 = vsel %vm1332, %v2774, 0.0
      %v3031 = vsel %vm1333, %v2775, 0.0
      %v3032 = vsel %vm1334, %v2776, 0.0
      %v3033 = vsel %vm1335, %v2777, 0.0
      %v3034 = vsel %vm1336, %v2778, 0.0
      %v3035 = vsel %vm1337, %v2779, 0.0
      %v3036 = vsel %vm1338, %v2780, 0.0
      %v3037 = vsel %vm1339, %v2781, 0.0
      %v3038 = vsel %vm1340, %v2782, 0.0
      %v3039 = vsel %vm1341, %v2783, 0.0
      %v3040 = vsel %vm1342, %v2784, 0.0
      %v3041 = vsel %vm1343, %v2785, 0.0
      %v3042 = vsel %vm1344, %v2786, 0.0
      %v3043 = vsel %vm1345, %v2787, 0.0
      %v3044 = vsel %vm1346, %v2788, 0.0
      %v3045 = vsel %vm1347, %v2789, 0.0
      %v3046 = vsel %vm1348, %v2790, 0.0
      %v3047 = vsel %vm1349, %v2791, 0.0
      %v3048 = vsel %vm1350, %v2792, 0.0
      %v3049 = vsel %vm1351, %v2793, 0.0
      %v3050 = vsel %vm1352, %v2794, 0.0
      %v3051 = vsel %vm1353, %v2795, 0.0
      %v3052 = vsel %vm1354, %v2796, 0.0
      %v3053 = vsel %vm1355, %v2797, 0.0
      %v3054 = vsel %vm1356, %v2798, 0.0
      %v3055 = vsel %vm1357, %v2799, 0.0
      %v3056 = vsel %vm1358, %v2800, 0.0
      %v3057 = vsel %vm1359, %v2801, 0.0
      %3090 = vrot.lane.b32.xlu0 %v3026, 4
      %v3091 = vpop.permute.xlu0 %3090
      %3092 = vrot.lane.b32.xlu0 %v3027, 4
      %v3093 = vpop.permute.xlu0 %3092
      %3094 = vrot.lane.b32.xlu0 %v3028, 4
      %v3095 = vpop.permute.xlu0 %3094
      %3096 = vrot.lane.b32.xlu0 %v3029, 4
      %v3097 = vpop.permute.xlu0 %3096
      %3098 = vrot.lane.b32.xlu0 %v3030, 4
      %v3099 = vpop.permute.xlu0 %3098
      %3100 = vrot.lane.b32.xlu0 %v3031, 4
      %v3101 = vpop.permute.xlu0 %3100
      %3102 = vrot.lane.b32.xlu0 %v3032, 4
      %v3103 = vpop.permute.xlu0 %3102
      %3104 = vrot.lane.b32.xlu0 %v3033, 4
      %v3105 = vpop.permute.xlu0 %3104
      %3106 = vrot.lane.b32.xlu0 %v3034, 4
      %v3107 = vpop.permute.xlu0 %3106
      %3108 = vrot.lane.b32.xlu0 %v3035, 4
      %v3109 = vpop.permute.xlu0 %3108
      %3110 = vrot.lane.b32.xlu0 %v3036, 4
      %v3111 = vpop.permute.xlu0 %3110
      %3112 = vrot.lane.b32.xlu0 %v3037, 4
      %v3113 = vpop.permute.xlu0 %3112
      %3114 = vrot.lane.b32.xlu0 %v3038, 4
      %v3115 = vpop.permute.xlu0 %3114
      %3116 = vrot.lane.b32.xlu0 %v3039, 4
      %v3117 = vpop.permute.xlu0 %3116
      %3118 = vrot.lane.b32.xlu0 %v3040, 4
      %v3119 = vpop.permute.xlu0 %3118
      %3120 = vrot.lane.b32.xlu0 %v3041, 4
      %v3121 = vpop.permute.xlu0 %3120
      %3122 = vrot.lane.b32.xlu0 %v3042, 4
      %v3123 = vpop.permute.xlu0 %3122
      %3124 = vrot.lane.b32.xlu0 %v3043, 4
      %v3125 = vpop.permute.xlu0 %3124
      %3126 = vrot.lane.b32.xlu0 %v3044, 4
      %v3127 = vpop.permute.xlu0 %3126
      %3128 = vrot.lane.b32.xlu0 %v3045, 4
      %v3129 = vpop.permute.xlu0 %3128
      %3130 = vrot.lane.b32.xlu0 %v3046, 4
      %v3131 = vpop.permute.xlu0 %3130
      %3132 = vrot.lane.b32.xlu0 %v3047, 4
      %v3133 = vpop.permute.xlu0 %3132
      %3134 = vrot.lane.b32.xlu0 %v3048, 4
      %v3135 = vpop.permute.xlu0 %3134
      %3136 = vrot.lane.b32.xlu0 %v3049, 4
      %v3137 = vpop.permute.xlu0 %3136
      %3138 = vrot.lane.b32.xlu0 %v3050, 4
      %v3139 = vpop.permute.xlu0 %3138
      %3140 = vrot.lane.b32.xlu0 %v3051, 4
      %v3141 = vpop.permute.xlu0 %3140
      %3142 = vrot.lane.b32.xlu0 %v3052, 4
      %v3143 = vpop.permute.xlu0 %3142
      %3144 = vrot.lane.b32.xlu0 %v3053, 4
      %v3145 = vpop.permute.xlu0 %3144
      %3146 = vrot.lane.b32.xlu0 %v3054, 4
      %v3147 = vpop.permute.xlu0 %3146
      %3148 = vrot.lane.b32.xlu0 %v3055, 4
      %v3149 = vpop.permute.xlu0 %3148
      %3150 = vrot.lane.b32.xlu0 %v3056, 4
      %v3151 = vpop.permute.xlu0 %3150
      %3152 = vrot.lane.b32.xlu0 %v3057, 4
      %v3153 = vpop.permute.xlu0 %3152
      %3186 = vst.msk [vmem:[#allocation2 + $0xf] sm:$0xff] %vm1520, %v3091
      %3187 = vst.msk [vmem:[#allocation2 + $0x17] sm:$0xff] %vm1520, %v3093
      %3188 = vst.msk [vmem:[#allocation2 + $0x1f] sm:$0xff] %vm1520, %v3095
      %3189 = vst.msk [vmem:[#allocation2 + $0x27] sm:$0xff] %vm1520, %v3097
      %3190 = vst.msk [vmem:[#allocation2 + $0x2f] sm:$0xff] %vm1520, %v3099
      %3191 = vst.msk [vmem:[#allocation2 + $0x37] sm:$0xff] %vm1520, %v3101
      %3192 = vst.msk [vmem:[#allocation2 + $0x3f] sm:$0xff] %vm1520, %v3103
      %3193 = vst.msk [vmem:[#allocation2 + $0x47] sm:$0xff] %vm1520, %v3105
      %3194 = vst.msk [vmem:[#allocation2 + $0x4f] sm:$0xff] %vm1520, %v3107
      %3195 = vst.msk [vmem:[#allocation2 + $0x57] sm:$0xff] %vm1520, %v3109
      %3196 = vst.msk [vmem:[#allocation2 + $0x5f] sm:$0xff] %vm1520, %v3111
      %3197 = vst.msk [vmem:[#allocation2 + $0x67] sm:$0xff] %vm1520, %v3113
      %3198 = vst.msk [vmem:[#allocation2 + $0x6f] sm:$0xff] %vm1520, %v3115
      %3199 = vst.msk [vmem:[#allocation2 + $0x77] sm:$0xff] %vm1520, %v3117
      %3200 = vst.msk [vmem:[#allocation2 + $0x7f] sm:$0xff] %vm1520, %v3119
      %3201 = vst.msk [vmem:[#allocation2 + $0x87] sm:$0xff] %vm1520, %v3121
      %3202 = vst.msk [vmem:[#allocation2 + $0x8f] sm:$0xff] %vm1520, %v3123
      %3203 = vst.msk [vmem:[#allocation2 + $0x97] sm:$0xff] %vm1520, %v3125
      %3204 = vst.msk [vmem:[#allocation2 + $0x9f] sm:$0xff] %vm1520, %v3127
      %3205 = vst.msk [vmem:[#allocation2 + $0xa7] sm:$0xff] %vm1520, %v3129
      %3206 = vst.msk [vmem:[#allocation2 + $0xaf] sm:$0xff] %vm1520, %v3131
      %3207 = vst.msk [vmem:[#allocation2 + $0xb7] sm:$0xff] %vm1520, %v3133
      %3208 = vst.msk [vmem:[#allocation2 + $0xbf] sm:$0xff] %vm1520, %v3135
      %3209 = vst.msk [vmem:[#allocation2 + $0xc7] sm:$0xff] %vm1520, %v3137
      %3210 = vst.msk [vmem:[#allocation2 + $0xcf] sm:$0xff] %vm1520, %v3139
      %3211 = vst.msk [vmem:[#allocation2 + $0xd7] sm:$0xff] %vm1520, %v3141
      %3212 = vst.msk [vmem:[#allocation2 + $0xdf] sm:$0xff] %vm1520, %v3143
      %3213 = vst.msk [vmem:[#allocation2 + $0xe7] sm:$0xff] %vm1520, %v3145
      %3214 = vst.msk [vmem:[#allocation2 + $0xef] sm:$0xff] %vm1520, %v3147
      %3215 = vst.msk [vmem:[#allocation2 + $0xf7] sm:$0xff] %vm1520, %v3149
      %3216 = vst.msk [vmem:[#allocation2 + $0xff] sm:$0xff] %vm1520, %v3151
      %3217 = vst.msk [vmem:[#allocation2 + $0x107] sm:$0xff] %vm1520, %v3153
      %v3218 = vld [vmem:[#allocation2] sm:$0xff]
      %v3219 = vld [vmem:[#allocation2 + $0x8] sm:$0xff]
      %v3220 = vld [vmem:[#allocation2 + $0x10] sm:$0xff]
      %v3221 = vld [vmem:[#allocation2 + $0x18] sm:$0xff]
      %v3222 = vld [vmem:[#allocation2 + $0x20] sm:$0xff]
      %v3223 = vld [vmem:[#allocation2 + $0x28] sm:$0xff]
      %v3224 = vld [vmem:[#allocation2 + $0x30] sm:$0xff]
      %v3225 = vld [vmem:[#allocation2 + $0x38] sm:$0xff]
      %v3226 = vld [vmem:[#allocation2 + $0x40] sm:$0xff]
      %v3227 = vld [vmem:[#allocation2 + $0x48] sm:$0xff]
      %v3228 = vld [vmem:[#allocation2 + $0x50] sm:$0xff]
      %v3229 = vld [vmem:[#allocation2 + $0x58] sm:$0xff]
      %v3230 = vld [vmem:[#allocation2 + $0x60] sm:$0xff]
      %v3231 = vld [vmem:[#allocation2 + $0x68] sm:$0xff]
      %v3232 = vld [vmem:[#allocation2 + $0x70] sm:$0xff]
      %v3233 = vld [vmem:[#allocation2 + $0x78] sm:$0xff]
      %v3234 = vld [vmem:[#allocation2 + $0x80] sm:$0xff]
      %v3235 = vld [vmem:[#allocation2 + $0x88] sm:$0xff]
      %v3236 = vld [vmem:[#allocation2 + $0x90] sm:$0xff]
      %v3237 = vld [vmem:[#allocation2 + $0x98] sm:$0xff]
      %v3238 = vld [vmem:[#allocation2 + $0xa0] sm:$0xff]
      %v3239 = vld [vmem:[#allocation2 + $0xa8] sm:$0xff]
      %v3240 = vld [vmem:[#allocation2 + $0xb0] sm:$0xff]
      %v3241 = vld [vmem:[#allocation2 + $0xb8] sm:$0xff]
      %v3242 = vld [vmem:[#allocation2 + $0xc0] sm:$0xff]
      %v3243 = vld [vmem:[#allocation2 + $0xc8] sm:$0xff]
      %v3244 = vld [vmem:[#allocation2 + $0xd0] sm:$0xff]
      %v3245 = vld [vmem:[#allocation2 + $0xd8] sm:$0xff]
      %v3246 = vld [vmem:[#allocation2 + $0xe0] sm:$0xff]
      %v3247 = vld [vmem:[#allocation2 + $0xe8] sm:$0xff]
      %v3248 = vld [vmem:[#allocation2 + $0xf0] sm:$0xff]
      %v3249 = vld [vmem:[#allocation2 + $0xf8] sm:$0xff]
      %v3250 = vpack.c.bf16 %v3219, %v3218
      %v3251 = vpack.c.bf16 %v3221, %v3220
      %v3252 = vpack.c.bf16 %v3223, %v3222
      %v3253 = vpack.c.bf16 %v3225, %v3224
      %v3254 = vpack.c.bf16 %v3227, %v3226
      %v3255 = vpack.c.bf16 %v3229, %v3228
      %v3256 = vpack.c.bf16 %v3231, %v3230
      %v3257 = vpack.c.bf16 %v3233, %v3232
      %v3258 = vpack.c.bf16 %v3235, %v3234
      %v3259 = vpack.c.bf16 %v3237, %v3236
      %v3260 = vpack.c.bf16 %v3239, %v3238
      %v3261 = vpack.c.bf16 %v3241, %v3240
      %v3262 = vpack.c.bf16 %v3243, %v3242
      %v3263 = vpack.c.bf16 %v3245, %v3244
      %v3264 = vpack.c.bf16 %v3247, %v3246
      %v3265 = vpack.c.bf16 %v3249, %v3248
      %s3266 = scalar_lea.vmem %s3, 12
      %v3267 = vld [vmem:[%s3266] sm:$0x7]
      %v3269 = vsel %vm707, %v3250, 0
      %v3272 = vsel %vm707, %v3251, 0
      %v3275 = vsel %vm707, %v3252, 0
      %v3278 = vsel %vm707, %v3253, 0
      %v3281 = vsel %vm707, %v3254, 0
      %v3284 = vsel %vm707, %v3255, 0
      %v3287 = vsel %vm707, %v3256, 0
      %v3290 = vsel %vm707, %v3257, 0
      %v3293 = vsel %vm707, %v3258, 0
      %v3296 = vsel %vm707, %v3259, 0
      %v3299 = vsel %vm707, %v3260, 0
      %v3302 = vsel %vm707, %v3261, 0
      %v3305 = vsel %vm707, %v3262, 0
      %v3308 = vsel %vm707, %v3263, 0
      %v3311 = vsel %vm707, %v3264, 0
      %v3314 = vsel %vm707, %v3265, 0
      %v3317 = vsel %vm1650, %v3267, 0
      %3319 = vmatpush.bf16.msra.mxu0 0
      %3320 = vmatpush.bf16.msra.mxu0 0
      %3321 = vmatpush.bf16.msra.mxu0 0
      %3322 = vmatpush.bf16.msra.mxu0 0
      %3323 = vmatpush.bf16.msra.mxu0 0
      %3324 = vmatpush.bf16.msra.mxu0 0
      %3325 = vmatpush.bf16.msra.mxu0 0
      %3326 = vmatpush.bf16.msra.mxu0 %v3317
      %3327 = vmatmul.bf16.gmra.mxu0 %v3269
      %v3328 = vpop.f32.mrf.mxu0
      %v3329 = vadd.f32 0.0, %v3328
      %v3330 = vpop.f32.mrf.mxu0
      %v3331 = vadd.f32 0.0, %v3330
      %3332 = vmatmul.bf16.gmra.mxu0 %v3272
      %v3333 = vpop.f32.mrf.mxu0
      %v3334 = vadd.f32 0.0, %v3333
      %v3335 = vpop.f32.mrf.mxu0
      %v3336 = vadd.f32 0.0, %v3335
      %3337 = vmatmul.bf16.gmra.mxu0 %v3275
      %v3338 = vpop.f32.mrf.mxu0
      %v3339 = vadd.f32 0.0, %v3338
      %v3340 = vpop.f32.mrf.mxu0
      %v3341 = vadd.f32 0.0, %v3340
      %3342 = vmatmul.bf16.gmra.mxu0 %v3278
      %v3343 = vpop.f32.mrf.mxu0
      %v3344 = vadd.f32 0.0, %v3343
      %v3345 = vpop.f32.mrf.mxu0
      %v3346 = vadd.f32 0.0, %v3345
      %3347 = vmatmul.bf16.gmra.mxu0 %v3281
      %v3348 = vpop.f32.mrf.mxu0
      %v3349 = vadd.f32 0.0, %v3348
      %v3350 = vpop.f32.mrf.mxu0
      %v3351 = vadd.f32 0.0, %v3350
      %3352 = vmatmul.bf16.gmra.mxu0 %v3284
      %v3353 = vpop.f32.mrf.mxu0
      %v3354 = vadd.f32 0.0, %v3353
      %v3355 = vpop.f32.mrf.mxu0
      %v3356 = vadd.f32 0.0, %v3355
      %3357 = vmatmul.bf16.gmra.mxu0 %v3287
      %v3358 = vpop.f32.mrf.mxu0
      %v3359 = vadd.f32 0.0, %v3358
      %v3360 = vpop.f32.mrf.mxu0
      %v3361 = vadd.f32 0.0, %v3360
      %3362 = vmatmul.bf16.gmra.mxu0 %v3290
      %v3363 = vpop.f32.mrf.mxu0
      %v3364 = vadd.f32 0.0, %v3363
      %v3365 = vpop.f32.mrf.mxu0
      %v3366 = vadd.f32 0.0, %v3365
      %3367 = vmatmul.bf16.gmra.mxu0 %v3293
      %v3368 = vpop.f32.mrf.mxu0
      %v3369 = vadd.f32 0.0, %v3368
      %v3370 = vpop.f32.mrf.mxu0
      %v3371 = vadd.f32 0.0, %v3370
      %3372 = vmatmul.bf16.gmra.mxu0 %v3296
      %v3373 = vpop.f32.mrf.mxu0
      %v3374 = vadd.f32 0.0, %v3373
      %v3375 = vpop.f32.mrf.mxu0
      %v3376 = vadd.f32 0.0, %v3375
      %3377 = vmatmul.bf16.gmra.mxu0 %v3299
      %v3378 = vpop.f32.mrf.mxu0
      %v3379 = vadd.f32 0.0, %v3378
      %v3380 = vpop.f32.mrf.mxu0
      %v3381 = vadd.f32 0.0, %v3380
      %3382 = vmatmul.bf16.gmra.mxu0 %v3302
      %v3383 = vpop.f32.mrf.mxu0
      %v3384 = vadd.f32 0.0, %v3383
      %v3385 = vpop.f32.mrf.mxu0
      %v3386 = vadd.f32 0.0, %v3385
      %3387 = vmatmul.bf16.gmra.mxu0 %v3305
      %v3388 = vpop.f32.mrf.mxu0
      %v3389 = vadd.f32 0.0, %v3388
      %v3390 = vpop.f32.mrf.mxu0
      %v3391 = vadd.f32 0.0, %v3390
      %3392 = vmatmul.bf16.gmra.mxu0 %v3308
      %v3393 = vpop.f32.mrf.mxu0
      %v3394 = vadd.f32 0.0, %v3393
      %v3395 = vpop.f32.mrf.mxu0
      %v3396 = vadd.f32 0.0, %v3395
      %3397 = vmatmul.bf16.gmra.mxu0 %v3311
      %v3398 = vpop.f32.mrf.mxu0
      %v3399 = vadd.f32 0.0, %v3398
      %v3400 = vpop.f32.mrf.mxu0
      %v3401 = vadd.f32 0.0, %v3400
      %3402 = vmatmul.bf16.gmra.mxu0 %v3314
      %v3403 = vpop.f32.mrf.mxu0
      %v3404 = vadd.f32 0.0, %v3403
      %v3405 = vpop.f32.mrf.mxu0
      %v3406 = vadd.f32 0.0, %v3405
      %3407 = vdwg.mxu0
      %3408 = vst.msk [vmem:[#allocation3] sm:$0xff] %vm768, %v3329
      %3409 = vst.msk [vmem:[#allocation3 + $0x8] sm:$0xff] %vm768, %v3331
      %3410 = vst.msk [vmem:[#allocation3 + $0x10] sm:$0xff] %vm768, %v3334
      %3411 = vst.msk [vmem:[#allocation3 + $0x18] sm:$0xff] %vm768, %v3336
      %3412 = vst.msk [vmem:[#allocation3 + $0x20] sm:$0xff] %vm768, %v3339
      %3413 = vst.msk [vmem:[#allocation3 + $0x28] sm:$0xff] %vm768, %v3341
      %3414 = vst.msk [vmem:[#allocation3 + $0x30] sm:$0xff] %vm768, %v3344
      %3415 = vst.msk [vmem:[#allocation3 + $0x38] sm:$0xff] %vm768, %v3346
      %3416 = vst.msk [vmem:[#allocation3 + $0x40] sm:$0xff] %vm768, %v3349
      %3417 = vst.msk [vmem:[#allocation3 + $0x48] sm:$0xff] %vm768, %v3351
      %3418 = vst.msk [vmem:[#allocation3 + $0x50] sm:$0xff] %vm768, %v3354
      %3419 = vst.msk [vmem:[#allocation3 + $0x58] sm:$0xff] %vm768, %v3356
      %3420 = vst.msk [vmem:[#allocation3 + $0x60] sm:$0xff] %vm768, %v3359
      %3421 = vst.msk [vmem:[#allocation3 + $0x68] sm:$0xff] %vm768, %v3361
      %3422 = vst.msk [vmem:[#allocation3 + $0x70] sm:$0xff] %vm768, %v3364
      %3423 = vst.msk [vmem:[#allocation3 + $0x78] sm:$0xff] %vm768, %v3366
      %3424 = vst.msk [vmem:[#allocation3 + $0x80] sm:$0xff] %vm768, %v3369
      %3425 = vst.msk [vmem:[#allocation3 + $0x88] sm:$0xff] %vm768, %v3371
      %3426 = vst.msk [vmem:[#allocation3 + $0x90] sm:$0xff] %vm768, %v3374
      %3427 = vst.msk [vmem:[#allocation3 + $0x98] sm:$0xff] %vm768, %v3376
      %3428 = vst.msk [vmem:[#allocation3 + $0xa0] sm:$0xff] %vm768, %v3379
      %3429 = vst.msk [vmem:[#allocation3 + $0xa8] sm:$0xff] %vm768, %v3381
      %3430 = vst.msk [vmem:[#allocation3 + $0xb0] sm:$0xff] %vm768, %v3384
      %3431 = vst.msk [vmem:[#allocation3 + $0xb8] sm:$0xff] %vm768, %v3386
      %3432 = vst.msk [vmem:[#allocation3 + $0xc0] sm:$0xff] %vm768, %v3389
      %3433 = vst.msk [vmem:[#allocation3 + $0xc8] sm:$0xff] %vm768, %v3391
      %3434 = vst.msk [vmem:[#allocation3 + $0xd0] sm:$0xff] %vm768, %v3394
      %3435 = vst.msk [vmem:[#allocation3 + $0xd8] sm:$0xff] %vm768, %v3396
      %3436 = vst.msk [vmem:[#allocation3 + $0xe0] sm:$0xff] %vm768, %v3399
      %3437 = vst.msk [vmem:[#allocation3 + $0xe8] sm:$0xff] %vm768, %v3401
      %3438 = vst.msk [vmem:[#allocation3 + $0xf0] sm:$0xff] %vm768, %v3404
      %3439 = vst.msk [vmem:[#allocation3 + $0xf8] sm:$0xff] %vm768, %v3406
      %v3440 = vld [vmem:[#allocation2 + $0x10] sm:$0xff]
      %v3441 = vld [vmem:[#allocation2 + $0x18] sm:$0xff]
      %v3442 = vld [vmem:[#allocation2 + $0x20] sm:$0xff]
      %v3443 = vld [vmem:[#allocation2 + $0x28] sm:$0xff]
      %v3444 = vld [vmem:[#allocation2 + $0x30] sm:$0xff]
      %v3445 = vld [vmem:[#allocation2 + $0x38] sm:$0xff]
      %v3446 = vld [vmem:[#allocation2 + $0x40] sm:$0xff]
      %v3447 = vld [vmem:[#allocation2 + $0x48] sm:$0xff]
      %v3448 = vld [vmem:[#allocation2 + $0x50] sm:$0xff]
      %v3449 = vld [vmem:[#allocation2 + $0x58] sm:$0xff]
      %v3450 = vld [vmem:[#allocation2 + $0x60] sm:$0xff]
      %v3451 = vld [vmem:[#allocation2 + $0x68] sm:$0xff]
      %v3452 = vld [vmem:[#allocation2 + $0x70] sm:$0xff]
      %v3453 = vld [vmem:[#allocation2 + $0x78] sm:$0xff]
      %v3454 = vld [vmem:[#allocation2 + $0x80] sm:$0xff]
      %v3455 = vld [vmem:[#allocation2 + $0x88] sm:$0xff]
      %v3456 = vld [vmem:[#allocation2 + $0x90] sm:$0xff]
      %v3457 = vld [vmem:[#allocation2 + $0x98] sm:$0xff]
      %v3458 = vld [vmem:[#allocation2 + $0xa0] sm:$0xff]
      %v3459 = vld [vmem:[#allocation2 + $0xa8] sm:$0xff]
      %v3460 = vld [vmem:[#allocation2 + $0xb0] sm:$0xff]
      %v3461 = vld [vmem:[#allocation2 + $0xb8] sm:$0xff]
      %v3462 = vld [vmem:[#allocation2 + $0xc0] sm:$0xff]
      %v3463 = vld [vmem:[#allocation2 + $0xc8] sm:$0xff]
      %v3464 = vld [vmem:[#allocation2 + $0xd0] sm:$0xff]
      %v3465 = vld [vmem:[#allocation2 + $0xd8] sm:$0xff]
      %v3466 = vld [vmem:[#allocation2 + $0xe0] sm:$0xff]
      %v3467 = vld [vmem:[#allocation2 + $0xe8] sm:$0xff]
      %v3468 = vld [vmem:[#allocation2 + $0xf0] sm:$0xff]
      %v3469 = vld [vmem:[#allocation2 + $0xf8] sm:$0xff]
      %v3470 = vld [vmem:[#allocation2 + $0x100] sm:$0xff]
      %v3471 = vld [vmem:[#allocation2 + $0x108] sm:$0xff]
      %v3472 = vpack.c.bf16 %v3441, %v3440
      %v3473 = vpack.c.bf16 %v3443, %v3442
      %v3474 = vpack.c.bf16 %v3445, %v3444
      %v3475 = vpack.c.bf16 %v3447, %v3446
      %v3476 = vpack.c.bf16 %v3449, %v3448
      %v3477 = vpack.c.bf16 %v3451, %v3450
      %v3478 = vpack.c.bf16 %v3453, %v3452
      %v3479 = vpack.c.bf16 %v3455, %v3454
      %v3480 = vpack.c.bf16 %v3457, %v3456
      %v3481 = vpack.c.bf16 %v3459, %v3458
      %v3482 = vpack.c.bf16 %v3461, %v3460
      %v3483 = vpack.c.bf16 %v3463, %v3462
      %v3484 = vpack.c.bf16 %v3465, %v3464
      %v3485 = vpack.c.bf16 %v3467, %v3466
      %v3486 = vpack.c.bf16 %v3469, %v3468
      %v3487 = vpack.c.bf16 %v3471, %v3470
      %s3488 = scalar_lea.vmem %s3, 16
      %v3489 = vld [vmem:[%s3488] sm:$0x7]
      %v3491 = vsel %vm707, %v3472, 0
      %v3494 = vsel %vm707, %v3473, 0
      %v3497 = vsel %vm707, %v3474, 0
      %v3500 = vsel %vm707, %v3475, 0
      %v3503 = vsel %vm707, %v3476, 0
      %v3506 = vsel %vm707, %v3477, 0
      %v3509 = vsel %vm707, %v3478, 0
      %v3512 = vsel %vm707, %v3479, 0
      %v3515 = vsel %vm707, %v3480, 0
      %v3518 = vsel %vm707, %v3481, 0
      %v3521 = vsel %vm707, %v3482, 0
      %v3524 = vsel %vm707, %v3483, 0
      %v3527 = vsel %vm707, %v3484, 0
      %v3530 = vsel %vm707, %v3485, 0
      %v3533 = vsel %vm707, %v3486, 0
      %v3536 = vsel %vm707, %v3487, 0
      %v3539 = vsel %vm1650, %v3489, 0
      %3541 = vmatpush.bf16.msra.mxu0 0
      %3542 = vmatpush.bf16.msra.mxu0 0
      %3543 = vmatpush.bf16.msra.mxu0 0
      %3544 = vmatpush.bf16.msra.mxu0 0
      %3545 = vmatpush.bf16.msra.mxu0 0
      %3546 = vmatpush.bf16.msra.mxu0 0
      %3547 = vmatpush.bf16.msra.mxu0 0
      %3548 = vmatpush.bf16.msra.mxu0 %v3539
      %3549 = vmatmul.bf16.gmra.mxu0 %v3491
      %v3550 = vpop.f32.mrf.mxu0
      %v3551 = vadd.f32 0.0, %v3550
      %v3552 = vpop.f32.mrf.mxu0
      %v3553 = vadd.f32 0.0, %v3552
      %3554 = vmatmul.bf16.gmra.mxu0 %v3494
      %v3555 = vpop.f32.mrf.mxu0
      %v3556 = vadd.f32 0.0, %v3555
      %v3557 = vpop.f32.mrf.mxu0
      %v3558 = vadd.f32 0.0, %v3557
      %3559 = vmatmul.bf16.gmra.mxu0 %v3497
      %v3560 = vpop.f32.mrf.mxu0
      %v3561 = vadd.f32 0.0, %v3560
      %v3562 = vpop.f32.mrf.mxu0
      %v3563 = vadd.f32 0.0, %v3562
      %3564 = vmatmul.bf16.gmra.mxu0 %v3500
      %v3565 = vpop.f32.mrf.mxu0
      %v3566 = vadd.f32 0.0, %v3565
      %v3567 = vpop.f32.mrf.mxu0
      %v3568 = vadd.f32 0.0, %v3567
      %3569 = vmatmul.bf16.gmra.mxu0 %v3503
      %v3570 = vpop.f32.mrf.mxu0
      %v3571 = vadd.f32 0.0, %v3570
      %v3572 = vpop.f32.mrf.mxu0
      %v3573 = vadd.f32 0.0, %v3572
      %3574 = vmatmul.bf16.gmra.mxu0 %v3506
      %v3575 = vpop.f32.mrf.mxu0
      %v3576 = vadd.f32 0.0, %v3575
      %v3577 = vpop.f32.mrf.mxu0
      %v3578 = vadd.f32 0.0, %v3577
      %3579 = vmatmul.bf16.gmra.mxu0 %v3509
      %v3580 = vpop.f32.mrf.mxu0
      %v3581 = vadd.f32 0.0, %v3580
      %v3582 = vpop.f32.mrf.mxu0
      %v3583 = vadd.f32 0.0, %v3582
      %3584 = vmatmul.bf16.gmra.mxu0 %v3512
      %v3585 = vpop.f32.mrf.mxu0
      %v3586 = vadd.f32 0.0, %v3585
      %v3587 = vpop.f32.mrf.mxu0
      %v3588 = vadd.f32 0.0, %v3587
      %3589 = vmatmul.bf16.gmra.mxu0 %v3515
      %v3590 = vpop.f32.mrf.mxu0
      %v3591 = vadd.f32 0.0, %v3590
      %v3592 = vpop.f32.mrf.mxu0
      %v3593 = vadd.f32 0.0, %v3592
      %3594 = vmatmul.bf16.gmra.mxu0 %v3518
      %v3595 = vpop.f32.mrf.mxu0
      %v3596 = vadd.f32 0.0, %v3595
      %v3597 = vpop.f32.mrf.mxu0
      %v3598 = vadd.f32 0.0, %v3597
      %3599 = vmatmul.bf16.gmra.mxu0 %v3521
      %v3600 = vpop.f32.mrf.mxu0
      %v3601 = vadd.f32 0.0, %v3600
      %v3602 = vpop.f32.mrf.mxu0
      %v3603 = vadd.f32 0.0, %v3602
      %3604 = vmatmul.bf16.gmra.mxu0 %v3524
      %v3605 = vpop.f32.mrf.mxu0
      %v3606 = vadd.f32 0.0, %v3605
      %v3607 = vpop.f32.mrf.mxu0
      %v3608 = vadd.f32 0.0, %v3607
      %3609 = vmatmul.bf16.gmra.mxu0 %v3527
      %v3610 = vpop.f32.mrf.mxu0
      %v3611 = vadd.f32 0.0, %v3610
      %v3612 = vpop.f32.mrf.mxu0
      %v3613 = vadd.f32 0.0, %v3612
      %3614 = vmatmul.bf16.gmra.mxu0 %v3530
      %v3615 = vpop.f32.mrf.mxu0
      %v3616 = vadd.f32 0.0, %v3615
      %v3617 = vpop.f32.mrf.mxu0
      %v3618 = vadd.f32 0.0, %v3617
      %3619 = vmatmul.bf16.gmra.mxu0 %v3533
      %v3620 = vpop.f32.mrf.mxu0
      %v3621 = vadd.f32 0.0, %v3620
      %v3622 = vpop.f32.mrf.mxu0
      %v3623 = vadd.f32 0.0, %v3622
      %3624 = vmatmul.bf16.gmra.mxu0 %v3536
      %v3625 = vpop.f32.mrf.mxu0
      %v3626 = vadd.f32 0.0, %v3625
      %v3627 = vpop.f32.mrf.mxu0
      %v3628 = vadd.f32 0.0, %v3627
      %3629 = vdwg.mxu0
      %v3630 = vld [vmem:[#allocation3] sm:$0xff]
      %v3631 = vld [vmem:[#allocation3 + $0x8] sm:$0xff]
      %v3632 = vld [vmem:[#allocation3 + $0x10] sm:$0xff]
      %v3633 = vld [vmem:[#allocation3 + $0x18] sm:$0xff]
      %v3634 = vld [vmem:[#allocation3 + $0x20] sm:$0xff]
      %v3635 = vld [vmem:[#allocation3 + $0x28] sm:$0xff]
      %v3636 = vld [vmem:[#allocation3 + $0x30] sm:$0xff]
      %v3637 = vld [vmem:[#allocation3 + $0x38] sm:$0xff]
      %v3638 = vld [vmem:[#allocation3 + $0x40] sm:$0xff]
      %v3639 = vld [vmem:[#allocation3 + $0x48] sm:$0xff]
      %v3640 = vld [vmem:[#allocation3 + $0x50] sm:$0xff]
      %v3641 = vld [vmem:[#allocation3 + $0x58] sm:$0xff]
      %v3642 = vld [vmem:[#allocation3 + $0x60] sm:$0xff]
      %v3643 = vld [vmem:[#allocation3 + $0x68] sm:$0xff]
      %v3644 = vld [vmem:[#allocation3 + $0x70] sm:$0xff]
      %v3645 = vld [vmem:[#allocation3 + $0x78] sm:$0xff]
      %v3646 = vld [vmem:[#allocation3 + $0x80] sm:$0xff]
      %v3647 = vld [vmem:[#allocation3 + $0x88] sm:$0xff]
      %v3648 = vld [vmem:[#allocation3 + $0x90] sm:$0xff]
      %v3649 = vld [vmem:[#allocation3 + $0x98] sm:$0xff]
      %v3650 = vld [vmem:[#allocation3 + $0xa0] sm:$0xff]
      %v3651 = vld [vmem:[#allocation3 + $0xa8] sm:$0xff]
      %v3652 = vld [vmem:[#allocation3 + $0xb0] sm:$0xff]
      %v3653 = vld [vmem:[#allocation3 + $0xb8] sm:$0xff]
      %v3654 = vld [vmem:[#allocation3 + $0xc0] sm:$0xff]
      %v3655 = vld [vmem:[#allocation3 + $0xc8] sm:$0xff]
      %v3656 = vld [vmem:[#allocation3 + $0xd0] sm:$0xff]
      %v3657 = vld [vmem:[#allocation3 + $0xd8] sm:$0xff]
      %v3658 = vld [vmem:[#allocation3 + $0xe0] sm:$0xff]
      %v3659 = vld [vmem:[#allocation3 + $0xe8] sm:$0xff]
      %v3660 = vld [vmem:[#allocation3 + $0xf0] sm:$0xff]
      %v3661 = vld [vmem:[#allocation3 + $0xf8] sm:$0xff]
      %v3662 = vadd.f32 %v3630, %v3551
      %v3663 = vadd.f32 %v3631, %v3553
      %v3664 = vadd.f32 %v3632, %v3556
      %v3665 = vadd.f32 %v3633, %v3558
      %v3666 = vadd.f32 %v3634, %v3561
      %v3667 = vadd.f32 %v3635, %v3563
      %v3668 = vadd.f32 %v3636, %v3566
      %v3669 = vadd.f32 %v3637, %v3568
      %v3670 = vadd.f32 %v3638, %v3571
      %v3671 = vadd.f32 %v3639, %v3573
      %v3672 = vadd.f32 %v3640, %v3576
      %v3673 = vadd.f32 %v3641, %v3578
      %v3674 = vadd.f32 %v3642, %v3581
      %v3675 = vadd.f32 %v3643, %v3583
      %v3676 = vadd.f32 %v3644, %v3586
      %v3677 = vadd.f32 %v3645, %v3588
      %v3678 = vadd.f32 %v3646, %v3591
      %v3679 = vadd.f32 %v3647, %v3593
      %v3680 = vadd.f32 %v3648, %v3596
      %v3681 = vadd.f32 %v3649, %v3598
      %v3682 = vadd.f32 %v3650, %v3601
      %v3683 = vadd.f32 %v3651, %v3603
      %v3684 = vadd.f32 %v3652, %v3606
      %v3685 = vadd.f32 %v3653, %v3608
      %v3686 = vadd.f32 %v3654, %v3611
      %v3687 = vadd.f32 %v3655, %v3613
      %v3688 = vadd.f32 %v3656, %v3616
      %v3689 = vadd.f32 %v3657, %v3618
      %v3690 = vadd.f32 %v3658, %v3621
      %v3691 = vadd.f32 %v3659, %v3623
      %v3692 = vadd.f32 %v3660, %v3626
      %v3693 = vadd.f32 %v3661, %v3628
      %3694 = vst.msk [vmem:[#allocation3] sm:$0xff] %vm768, %v3662
      %3695 = vst.msk [vmem:[#allocation3 + $0x8] sm:$0xff] %vm768, %v3663
      %3696 = vst.msk [vmem:[#allocation3 + $0x10] sm:$0xff] %vm768, %v3664
      %3697 = vst.msk [vmem:[#allocation3 + $0x18] sm:$0xff] %vm768, %v3665
      %3698 = vst.msk [vmem:[#allocation3 + $0x20] sm:$0xff] %vm768, %v3666
      %3699 = vst.msk [vmem:[#allocation3 + $0x28] sm:$0xff] %vm768, %v3667
      %3700 = vst.msk [vmem:[#allocation3 + $0x30] sm:$0xff] %vm768, %v3668
      %3701 = vst.msk [vmem:[#allocation3 + $0x38] sm:$0xff] %vm768, %v3669
      %3702 = vst.msk [vmem:[#allocation3 + $0x40] sm:$0xff] %vm768, %v3670
      %3703 = vst.msk [vmem:[#allocation3 + $0x48] sm:$0xff] %vm768, %v3671
      %3704 = vst.msk [vmem:[#allocation3 + $0x50] sm:$0xff] %vm768, %v3672
      %3705 = vst.msk [vmem:[#allocation3 + $0x58] sm:$0xff] %vm768, %v3673
      %3706 = vst.msk [vmem:[#allocation3 + $0x60] sm:$0xff] %vm768, %v3674
      %3707 = vst.msk [vmem:[#allocation3 + $0x68] sm:$0xff] %vm768, %v3675
      %3708 = vst.msk [vmem:[#allocation3 + $0x70] sm:$0xff] %vm768, %v3676
      %3709 = vst.msk [vmem:[#allocation3 + $0x78] sm:$0xff] %vm768, %v3677
      %3710 = vst.msk [vmem:[#allocation3 + $0x80] sm:$0xff] %vm768, %v3678
      %3711 = vst.msk [vmem:[#allocation3 + $0x88] sm:$0xff] %vm768, %v3679
      %3712 = vst.msk [vmem:[#allocation3 + $0x90] sm:$0xff] %vm768, %v3680
      %3713 = vst.msk [vmem:[#allocation3 + $0x98] sm:$0xff] %vm768, %v3681
      %3714 = vst.msk [vmem:[#allocation3 + $0xa0] sm:$0xff] %vm768, %v3682
      %3715 = vst.msk [vmem:[#allocation3 + $0xa8] sm:$0xff] %vm768, %v3683
      %3716 = vst.msk [vmem:[#allocation3 + $0xb0] sm:$0xff] %vm768, %v3684
      %3717 = vst.msk [vmem:[#allocation3 + $0xb8] sm:$0xff] %vm768, %v3685
      %3718 = vst.msk [vmem:[#allocation3 + $0xc0] sm:$0xff] %vm768, %v3686
      %3719 = vst.msk [vmem:[#allocation3 + $0xc8] sm:$0xff] %vm768, %v3687
      %3720 = vst.msk [vmem:[#allocation3 + $0xd0] sm:$0xff] %vm768, %v3688
      %3721 = vst.msk [vmem:[#allocation3 + $0xd8] sm:$0xff] %vm768, %v3689
      %3722 = vst.msk [vmem:[#allocation3 + $0xe0] sm:$0xff] %vm768, %v3690
      %3723 = vst.msk [vmem:[#allocation3 + $0xe8] sm:$0xff] %vm768, %v3691
      %3724 = vst.msk [vmem:[#allocation3 + $0xf0] sm:$0xff] %vm768, %v3692
      %3725 = vst.msk [vmem:[#allocation3 + $0xf8] sm:$0xff] %vm768, %v3693
      %v3726 = vld [vmem:[#allocation2 + $0x20] sm:$0xff]
      %v3727 = vld [vmem:[#allocation2 + $0x28] sm:$0xff]
      %v3728 = vld [vmem:[#allocation2 + $0x30] sm:$0xff]
      %v3729 = vld [vmem:[#allocation2 + $0x38] sm:$0xff]
      %v3730 = vld [vmem:[#allocation2 + $0x40] sm:$0xff]
      %v3731 = vld [vmem:[#allocation2 + $0x48] sm:$0xff]
      %v3732 = vld [vmem:[#allocation2 + $0x50] sm:$0xff]
      %v3733 = vld [vmem:[#allocation2 + $0x58] sm:$0xff]
      %v3734 = vld [vmem:[#allocation2 + $0x60] sm:$0xff]
      %v3735 = vld [vmem:[#allocation2 + $0x68] sm:$0xff]
      %v3736 = vld [vmem:[#allocation2 + $0x70] sm:$0xff]
      %v3737 = vld [vmem:[#allocation2 + $0x78] sm:$0xff]
      %v3738 = vld [vmem:[#allocation2 + $0x80] sm:$0xff]
      %v3739 = vld [vmem:[#allocation2 + $0x88] sm:$0xff]
      %v3740 = vld [vmem:[#allocation2 + $0x90] sm:$0xff]
      %v3741 = vld [vmem:[#allocation2 + $0x98] sm:$0xff]
      %v3742 = vld [vmem:[#allocation2 + $0xa0] sm:$0xff]
      %v3743 = vld [vmem:[#allocation2 + $0xa8] sm:$0xff]
      %v3744 = vld [vmem:[#allocation2 + $0xb0] sm:$0xff]
      %v3745 = vld [vmem:[#allocation2 + $0xb8] sm:$0xff]
      %v3746 = vld [vmem:[#allocation2 + $0xc0] sm:$0xff]
      %v3747 = vld [vmem:[#allocation2 + $0xc8] sm:$0xff]
      %v3748 = vld [vmem:[#allocation2 + $0xd0] sm:$0xff]
      %v3749 = vld [vmem:[#allocation2 + $0xd8] sm:$0xff]
      %v3750 = vld [vmem:[#allocation2 + $0xe0] sm:$0xff]
      %v3751 = vld [vmem:[#allocation2 + $0xe8] sm:$0xff]
      %v3752 = vld [vmem:[#allocation2 + $0xf0] sm:$0xff]
      %v3753 = vld [vmem:[#allocation2 + $0xf8] sm:$0xff]
      %v3754 = vld [vmem:[#allocation2 + $0x100] sm:$0xff]
      %v3755 = vld [vmem:[#allocation2 + $0x108] sm:$0xff]
      %v3756 = vld [vmem:[#allocation2 + $0x110] sm:$0xff]
      %v3757 = vld [vmem:[#allocation2 + $0x118] sm:$0xff]
      %v3758 = vpack.c.bf16 %v3727, %v3726
      %v3759 = vpack.c.bf16 %v3729, %v3728
      %v3760 = vpack.c.bf16 %v3731, %v3730
      %v3761 = vpack.c.bf16 %v3733, %v3732
      %v3762 = vpack.c.bf16 %v3735, %v3734
      %v3763 = vpack.c.bf16 %v3737, %v3736
      %v3764 = vpack.c.bf16 %v3739, %v3738
      %v3765 = vpack.c.bf16 %v3741, %v3740
      %v3766 = vpack.c.bf16 %v3743, %v3742
      %v3767 = vpack.c.bf16 %v3745, %v3744
      %v3768 = vpack.c.bf16 %v3747, %v3746
      %v3769 = vpack.c.bf16 %v3749, %v3748
      %v3770 = vpack.c.bf16 %v3751, %v3750
      %v3771 = vpack.c.bf16 %v3753, %v3752
      %v3772 = vpack.c.bf16 %v3755, %v3754
      %v3773 = vpack.c.bf16 %v3757, %v3756
      %s3774 = scalar_lea.vmem %s3, 20
      %v3775 = vld [vmem:[%s3774] sm:$0x7]
      %v3777 = vsel %vm707, %v3758, 0
      %v3780 = vsel %vm707, %v3759, 0
      %v3783 = vsel %vm707, %v3760, 0
      %v3786 = vsel %vm707, %v3761, 0
      %v3789 = vsel %vm707, %v3762, 0
      %v3792 = vsel %vm707, %v3763, 0
      %v3795 = vsel %vm707, %v3764, 0
      %v3798 = vsel %vm707, %v3765, 0
      %v3801 = vsel %vm707, %v3766, 0
      %v3804 = vsel %vm707, %v3767, 0
      %v3807 = vsel %vm707, %v3768, 0
      %v3810 = vsel %vm707, %v3769, 0
      %v3813 = vsel %vm707, %v3770, 0
      %v3816 = vsel %vm707, %v3771, 0
      %v3819 = vsel %vm707, %v3772, 0
      %v3822 = vsel %vm707, %v3773, 0
      %v3825 = vsel %vm1650, %v3775, 0
      %3827 = vmatpush.bf16.msra.mxu0 0
      %3828 = vmatpush.bf16.msra.mxu0 0
      %3829 = vmatpush.bf16.msra.mxu0 0
      %3830 = vmatpush.bf16.msra.mxu0 0
      %3831 = vmatpush.bf16.msra.mxu0 0
      %3832 = vmatpush.bf16.msra.mxu0 0
      %3833 = vmatpush.bf16.msra.mxu0 0
      %3834 = vmatpush.bf16.msra.mxu0 %v3825
      %3835 = vmatmul.bf16.gmra.mxu0 %v3777
      %v3836 = vpop.f32.mrf.mxu0
      %v3837 = vadd.f32 0.0, %v3836
      %v3838 = vpop.f32.mrf.mxu0
      %v3839 = vadd.f32 0.0, %v3838
      %3840 = vmatmul.bf16.gmra.mxu0 %v3780
      %v3841 = vpop.f32.mrf.mxu0
      %v3842 = vadd.f32 0.0, %v3841
      %v3843 = vpop.f32.mrf.mxu0
      %v3844 = vadd.f32 0.0, %v3843
      %3845 = vmatmul.bf16.gmra.mxu0 %v3783
      %v3846 = vpop.f32.mrf.mxu0
      %v3847 = vadd.f32 0.0, %v3846
      %v3848 = vpop.f32.mrf.mxu0
      %v3849 = vadd.f32 0.0, %v3848
      %3850 = vmatmul.bf16.gmra.mxu0 %v3786
      %v3851 = vpop.f32.mrf.mxu0
      %v3852 = vadd.f32 0.0, %v3851
      %v3853 = vpop.f32.mrf.mxu0
      %v3854 = vadd.f32 0.0, %v3853
      %3855 = vmatmul.bf16.gmra.mxu0 %v3789
      %v3856 = vpop.f32.mrf.mxu0
      %v3857 = vadd.f32 0.0, %v3856
      %v3858 = vpop.f32.mrf.mxu0
      %v3859 = vadd.f32 0.0, %v3858
      %3860 = vmatmul.bf16.gmra.mxu0 %v3792
      %v3861 = vpop.f32.mrf.mxu0
      %v3862 = vadd.f32 0.0, %v3861
      %v3863 = vpop.f32.mrf.mxu0
      %v3864 = vadd.f32 0.0, %v3863
      %3865 = vmatmul.bf16.gmra.mxu0 %v3795
      %v3866 = vpop.f32.mrf.mxu0
      %v3867 = vadd.f32 0.0, %v3866
      %v3868 = vpop.f32.mrf.mxu0
      %v3869 = vadd.f32 0.0, %v3868
      %3870 = vmatmul.bf16.gmra.mxu0 %v3798
      %v3871 = vpop.f32.mrf.mxu0
      %v3872 = vadd.f32 0.0, %v3871
      %v3873 = vpop.f32.mrf.mxu0
      %v3874 = vadd.f32 0.0, %v3873
      %3875 = vmatmul.bf16.gmra.mxu0 %v3801
      %v3876 = vpop.f32.mrf.mxu0
      %v3877 = vadd.f32 0.0, %v3876
      %v3878 = vpop.f32.mrf.mxu0
      %v3879 = vadd.f32 0.0, %v3878
      %3880 = vmatmul.bf16.gmra.mxu0 %v3804
      %v3881 = vpop.f32.mrf.mxu0
      %v3882 = vadd.f32 0.0, %v3881
      %v3883 = vpop.f32.mrf.mxu0
      %v3884 = vadd.f32 0.0, %v3883
      %3885 = vmatmul.bf16.gmra.mxu0 %v3807
      %v3886 = vpop.f32.mrf.mxu0
      %v3887 = vadd.f32 0.0, %v3886
      %v3888 = vpop.f32.mrf.mxu0
      %v3889 = vadd.f32 0.0, %v3888
      %3890 = vmatmul.bf16.gmra.mxu0 %v3810
      %v3891 = vpop.f32.mrf.mxu0
      %v3892 = vadd.f32 0.0, %v3891
      %v3893 = vpop.f32.mrf.mxu0
      %v3894 = vadd.f32 0.0, %v3893
      %3895 = vmatmul.bf16.gmra.mxu0 %v3813
      %v3896 = vpop.f32.mrf.mxu0
      %v3897 = vadd.f32 0.0, %v3896
      %v3898 = vpop.f32.mrf.mxu0
      %v3899 = vadd.f32 0.0, %v3898
      %3900 = vmatmul.bf16.gmra.mxu0 %v3816
      %v3901 = vpop.f32.mrf.mxu0
      %v3902 = vadd.f32 0.0, %v3901
      %v3903 = vpop.f32.mrf.mxu0
      %v3904 = vadd.f32 0.0, %v3903
      %3905 = vmatmul.bf16.gmra.mxu0 %v3819
      %v3906 = vpop.f32.mrf.mxu0
      %v3907 = vadd.f32 0.0, %v3906
      %v3908 = vpop.f32.mrf.mxu0
      %v3909 = vadd.f32 0.0, %v3908
      %3910 = vmatmul.bf16.gmra.mxu0 %v3822
      %v3911 = vpop.f32.mrf.mxu0
      %v3912 = vadd.f32 0.0, %v3911
      %v3913 = vpop.f32.mrf.mxu0
      %v3914 = vadd.f32 0.0, %v3913
      %3915 = vdwg.mxu0
      %v3916 = vld [vmem:[#allocation3] sm:$0xff]
      %v3917 = vld [vmem:[#allocation3 + $0x8] sm:$0xff]
      %v3918 = vld [vmem:[#allocation3 + $0x10] sm:$0xff]
      %v3919 = vld [vmem:[#allocation3 + $0x18] sm:$0xff]
      %v3920 = vld [vmem:[#allocation3 + $0x20] sm:$0xff]
      %v3921 = vld [vmem:[#allocation3 + $0x28] sm:$0xff]
      %v3922 = vld [vmem:[#allocation3 + $0x30] sm:$0xff]
      %v3923 = vld [vmem:[#allocation3 + $0x38] sm:$0xff]
      %v3924 = vld [vmem:[#allocation3 + $0x40] sm:$0xff]
      %v3925 = vld [vmem:[#allocation3 + $0x48] sm:$0xff]
      %v3926 = vld [vmem:[#allocation3 + $0x50] sm:$0xff]
      %v3927 = vld [vmem:[#allocation3 + $0x58] sm:$0xff]
      %v3928 = vld [vmem:[#allocation3 + $0x60] sm:$0xff]
      %v3929 = vld [vmem:[#allocation3 + $0x68] sm:$0xff]
      %v3930 = vld [vmem:[#allocation3 + $0x70] sm:$0xff]
      %v3931 = vld [vmem:[#allocation3 + $0x78] sm:$0xff]
      %v3932 = vld [vmem:[#allocation3 + $0x80] sm:$0xff]
      %v3933 = vld [vmem:[#allocation3 + $0x88] sm:$0xff]
      %v3934 = vld [vmem:[#allocation3 + $0x90] sm:$0xff]
      %v3935 = vld [vmem:[#allocation3 + $0x98] sm:$0xff]
      %v3936 = vld [vmem:[#allocation3 + $0xa0] sm:$0xff]
      %v3937 = vld [vmem:[#allocation3 + $0xa8] sm:$0xff]
      %v3938 = vld [vmem:[#allocation3 + $0xb0] sm:$0xff]
      %v3939 = vld [vmem:[#allocation3 + $0xb8] sm:$0xff]
      %v3940 = vld [vmem:[#allocation3 + $0xc0] sm:$0xff]
      %v3941 = vld [vmem:[#allocation3 + $0xc8] sm:$0xff]
      %v3942 = vld [vmem:[#allocation3 + $0xd0] sm:$0xff]
      %v3943 = vld [vmem:[#allocation3 + $0xd8] sm:$0xff]
      %v3944 = vld [vmem:[#allocation3 + $0xe0] sm:$0xff]
      %v3945 = vld [vmem:[#allocation3 + $0xe8] sm:$0xff]
      %v3946 = vld [vmem:[#allocation3 + $0xf0] sm:$0xff]
      %v3947 = vld [vmem:[#allocation3 + $0xf8] sm:$0xff]
      %v3948 = vadd.f32 %v3916, %v3837
      %v3949 = vadd.f32 %v3917, %v3839
      %v3950 = vadd.f32 %v3918, %v3842
      %v3951 = vadd.f32 %v3919, %v3844
      %v3952 = vadd.f32 %v3920, %v3847
      %v3953 = vadd.f32 %v3921, %v3849
      %v3954 = vadd.f32 %v3922, %v3852
      %v3955 = vadd.f32 %v3923, %v3854
      %v3956 = vadd.f32 %v3924, %v3857
      %v3957 = vadd.f32 %v3925, %v3859
      %v3958 = vadd.f32 %v3926, %v3862
      %v3959 = vadd.f32 %v3927, %v3864
      %v3960 = vadd.f32 %v3928, %v3867
      %v3961 = vadd.f32 %v3929, %v3869
      %v3962 = vadd.f32 %v3930, %v3872
      %v3963 = vadd.f32 %v3931, %v3874
      %v3964 = vadd.f32 %v3932, %v3877
      %v3965 = vadd.f32 %v3933, %v3879
      %v3966 = vadd.f32 %v3934, %v3882
      %v3967 = vadd.f32 %v3935, %v3884
      %v3968 = vadd.f32 %v3936, %v3887
      %v3969 = vadd.f32 %v3937, %v3889
      %v3970 = vadd.f32 %v3938, %v3892
      %v3971 = vadd.f32 %v3939, %v3894
      %v3972 = vadd.f32 %v3940, %v3897
      %v3973 = vadd.f32 %v3941, %v3899
      %v3974 = vadd.f32 %v3942, %v3902
      %v3975 = vadd.f32 %v3943, %v3904
      %v3976 = vadd.f32 %v3944, %v3907
      %v3977 = vadd.f32 %v3945, %v3909
      %v3978 = vadd.f32 %v3946, %v3912
      %v3979 = vadd.f32 %v3947, %v3914
      %3980 = vst.msk [vmem:[#allocation3] sm:$0xff] %vm768, %v3948
      %3981 = vst.msk [vmem:[#allocation3 + $0x8] sm:$0xff] %vm768, %v3949
      %3982 = vst.msk [vmem:[#allocation3 + $0x10] sm:$0xff] %vm768, %v3950
      %3983 = vst.msk [vmem:[#allocation3 + $0x18] sm:$0xff] %vm768, %v3951
      %3984 = vst.msk [vmem:[#allocation3 + $0x20] sm:$0xff] %vm768, %v3952
      %3985 = vst.msk [vmem:[#allocation3 + $0x28] sm:$0xff] %vm768, %v3953
      %3986 = vst.msk [vmem:[#allocation3 + $0x30] sm:$0xff] %vm768, %v3954
      %3987 = vst.msk [vmem:[#allocation3 + $0x38] sm:$0xff] %vm768, %v3955
      %3988 = vst.msk [vmem:[#allocation3 + $0x40] sm:$0xff] %vm768, %v3956
      %3989 = vst.msk [vmem:[#allocation3 + $0x48] sm:$0xff] %vm768, %v3957
      %3990 = vst.msk [vmem:[#allocation3 + $0x50] sm:$0xff] %vm768, %v3958
      %3991 = vst.msk [vmem:[#allocation3 + $0x58] sm:$0xff] %vm768, %v3959
      %3992 = vst.msk [vmem:[#allocation3 + $0x60] sm:$0xff] %vm768, %v3960
      %3993 = vst.msk [vmem:[#allocation3 + $0x68] sm:$0xff] %vm768, %v3961
      %3994 = vst.msk [vmem:[#allocation3 + $0x70] sm:$0xff] %vm768, %v3962
      %3995 = vst.msk [vmem:[#allocation3 + $0x78] sm:$0xff] %vm768, %v3963
      %3996 = vst.msk [vmem:[#allocation3 + $0x80] sm:$0xff] %vm768, %v3964
      %3997 = vst.msk [vmem:[#allocation3 + $0x88] sm:$0xff] %vm768, %v3965
      %3998 = vst.msk [vmem:[#allocation3 + $0x90] sm:$0xff] %vm768, %v3966
      %3999 = vst.msk [vmem:[#allocation3 + $0x98] sm:$0xff] %vm768, %v3967
      %4000 = vst.msk [vmem:[#allocation3 + $0xa0] sm:$0xff] %vm768, %v3968
      %4001 = vst.msk [vmem:[#allocation3 + $0xa8] sm:$0xff] %vm768, %v3969
      %4002 = vst.msk [vmem:[#allocation3 + $0xb0] sm:$0xff] %vm768, %v3970
      %4003 = vst.msk [vmem:[#allocation3 + $0xb8] sm:$0xff] %vm768, %v3971
      %4004 = vst.msk [vmem:[#allocation3 + $0xc0] sm:$0xff] %vm768, %v3972
      %4005 = vst.msk [vmem:[#allocation3 + $0xc8] sm:$0xff] %vm768, %v3973
      %4006 = vst.msk [vmem:[#allocation3 + $0xd0] sm:$0xff] %vm768, %v3974
      %4007 = vst.msk [vmem:[#allocation3 + $0xd8] sm:$0xff] %vm768, %v3975
      %4008 = vst.msk [vmem:[#allocation3 + $0xe0] sm:$0xff] %vm768, %v3976
      %4009 = vst.msk [vmem:[#allocation3 + $0xe8] sm:$0xff] %vm768, %v3977
      %4010 = vst.msk [vmem:[#allocation3 + $0xf0] sm:$0xff] %vm768, %v3978
      %4011 = vst.msk [vmem:[#allocation3 + $0xf8] sm:$0xff] %vm768, %v3979
      %v4012 = vld [vmem:[#allocation3] sm:$0xff]
      %v4013 = vld [vmem:[#allocation3 + $0x8] sm:$0xff]
      %v4014 = vld [vmem:[#allocation3 + $0x10] sm:$0xff]
      %v4015 = vld [vmem:[#allocation3 + $0x18] sm:$0xff]
      %v4016 = vld [vmem:[#allocation3 + $0x20] sm:$0xff]
      %v4017 = vld [vmem:[#allocation3 + $0x28] sm:$0xff]
      %v4018 = vld [vmem:[#allocation3 + $0x30] sm:$0xff]
      %v4019 = vld [vmem:[#allocation3 + $0x38] sm:$0xff]
      %v4020 = vld [vmem:[#allocation3 + $0x40] sm:$0xff]
      %v4021 = vld [vmem:[#allocation3 + $0x48] sm:$0xff]
      %v4022 = vld [vmem:[#allocation3 + $0x50] sm:$0xff]
      %v4023 = vld [vmem:[#allocation3 + $0x58] sm:$0xff]
      %v4024 = vld [vmem:[#allocation3 + $0x60] sm:$0xff]
      %v4025 = vld [vmem:[#allocation3 + $0x68] sm:$0xff]
      %v4026 = vld [vmem:[#allocation3 + $0x70] sm:$0xff]
      %v4027 = vld [vmem:[#allocation3 + $0x78] sm:$0xff]
      %v4028 = vld [vmem:[#allocation3 + $0x80] sm:$0xff]
      %v4029 = vld [vmem:[#allocation3 + $0x88] sm:$0xff]
      %v4030 = vld [vmem:[#allocation3 + $0x90] sm:$0xff]
      %v4031 = vld [vmem:[#allocation3 + $0x98] sm:$0xff]
      %v4032 = vld [vmem:[#allocation3 + $0xa0] sm:$0xff]
      %v4033 = vld [vmem:[#allocation3 + $0xa8] sm:$0xff]
      %v4034 = vld [vmem:[#allocation3 + $0xb0] sm:$0xff]
      %v4035 = vld [vmem:[#allocation3 + $0xb8] sm:$0xff]
      %v4036 = vld [vmem:[#allocation3 + $0xc0] sm:$0xff]
      %v4037 = vld [vmem:[#allocation3 + $0xc8] sm:$0xff]
      %v4038 = vld [vmem:[#allocation3 + $0xd0] sm:$0xff]
      %v4039 = vld [vmem:[#allocation3 + $0xd8] sm:$0xff]
      %v4040 = vld [vmem:[#allocation3 + $0xe0] sm:$0xff]
      %v4041 = vld [vmem:[#allocation3 + $0xe8] sm:$0xff]
      %v4042 = vld [vmem:[#allocation3 + $0xf0] sm:$0xff]
      %v4043 = vld [vmem:[#allocation3 + $0xf8] sm:$0xff]
      %s4044 = scalar_lea.vmem %s4, 1
      %v4045 = vld [vmem:[%s4044] sm:$0x1]
      %v4047 = vperm.slane %v4045, 0
      %v4049 = vadd.f32 %v4012, %v4047
      %v4050 = vadd.f32 %v4013, %v4047
      %v4051 = vadd.f32 %v4014, %v4047
      %v4052 = vadd.f32 %v4015, %v4047
      %v4053 = vadd.f32 %v4016, %v4047
      %v4054 = vadd.f32 %v4017, %v4047
      %v4055 = vadd.f32 %v4018, %v4047
      %v4056 = vadd.f32 %v4019, %v4047
      %v4057 = vadd.f32 %v4020, %v4047
      %v4058 = vadd.f32 %v4021, %v4047
      %v4059 = vadd.f32 %v4022, %v4047
      %v4060 = vadd.f32 %v4023, %v4047
      %v4061 = vadd.f32 %v4024, %v4047
      %v4062 = vadd.f32 %v4025, %v4047
      %v4063 = vadd.f32 %v4026, %v4047
      %v4064 = vadd.f32 %v4027, %v4047
      %v4065 = vadd.f32 %v4028, %v4047
      %v4066 = vadd.f32 %v4029, %v4047
      %v4067 = vadd.f32 %v4030, %v4047
      %v4068 = vadd.f32 %v4031, %v4047
      %v4069 = vadd.f32 %v4032, %v4047
      %v4070 = vadd.f32 %v4033, %v4047
      %v4071 = vadd.f32 %v4034, %v4047
      %v4072 = vadd.f32 %v4035, %v4047
      %v4073 = vadd.f32 %v4036, %v4047
      %v4074 = vadd.f32 %v4037, %v4047
      %v4075 = vadd.f32 %v4038, %v4047
      %v4076 = vadd.f32 %v4039, %v4047
      %v4077 = vadd.f32 %v4040, %v4047
      %v4078 = vadd.f32 %v4041, %v4047
      %v4079 = vadd.f32 %v4042, %v4047
      %v4080 = vadd.f32 %v4043, %v4047
      %vm4081 = vcmp.gt.f32.partialorder %v4049, 0.0
      %vm4082 = vcmp.gt.f32.partialorder %v4050, 0.0
      %vm4083 = vcmp.gt.f32.partialorder %v4051, 0.0
      %vm4084 = vcmp.gt.f32.partialorder %v4052, 0.0
      %vm4085 = vcmp.gt.f32.partialorder %v4053, 0.0
      %vm4086 = vcmp.gt.f32.partialorder %v4054, 0.0
      %vm4087 = vcmp.gt.f32.partialorder %v4055, 0.0
      %vm4088 = vcmp.gt.f32.partialorder %v4056, 0.0
      %vm4089 = vcmp.gt.f32.partialorder %v4057, 0.0
      %vm4090 = vcmp.gt.f32.partialorder %v4058, 0.0
      %vm4091 = vcmp.gt.f32.partialorder %v4059, 0.0
      %vm4092 = vcmp.gt.f32.partialorder %v4060, 0.0
      %vm4093 = vcmp.gt.f32.partialorder %v4061, 0.0
      %vm4094 = vcmp.gt.f32.partialorder %v4062, 0.0
      %vm4095 = vcmp.gt.f32.partialorder %v4063, 0.0
      %vm4096 = vcmp.gt.f32.partialorder %v4064, 0.0
      %vm4097 = vcmp.gt.f32.partialorder %v4065, 0.0
      %vm4098 = vcmp.gt.f32.partialorder %v4066, 0.0
      %vm4099 = vcmp.gt.f32.partialorder %v4067, 0.0
      %vm4100 = vcmp.gt.f32.partialorder %v4068, 0.0
      %vm4101 = vcmp.gt.f32.partialorder %v4069, 0.0
      %vm4102 = vcmp.gt.f32.partialorder %v4070, 0.0
      %vm4103 = vcmp.gt.f32.partialorder %v4071, 0.0
      %vm4104 = vcmp.gt.f32.partialorder %v4072, 0.0
      %vm4105 = vcmp.gt.f32.partialorder %v4073, 0.0
      %vm4106 = vcmp.gt.f32.partialorder %v4074, 0.0
      %vm4107 = vcmp.gt.f32.partialorder %v4075, 0.0
      %vm4108 = vcmp.gt.f32.partialorder %v4076, 0.0
      %vm4109 = vcmp.gt.f32.partialorder %v4077, 0.0
      %vm4110 = vcmp.gt.f32.partialorder %v4078, 0.0
      %vm4111 = vcmp.gt.f32.partialorder %v4079, 0.0
      %vm4112 = vcmp.gt.f32.partialorder %v4080, 0.0
      %v4113 = vmul.f32 %v4049, 0.1
      %v4114 = vmul.f32 %v4050, 0.1
      %v4115 = vmul.f32 %v4051, 0.1
      %v4116 = vmul.f32 %v4052, 0.1
      %v4117 = vmul.f32 %v4053, 0.1
      %v4118 = vmul.f32 %v4054, 0.1
      %v4119 = vmul.f32 %v4055, 0.1
      %v4120 = vmul.f32 %v4056, 0.1
      %v4121 = vmul.f32 %v4057, 0.1
      %v4122 = vmul.f32 %v4058, 0.1
      %v4123 = vmul.f32 %v4059, 0.1
      %v4124 = vmul.f32 %v4060, 0.1
      %v4125 = vmul.f32 %v4061, 0.1
      %v4126 = vmul.f32 %v4062, 0.1
      %v4127 = vmul.f32 %v4063, 0.1
      %v4128 = vmul.f32 %v4064, 0.1
      %v4129 = vmul.f32 %v4065, 0.1
      %v4130 = vmul.f32 %v4066, 0.1
      %v4131 = vmul.f32 %v4067, 0.1
      %v4132 = vmul.f32 %v4068, 0.1
      %v4133 = vmul.f32 %v4069, 0.1
      %v4134 = vmul.f32 %v4070, 0.1
      %v4135 = vmul.f32 %v4071, 0.1
      %v4136 = vmul.f32 %v4072, 0.1
      %v4137 = vmul.f32 %v4073, 0.1
      %v4138 = vmul.f32 %v4074, 0.1
      %v4139 = vmul.f32 %v4075, 0.1
      %v4140 = vmul.f32 %v4076, 0.1
      %v4141 = vmul.f32 %v4077, 0.1
      %v4142 = vmul.f32 %v4078, 0.1
      %v4143 = vmul.f32 %v4079, 0.1
      %v4144 = vmul.f32 %v4080, 0.1
      %v4145 = vsel %vm4081, %v4049, %v4113
      %v4146 = vsel %vm4082, %v4050, %v4114
      %v4147 = vsel %vm4083, %v4051, %v4115
      %v4148 = vsel %vm4084, %v4052, %v4116
      %v4149 = vsel %vm4085, %v4053, %v4117
      %v4150 = vsel %vm4086, %v4054, %v4118
      %v4151 = vsel %vm4087, %v4055, %v4119
      %v4152 = vsel %vm4088, %v4056, %v4120
      %v4153 = vsel %vm4089, %v4057, %v4121
      %v4154 = vsel %vm4090, %v4058, %v4122
      %v4155 = vsel %vm4091, %v4059, %v4123
      %v4156 = vsel %vm4092, %v4060, %v4124
      %v4157 = vsel %vm4093, %v4061, %v4125
      %v4158 = vsel %vm4094, %v4062, %v4126
      %v4159 = vsel %vm4095, %v4063, %v4127
      %v4160 = vsel %vm4096, %v4064, %v4128
      %v4161 = vsel %vm4097, %v4065, %v4129
      %v4162 = vsel %vm4098, %v4066, %v4130
      %v4163 = vsel %vm4099, %v4067, %v4131
      %v4164 = vsel %vm4100, %v4068, %v4132
      %v4165 = vsel %vm4101, %v4069, %v4133
      %v4166 = vsel %vm4102, %v4070, %v4134
      %v4167 = vsel %vm4103, %v4071, %v4135
      %v4168 = vsel %vm4104, %v4072, %v4136
      %v4169 = vsel %vm4105, %v4073, %v4137
      %v4170 = vsel %vm4106, %v4074, %v4138
      %v4171 = vsel %vm4107, %v4075, %v4139
      %v4172 = vsel %vm4108, %v4076, %v4140
      %v4173 = vsel %vm4109, %v4077, %v4141
      %v4174 = vsel %vm4110, %v4078, %v4142
      %v4175 = vsel %vm4111, %v4079, %v4143
      %v4176 = vsel %vm4112, %v4080, %v4144
      %v4177 = vadd.f32 %v4145, %v2511
      %v4178 = vadd.f32 %v4146, %v2512
      %v4179 = vadd.f32 %v4147, %v2513
      %v4180 = vadd.f32 %v4148, %v2514
      %v4181 = vadd.f32 %v4149, %v2515
      %v4182 = vadd.f32 %v4150, %v2516
      %v4183 = vadd.f32 %v4151, %v2517
      %v4184 = vadd.f32 %v4152, %v2518
      %v4185 = vadd.f32 %v4153, %v2519
      %v4186 = vadd.f32 %v4154, %v2520
      %v4187 = vadd.f32 %v4155, %v2521
      %v4188 = vadd.f32 %v4156, %v2522
      %v4189 = vadd.f32 %v4157, %v2523
      %v4190 = vadd.f32 %v4158, %v2524
      %v4191 = vadd.f32 %v4159, %v2525
      %v4192 = vadd.f32 %v4160, %v2526
      %v4193 = vadd.f32 %v4161, %v2527
      %v4194 = vadd.f32 %v4162, %v2528
      %v4195 = vadd.f32 %v4163, %v2529
      %v4196 = vadd.f32 %v4164, %v2530
      %v4197 = vadd.f32 %v4165, %v2531
      %v4198 = vadd.f32 %v4166, %v2532
      %v4199 = vadd.f32 %v4167, %v2533
      %v4200 = vadd.f32 %v4168, %v2534
      %v4201 = vadd.f32 %v4169, %v2535
      %v4202 = vadd.f32 %v4170, %v2536
      %v4203 = vadd.f32 %v4171, %v2537
      %v4204 = vadd.f32 %v4172, %v2538
      %v4205 = vadd.f32 %v4173, %v2539
      %v4206 = vadd.f32 %v4174, %v2540
      %v4207 = vadd.f32 %v4175, %v2541
      %v4208 = vadd.f32 %v4176, %v2542
      %4209 = vst.msk [vmem:[%s224] sm:$0xff] %vm768, %v4177
      %4210 = vst.msk [vmem:[%s224 + $0x8] sm:$0xff] %vm768, %v4178
      %4211 = vst.msk [vmem:[%s224 + $0x10] sm:$0xff] %vm768, %v4179
      %4212 = vst.msk [vmem:[%s224 + $0x18] sm:$0xff] %vm768, %v4180
      %4213 = vst.msk [vmem:[%s224 + $0x20] sm:$0xff] %vm768, %v4181
      %4214 = vst.msk [vmem:[%s224 + $0x28] sm:$0xff] %vm768, %v4182
      %4215 = vst.msk [vmem:[%s224 + $0x30] sm:$0xff] %vm768, %v4183
      %4216 = vst.msk [vmem:[%s224 + $0x38] sm:$0xff] %vm768, %v4184
      %4217 = vst.msk [vmem:[%s224 + $0x40] sm:$0xff] %vm768, %v4185
      %4218 = vst.msk [vmem:[%s224 + $0x48] sm:$0xff] %vm768, %v4186
      %4219 = vst.msk [vmem:[%s224 + $0x50] sm:$0xff] %vm768, %v4187
      %4220 = vst.msk [vmem:[%s224 + $0x58] sm:$0xff] %vm768, %v4188
      %4221 = vst.msk [vmem:[%s224 + $0x60] sm:$0xff] %vm768, %v4189
      %4222 = vst.msk [vmem:[%s224 + $0x68] sm:$0xff] %vm768, %v4190
      %4223 = vst.msk [vmem:[%s224 + $0x70] sm:$0xff] %vm768, %v4191
      %4224 = vst.msk [vmem:[%s224 + $0x78] sm:$0xff] %vm768, %v4192
      %4225 = vst.msk [vmem:[%s224 + $0x80] sm:$0xff] %vm768, %v4193
      %4226 = vst.msk [vmem:[%s224 + $0x88] sm:$0xff] %vm768, %v4194
      %4227 = vst.msk [vmem:[%s224 + $0x90] sm:$0xff] %vm768, %v4195
      %4228 = vst.msk [vmem:[%s224 + $0x98] sm:$0xff] %vm768, %v4196
      %4229 = vst.msk [vmem:[%s224 + $0xa0] sm:$0xff] %vm768, %v4197
      %4230 = vst.msk [vmem:[%s224 + $0xa8] sm:$0xff] %vm768, %v4198
      %4231 = vst.msk [vmem:[%s224 + $0xb0] sm:$0xff] %vm768, %v4199
      %4232 = vst.msk [vmem:[%s224 + $0xb8] sm:$0xff] %vm768, %v4200
      %4233 = vst.msk [vmem:[%s224 + $0xc0] sm:$0xff] %vm768, %v4201
      %4234 = vst.msk [vmem:[%s224 + $0xc8] sm:$0xff] %vm768, %v4202
      %4235 = vst.msk [vmem:[%s224 + $0xd0] sm:$0xff] %vm768, %v4203
      %4236 = vst.msk [vmem:[%s224 + $0xd8] sm:$0xff] %vm768, %v4204
      %4237 = vst.msk [vmem:[%s224 + $0xe0] sm:$0xff] %vm768, %v4205
      %4238 = vst.msk [vmem:[%s224 + $0xe8] sm:$0xff] %vm768, %v4206
      %4239 = vst.msk [vmem:[%s224 + $0xf0] sm:$0xff] %vm768, %v4207
      %4240 = vst.msk [vmem:[%s224 + $0xf8] sm:$0xff] %vm768, %v4208
      %p4241 = scmp.lt.s32.totalorder %s16, 1
      %s4242 = scalar_select %p4241, %s16, 1
      %s4243 = smul.addr %s4242, 32
      %s4244 = smul.addr %s4243, 8
      %s4245 = scalar_lea.vmem %s5, %s4244
      // Predicated region
      $region41: #{tpu_custom_call.1} parent=39 // pred_check
        %p4246 = pneg %p144
      $region42: #{tpu_custom_call.1} parent=39 // pred_check_branch
        %4248 = sbr.rel (%p4246) target = $region44
      $region43: #{tpu_custom_call.1} parent=39 // pred_region
        _
      $region44: #{tpu_custom_call.1} parent=39 // pred_fallthru
        _
    $region40: #{tpu_custom_call.1} parent=5 // pred_fallthru
      _
    %p4249 = scmp.le.s32.totalorder 2, %s11
    // Predicated region
    $region45: #{tpu_custom_call.1} parent=5 // pred_check
      %p4250 = pneg %p4249
    $region46: #{tpu_custom_call.1} parent=5 // pred_check_branch
      %4252 = sbr.rel (%p4250) target = $region48
    $region47: #{tpu_custom_call.1} parent=5 // pred_region
      %s4253 = ssub.s32 %s11, 2
      // Predicated region
      $region49: #{tpu_custom_call.1} parent=47 // pred_check
        %p4254 = pneg %p150
      $region50: #{tpu_custom_call.1} parent=47 // pred_check_branch
        %4256 = sbr.rel (%p4254) target = $region52
      $region51: #{tpu_custom_call.1} parent=47 // pred_region
        %p4257 = scmp.lt.s32.totalorder %s17, 1
        %s4258 = scalar_select %p4257, %s17, 1
        %s4259 = smul.addr %s4258, 32
        %s4260 = smul.addr %s4259, 8
        %s4261 = scalar_lea.vmem %s5, %s4260
      $region52: #{tpu_custom_call.1} parent=47 // pred_fallthru
        _
    $region48: #{tpu_custom_call.1} parent=5 // pred_fallthru
      _
  $region6: #{tpu_custom_call.1} parent=0 // loop_footer
    %s15 = sadd.s32 1, %s11
  $region7: #{tpu_custom_call.1} parent=0 // loop_footer_branch
    %10 = sbr.rel target = $region3
  $region8: #{tpu_custom_call.1} parent=0 // loop_exit
    _

</llo_original>
